<compile_context>
chip_gen: v5e
topology: v5e:2x2
jax: 0.10.0
libtpu: 0.0.40
codegen_flags: <defaults>
</compile_context>

<pallas_src>
import jax
import jax.numpy as jnp
import numpy as np
from jax import lax
from jax.experimental import pallas as pl
from jax.experimental.pallas import tpu as pltpu


def _round_up(x, m):
    return ((x + m - 1) // m) * m


def _conv1_gelu_kernel(cols_ref, w_ref, out_ref):
    """Single-shot (tm, K_pad) @ (K_pad, Cout) MXU matmul + fused v28 epilogue.

    Bias is folded into the matmul: cols has a ones column at index K and
    w has the bias in row K, so v1 = cols @ w is already the conv output.
    """
    v1 = jnp.dot(cols_ref[...], w_ref[...], preferred_element_type=jnp.float32)
    v5 = (v1 * v1) * v1 * 0.044715                              # == v15
    v10 = (v1 * 0.5) * (jnp.tanh((v1 + v5) * 0.7978845608028654) + 1.0)
    out_ref[...] = (v10 + v5).astype(out_ref.dtype)             # v28 = v10 + v15


def _extract_patches(x, kh, kw, stride, dilation):
    """Dilated/strided im2col with no gather: two separable identity convs.

    x: (N, Cin, H, W). Returns (N, OH, OW, Cin*kh*kw) with the last axis
    ordered as (ci, kh_i, kw_i), i.e. flat index = ci*kh*kw + kh_i*kw + kw_i.
    """
    # H pass: output channels ordered (ci, kh_i).
    p = lax.conv_general_dilated_patches(
        x, filter_shape=(kh, 1), window_strides=(stride, 1), padding="VALID",
        rhs_dilation=(dilation, 1),
        dimension_numbers=("NCHW", "OIHW", "NCHW"),
        precision=lax.Precision.HIGHEST)                 # exact copy of x values
    # W pass: output channels ordered ((ci, kh_i), kw_i); emit NHWC directly.
    p = lax.conv_general_dilated_patches(
        p, filter_shape=(1, kw), window_strides=(1, stride), padding="VALID",
        rhs_dilation=(1, dilation),
        dimension_numbers=("NCHW", "OIHW", "NHWC"),
        precision=lax.Precision.HIGHEST)
    return p                                             # (N, OH, OW, Cin*kh*kw)


def model_forward(x, w1, b1, *, stride=3, dilation=2):
    """x: (N, Cin, H, W) NCHW; w1: (Cout, Cin, KH, KW) OIHW; b1: (Cout,)."""
    N, Cin, H, W = x.shape
    Cout, _, KH, KW = w1.shape
    OH = (H - dilation * (KH - 1) - 1) // stride + 1
    OW = (W - dilation * (KW - 1) - 1) // stride + 1
    M = N * OH * OW
    K = Cin * KH * KW

    patches = _extract_patches(x, KH, KW, stride, dilation)     # (N, OH, OW, K)
    cols = patches.reshape(M, K)

    # weights to (ci, kh, kw, co) -> (K, Cout), matching the patch ordering
    w_mat = jnp.transpose(w1, (1, 2, 3, 0)).reshape(K, Cout).astype(jnp.float32)

    # Pad K to a multiple of 128 once; fold the bias into the matmul using the
    # first padding column (cols gets 1.0, w gets the bias row).
    K_pad = _round_up(K + 1, 128)                 # 10112 for K = 10000
    tm = min(256, _round_up(M, 8))                # 72 here -> single grid step
    M_pad = _round_up(M, tm)

    cols_p = jnp.concatenate(
        [cols, jnp.ones((M, 1), cols.dtype),
         jnp.zeros((M, K_pad - K - 1), cols.dtype)], axis=1)
    if M_pad > M:
        cols_p = jnp.pad(cols_p, ((0, M_pad - M), (0, 0)))
    w_p = jnp.concatenate(
        [w_mat, b1.reshape(1, Cout).astype(jnp.float32),
         jnp.zeros((K_pad - K - 1, Cout), jnp.float32)], axis=0)

    out = pl.pallas_call(
        _conv1_gelu_kernel,
        out_shape=jax.ShapeDtypeStruct((M_pad, Cout), jnp.float32),
        grid=(M_pad // tm,),
        in_specs=[
            pl.BlockSpec((tm, K_pad), lambda i: (i, 0)),      # cols tile
            pl.BlockSpec((K_pad, Cout), lambda i: (0, 0)),    # weights (resident)
        ],
        out_specs=pl.BlockSpec((tm, Cout), lambda i: (i, 0)),
        compiler_params=pltpu.CompilerParams(
            dimension_semantics=("parallel",),
            vmem_limit_bytes=48 * 1024 * 1024),
    )(cols_p, w_p)

    out_nhwc = out[:M].reshape(N, OH, OW, Cout)
    return jnp.transpose(out_nhwc, (0, 3, 1, 2))                # NCHW


if __name__ == "__main__":
    key = jax.random.PRNGKey(0)
    kx, kw1, kb1, kw2, kb2 = jax.random.split(key, 5)

    # conv1 needs Cin=16 and spatial extent >= dilation*(25-1)+1 = 49.
    N, Cin, H, W = 2, 16, 64, 64
    x = jax.random.normal(kx, (N, Cin, H, W), dtype=jnp.float32)

    # conv1 parameters (PyTorch-default-like uniform init, deterministic)
    fan_in1 = Cin * 25 * 25
    bound1 = 1.0 / np.sqrt(fan_in1)
    w1 = jax.random.uniform(kw1, (4, Cin, 25, 25), minval=-bound1,
                            maxval=bound1, dtype=jnp.float32)
    b1 = jax.random.uniform(kb1, (4,), minval=-bound1, maxval=bound1,
                            dtype=jnp.float32)

    # conv2 params exist in the torch __init__ but never reach v28 (dead code).
    fan_in2 = (4 // 2) * 5 * 5
    bound2 = 1.0 / np.sqrt(fan_in2)
    w2 = jax.random.uniform(kw2, (4, 2, 5, 5), minval=-bound2, maxval=bound2,
                            dtype=jnp.float32)
    b2 = jax.random.uniform(kb2, (4,), minval=-bound2, maxval=bound2,
                            dtype=jnp.float32)

    out = jax.jit(model_forward)(x, w1, b1)
    out = jax.block_until_ready(out)

    # pure-JAX reference for correctness
    v1 = lax.conv_general_dilated(
        x, w1, window_strides=(3, 3), padding="VALID", rhs_dilation=(2, 2),
        dimension_numbers=("NCHW", "OIHW", "NCHW")) + b1[None, :, None, None]
    v5 = (v1 * v1 * v1) * 0.044715
    ref = 0.5 * v1 * (jnp.tanh(0.7978845608028654 * (v1 + v5)) + 1.0) + v5

    assert out.shape == (N, 4, 6, 6), out.shape
    np.testing.assert_allclose(np.asarray(out), np.asarray(ref),
                               rtol=1e-3, atol=1e-3)
    print("KERNEL_OK")
</pallas_src>

<mosaic_0001>
module attributes {stable_mosaic.version = 11 : i64} {
  func.func @_conv1_gelu_kernel(%arg0: i32, %arg1: memref<72x10112xf32, #tpu.memory_space<vmem>>, %arg2: memref<10112x4xf32, #tpu.memory_space<vmem>>, %arg3: memref<72x4xf32, #tpu.memory_space<vmem>>) attributes {dimension_semantics = [#tpu.dimension_semantics<parallel>], iteration_bounds = array<i64: 1>, scalar_prefetch = 0 : i64, scratch_operands = 0 : i64, tpu.core_type = #tpu.core_type<tc>, window_params = [{transform_indices = @transform_0, window_bounds = array<i64: 72, 10112>}, {pipeline_mode = #tpu.pipeline_mode<synchronous>, transform_indices = @transform_1, window_bounds = array<i64: 10112, 4>}, {transform_indices = @transform_2, window_bounds = array<i64: 72, 4>}]} {
    %c0 = arith.constant 0 : index
    %c0_0 = arith.constant 0 : index
    %0 = vector.load %arg1[%c0, %c0_0] : memref<72x10112xf32, #tpu.memory_space<vmem>>, vector<72x10112xf32>
    %c0_1 = arith.constant 0 : index
    %c0_2 = arith.constant 0 : index
    %1 = vector.load %arg2[%c0_1, %c0_2] : memref<10112x4xf32, #tpu.memory_space<vmem>>, vector<10112x4xf32>
    %cst = arith.constant dense<0.000000e+00> : vector<72x4xf32>
    %2 = tpu.matmul %0, %1, %cst {dimension_numbers = #tpu.dot_dimension_numbers<[1], [0], [0], [1], [0, 0, 1, 1], [], []>} : vector<72x10112xf32>, vector<10112x4xf32>, vector<72x4xf32> -> vector<72x4xf32>
    %3 = arith.mulf %2, %2 : vector<72x4xf32>
    %4 = arith.mulf %3, %2 : vector<72x4xf32>
    %cst_3 = arith.constant 4.471500e-02 : f32
    %5 = vector.broadcast %cst_3 : f32 to vector<72x4xf32>
    %6 = arith.mulf %4, %5 : vector<72x4xf32>
    %cst_4 = arith.constant 5.000000e-01 : f32
    %7 = vector.broadcast %cst_4 : f32 to vector<72x4xf32>
    %8 = arith.mulf %2, %7 : vector<72x4xf32>
    %9 = arith.addf %2, %6 : vector<72x4xf32>
    %cst_5 = arith.constant 0.797884583 : f32
    %10 = vector.broadcast %cst_5 : f32 to vector<72x4xf32>
    %11 = arith.mulf %9, %10 : vector<72x4xf32>
    %12 = math.tanh %11 : vector<72x4xf32>
    %cst_6 = arith.constant 1.000000e+00 : f32
    %13 = vector.broadcast %cst_6 : f32 to vector<72x4xf32>
    %14 = arith.addf %12, %13 : vector<72x4xf32>
    %15 = arith.mulf %8, %14 : vector<72x4xf32>
    %16 = arith.addf %15, %6 : vector<72x4xf32>
    %c0_7 = arith.constant 0 : index
    %c0_8 = arith.constant 0 : index
    %17 = vector.load %arg3[%c0_7, %c0_8] : memref<72x4xf32, #tpu.memory_space<vmem>>, vector<72x4xf32>
    tpu.vector_store %arg3[%c0_7, %c0_8], %16 {strides = array<i32>} : memref<72x4xf32, #tpu.memory_space<vmem>>, vector<72x4xf32>,
    return
  }
  func.func @transform_0(%arg0: i32) -> (i32, i32) {
    %c0_i32 = arith.constant 0 : i32
    %c0_i32_0 = arith.constant 0 : i32
    return %arg0, %c0_i32 : i32, i32
  }
  func.func @transform_1(%arg0: i32) -> (i32, i32) {
    %c0_i32 = arith.constant 0 : i32
    %c0_i32_0 = arith.constant 0 : i32
    %c0_i32_1 = arith.constant 0 : i32
    return %c0_i32, %c0_i32_0 : i32, i32
  }
  func.func @transform_2(%arg0: i32) -> (i32, i32) {
    %c0_i32 = arith.constant 0 : i32
    %c0_i32_0 = arith.constant 0 : i32
    return %arg0, %c0_i32 : i32, i32
  }
}

</mosaic_0001>

<llo_original>
// kernel: model_forward.1
$region0: #{model_forward.1}
  #allocation0 [shape = 'u32[]', space=smem, size = 0x4, offset = 0x4, fixed_abs, tag = 'smem constant byte address 0x4 - core index']
  #allocation1 [shape = 'u32[72,128]{1,0:T(1,128)}', space=vmem, size = 0x9000, scoped, tag = 'internal scratch']
  %s0 = inlined_call_operand.vmem [shape: f32[72,10112], index: 0, kind: input, shape index: {}]
  %s1 = inlined_call_operand.vmem [shape: f32[10112,4], index: 1, kind: input, shape index: {}]
  %s2 = inlined_call_operand.vmem [shape: f32[72,4], index: 2, kind: output, shape index: {}]
  %s3 = sld [smem:[#allocation0]]
  $region18: #{model_forward.1} parent=0
    _
  %s5 = ssub.s32 1, %s3
  %s6 = scalar_select 0, %s5, %s3
  // Predicated region
  $region2: #{model_forward.1} parent=0 // pred_check
    _
  $region3: #{model_forward.1} parent=0 // pred_check_branch
    %8 = sbr.rel (0) target = $region5
  $region4: #{model_forward.1} parent=0 // pred_region
    _
  $region5: #{model_forward.1} parent=0 // pred_fallthru
    _
  // Predicated region
  $region6: #{model_forward.1} parent=0 // pred_check
    _
  $region7: #{model_forward.1} parent=0 // pred_check_branch
    %10 = sbr.rel (0) target = $region9
  $region8: #{model_forward.1} parent=0 // pred_region
    _
  $region9: #{model_forward.1} parent=0 // pred_fallthru
    _
  %v11 = vld [vmem:[%s0] sm:$0xff]
  %v12 = vld [vmem:[%s0 + $0x8] sm:$0xff]
  %v13 = vld [vmem:[%s0 + $0x10] sm:$0xff]
  %v14 = vld [vmem:[%s0 + $0x18] sm:$0xff]
  %v15 = vld [vmem:[%s0 + $0x20] sm:$0xff]
  %v16 = vld [vmem:[%s0 + $0x28] sm:$0xff]
  %v17 = vld [vmem:[%s0 + $0x30] sm:$0xff]
  %v18 = vld [vmem:[%s0 + $0x38] sm:$0xff]
  %v19 = vld [vmem:[%s0 + $0x40] sm:$0xff]
  %v20 = vld [vmem:[%s0 + $0x48] sm:$0xff]
  %v21 = vld [vmem:[%s0 + $0x50] sm:$0xff]
  %v22 = vld [vmem:[%s0 + $0x58] sm:$0xff]
  %v23 = vld [vmem:[%s0 + $0x60] sm:$0xff]
  %v24 = vld [vmem:[%s0 + $0x68] sm:$0xff]
  %v25 = vld [vmem:[%s0 + $0x70] sm:$0xff]
  %v26 = vld [vmem:[%s0 + $0x78] sm:$0xff]
  %v27 = vld [vmem:[%s0 + $0x80] sm:$0xff]
  %v28 = vld [vmem:[%s0 + $0x88] sm:$0xff]
  %v29 = vld [vmem:[%s0 + $0x90] sm:$0xff]
  %v30 = vld [vmem:[%s0 + $0x98] sm:$0xff]
  %v31 = vld [vmem:[%s0 + $0xa0] sm:$0xff]
  %v32 = vld [vmem:[%s0 + $0xa8] sm:$0xff]
  %v33 = vld [vmem:[%s0 + $0xb0] sm:$0xff]
  %v34 = vld [vmem:[%s0 + $0xb8] sm:$0xff]
  %v35 = vld [vmem:[%s0 + $0xc0] sm:$0xff]
  %v36 = vld [vmem:[%s0 + $0xc8] sm:$0xff]
  %v37 = vld [vmem:[%s0 + $0xd0] sm:$0xff]
  %v38 = vld [vmem:[%s0 + $0xd8] sm:$0xff]
  %v39 = vld [vmem:[%s0 + $0xe0] sm:$0xff]
  %v40 = vld [vmem:[%s0 + $0xe8] sm:$0xff]
  %v41 = vld [vmem:[%s0 + $0xf0] sm:$0xff]
  %v42 = vld [vmem:[%s0 + $0xf8] sm:$0xff]
  %v43 = vld [vmem:[%s0 + $0x100] sm:$0xff]
  %v44 = vld [vmem:[%s0 + $0x108] sm:$0xff]
  %v45 = vld [vmem:[%s0 + $0x110] sm:$0xff]
  %v46 = vld [vmem:[%s0 + $0x118] sm:$0xff]
  %v47 = vld [vmem:[%s0 + $0x120] sm:$0xff]
  %v48 = vld [vmem:[%s0 + $0x128] sm:$0xff]
  %v49 = vld [vmem:[%s0 + $0x130] sm:$0xff]
  %v50 = vld [vmem:[%s0 + $0x138] sm:$0xff]
  %v51 = vld [vmem:[%s0 + $0x140] sm:$0xff]
  %v52 = vld [vmem:[%s0 + $0x148] sm:$0xff]
  %v53 = vld [vmem:[%s0 + $0x150] sm:$0xff]
  %v54 = vld [vmem:[%s0 + $0x158] sm:$0xff]
  %v55 = vld [vmem:[%s0 + $0x160] sm:$0xff]
  %v56 = vld [vmem:[%s0 + $0x168] sm:$0xff]
  %v57 = vld [vmem:[%s0 + $0x170] sm:$0xff]
  %v58 = vld [vmem:[%s0 + $0x178] sm:$0xff]
  %v59 = vld [vmem:[%s0 + $0x180] sm:$0xff]
  %v60 = vld [vmem:[%s0 + $0x188] sm:$0xff]
  %v61 = vld [vmem:[%s0 + $0x190] sm:$0xff]
  %v62 = vld [vmem:[%s0 + $0x198] sm:$0xff]
  %v63 = vld [vmem:[%s0 + $0x1a0] sm:$0xff]
  %v64 = vld [vmem:[%s0 + $0x1a8] sm:$0xff]
  %v65 = vld [vmem:[%s0 + $0x1b0] sm:$0xff]
  %v66 = vld [vmem:[%s0 + $0x1b8] sm:$0xff]
  %v67 = vld [vmem:[%s0 + $0x1c0] sm:$0xff]
  %v68 = vld [vmem:[%s0 + $0x1c8] sm:$0xff]
  %v69 = vld [vmem:[%s0 + $0x1d0] sm:$0xff]
  %v70 = vld [vmem:[%s0 + $0x1d8] sm:$0xff]
  %v71 = vld [vmem:[%s0 + $0x1e0] sm:$0xff]
  %v72 = vld [vmem:[%s0 + $0x1e8] sm:$0xff]
  %v73 = vld [vmem:[%s0 + $0x1f0] sm:$0xff]
  %v74 = vld [vmem:[%s0 + $0x1f8] sm:$0xff]
  %v75 = vld [vmem:[%s0 + $0x200] sm:$0xff]
  %v76 = vld [vmem:[%s0 + $0x208] sm:$0xff]
  %v77 = vld [vmem:[%s0 + $0x210] sm:$0xff]
  %v78 = vld [vmem:[%s0 + $0x218] sm:$0xff]
  %v79 = vld [vmem:[%s0 + $0x220] sm:$0xff]
  %v80 = vld [vmem:[%s0 + $0x228] sm:$0xff]
  %v81 = vld [vmem:[%s0 + $0x230] sm:$0xff]
  %v82 = vld [vmem:[%s0 + $0x238] sm:$0xff]
  %v83 = vld [vmem:[%s0 + $0x240] sm:$0xff]
  %v84 = vld [vmem:[%s0 + $0x248] sm:$0xff]
  %v85 = vld [vmem:[%s0 + $0x250] sm:$0xff]
  %v86 = vld [vmem:[%s0 + $0x258] sm:$0xff]
  %v87 = vld [vmem:[%s0 + $0x260] sm:$0xff]
  %v88 = vld [vmem:[%s0 + $0x268] sm:$0xff]
  %v89 = vld [vmem:[%s0 + $0x270] sm:$0xff]
  %v90 = vld [vmem:[%s0 + $0x278] sm:$0xff]
  %v91 = vld [vmem:[%s0 + $0x280] sm:$0xff]
  %v92 = vld [vmem:[%s0 + $0x288] sm:$0xff]
  %v93 = vld [vmem:[%s0 + $0x290] sm:$0xff]
  %v94 = vld [vmem:[%s0 + $0x298] sm:$0xff]
  %v95 = vld [vmem:[%s0 + $0x2a0] sm:$0xff]
  %v96 = vld [vmem:[%s0 + $0x2a8] sm:$0xff]
  %v97 = vld [vmem:[%s0 + $0x2b0] sm:$0xff]
  %v98 = vld [vmem:[%s0 + $0x2b8] sm:$0xff]
  %v99 = vld [vmem:[%s0 + $0x2c0] sm:$0xff]
  %v100 = vld [vmem:[%s0 + $0x2c8] sm:$0xff]
  %v101 = vld [vmem:[%s0 + $0x2d0] sm:$0xff]
  %v102 = vld [vmem:[%s0 + $0x2d8] sm:$0xff]
  %v103 = vld [vmem:[%s0 + $0x2e0] sm:$0xff]
  %v104 = vld [vmem:[%s0 + $0x2e8] sm:$0xff]
  %v105 = vld [vmem:[%s0 + $0x2f0] sm:$0xff]
  %v106 = vld [vmem:[%s0 + $0x2f8] sm:$0xff]
  %v107 = vld [vmem:[%s0 + $0x300] sm:$0xff]
  %v108 = vld [vmem:[%s0 + $0x308] sm:$0xff]
  %v109 = vld [vmem:[%s0 + $0x310] sm:$0xff]
  %v110 = vld [vmem:[%s0 + $0x318] sm:$0xff]
  %v111 = vld [vmem:[%s0 + $0x320] sm:$0xff]
  %v112 = vld [vmem:[%s0 + $0x328] sm:$0xff]
  %v113 = vld [vmem:[%s0 + $0x330] sm:$0xff]
  %v114 = vld [vmem:[%s0 + $0x338] sm:$0xff]
  %v115 = vld [vmem:[%s0 + $0x340] sm:$0xff]
  %v116 = vld [vmem:[%s0 + $0x348] sm:$0xff]
  %v117 = vld [vmem:[%s0 + $0x350] sm:$0xff]
  %v118 = vld [vmem:[%s0 + $0x358] sm:$0xff]
  %v119 = vld [vmem:[%s0 + $0x360] sm:$0xff]
  %v120 = vld [vmem:[%s0 + $0x368] sm:$0xff]
  %v121 = vld [vmem:[%s0 + $0x370] sm:$0xff]
  %v122 = vld [vmem:[%s0 + $0x378] sm:$0xff]
  %v123 = vld [vmem:[%s0 + $0x380] sm:$0xff]
  %v124 = vld [vmem:[%s0 + $0x388] sm:$0xff]
  %v125 = vld [vmem:[%s0 + $0x390] sm:$0xff]
  %v126 = vld [vmem:[%s0 + $0x398] sm:$0xff]
  %v127 = vld [vmem:[%s0 + $0x3a0] sm:$0xff]
  %v128 = vld [vmem:[%s0 + $0x3a8] sm:$0xff]
  %v129 = vld [vmem:[%s0 + $0x3b0] sm:$0xff]
  %v130 = vld [vmem:[%s0 + $0x3b8] sm:$0xff]
  %v131 = vld [vmem:[%s0 + $0x3c0] sm:$0xff]
  %v132 = vld [vmem:[%s0 + $0x3c8] sm:$0xff]
  %v133 = vld [vmem:[%s0 + $0x3d0] sm:$0xff]
  %v134 = vld [vmem:[%s0 + $0x3d8] sm:$0xff]
  %v135 = vld [vmem:[%s0 + $0x3e0] sm:$0xff]
  %v136 = vld [vmem:[%s0 + $0x3e8] sm:$0xff]
  %v137 = vld [vmem:[%s0 + $0x3f0] sm:$0xff]
  %v138 = vld [vmem:[%s0 + $0x3f8] sm:$0xff]
  %v139 = vld [vmem:[%s0 + $0x400] sm:$0xff]
  %v140 = vld [vmem:[%s0 + $0x408] sm:$0xff]
  %v141 = vld [vmem:[%s0 + $0x410] sm:$0xff]
  %v142 = vld [vmem:[%s0 + $0x418] sm:$0xff]
  %v143 = vld [vmem:[%s0 + $0x420] sm:$0xff]
  %v144 = vld [vmem:[%s0 + $0x428] sm:$0xff]
  %v145 = vld [vmem:[%s0 + $0x430] sm:$0xff]
  %v146 = vld [vmem:[%s0 + $0x438] sm:$0xff]
  %v147 = vld [vmem:[%s0 + $0x440] sm:$0xff]
  %v148 = vld [vmem:[%s0 + $0x448] sm:$0xff]
  %v149 = vld [vmem:[%s0 + $0x450] sm:$0xff]
  %v150 = vld [vmem:[%s0 + $0x458] sm:$0xff]
  %v151 = vld [vmem:[%s0 + $0x460] sm:$0xff]
  %v152 = vld [vmem:[%s0 + $0x468] sm:$0xff]
  %v153 = vld [vmem:[%s0 + $0x470] sm:$0xff]
  %v154 = vld [vmem:[%s0 + $0x478] sm:$0xff]
  %v155 = vld [vmem:[%s0 + $0x480] sm:$0xff]
  %v156 = vld [vmem:[%s0 + $0x488] sm:$0xff]
  %v157 = vld [vmem:[%s0 + $0x490] sm:$0xff]
  %v158 = vld [vmem:[%s0 + $0x498] sm:$0xff]
  %v159 = vld [vmem:[%s0 + $0x4a0] sm:$0xff]
  %v160 = vld [vmem:[%s0 + $0x4a8] sm:$0xff]
  %v161 = vld [vmem:[%s0 + $0x4b0] sm:$0xff]
  %v162 = vld [vmem:[%s0 + $0x4b8] sm:$0xff]
  %v163 = vld [vmem:[%s0 + $0x4c0] sm:$0xff]
  %v164 = vld [vmem:[%s0 + $0x4c8] sm:$0xff]
  %v165 = vld [vmem:[%s0 + $0x4d0] sm:$0xff]
  %v166 = vld [vmem:[%s0 + $0x4d8] sm:$0xff]
  %v167 = vld [vmem:[%s0 + $0x4e0] sm:$0xff]
  %v168 = vld [vmem:[%s0 + $0x4e8] sm:$0xff]
  %v169 = vld [vmem:[%s0 + $0x4f0] sm:$0xff]
  %v170 = vld [vmem:[%s0 + $0x4f8] sm:$0xff]
  %v171 = vld [vmem:[%s0 + $0x500] sm:$0xff]
  %v172 = vld [vmem:[%s0 + $0x508] sm:$0xff]
  %v173 = vld [vmem:[%s0 + $0x510] sm:$0xff]
  %v174 = vld [vmem:[%s0 + $0x518] sm:$0xff]
  %v175 = vld [vmem:[%s0 + $0x520] sm:$0xff]
  %v176 = vld [vmem:[%s0 + $0x528] sm:$0xff]
  %v177 = vld [vmem:[%s0 + $0x530] sm:$0xff]
  %v178 = vld [vmem:[%s0 + $0x538] sm:$0xff]
  %v179 = vld [vmem:[%s0 + $0x540] sm:$0xff]
  %v180 = vld [vmem:[%s0 + $0x548] sm:$0xff]
  %v181 = vld [vmem:[%s0 + $0x550] sm:$0xff]
  %v182 = vld [vmem:[%s0 + $0x558] sm:$0xff]
  %v183 = vld [vmem:[%s0 + $0x560] sm:$0xff]
  %v184 = vld [vmem:[%s0 + $0x568] sm:$0xff]
  %v185 = vld [vmem:[%s0 + $0x570] sm:$0xff]
  %v186 = vld [vmem:[%s0 + $0x578] sm:$0xff]
  %v187 = vld [vmem:[%s0 + $0x580] sm:$0xff]
  %v188 = vld [vmem:[%s0 + $0x588] sm:$0xff]
  %v189 = vld [vmem:[%s0 + $0x590] sm:$0xff]
  %v190 = vld [vmem:[%s0 + $0x598] sm:$0xff]
  %v191 = vld [vmem:[%s0 + $0x5a0] sm:$0xff]
  %v192 = vld [vmem:[%s0 + $0x5a8] sm:$0xff]
  %v193 = vld [vmem:[%s0 + $0x5b0] sm:$0xff]
  %v194 = vld [vmem:[%s0 + $0x5b8] sm:$0xff]
  %v195 = vld [vmem:[%s0 + $0x5c0] sm:$0xff]
  %v196 = vld [vmem:[%s0 + $0x5c8] sm:$0xff]
  %v197 = vld [vmem:[%s0 + $0x5d0] sm:$0xff]
  %v198 = vld [vmem:[%s0 + $0x5d8] sm:$0xff]
  %v199 = vld [vmem:[%s0 + $0x5e0] sm:$0xff]
  %v200 = vld [vmem:[%s0 + $0x5e8] sm:$0xff]
  %v201 = vld [vmem:[%s0 + $0x5f0] sm:$0xff]
  %v202 = vld [vmem:[%s0 + $0x5f8] sm:$0xff]
  %v203 = vld [vmem:[%s0 + $0x600] sm:$0xff]
  %v204 = vld [vmem:[%s0 + $0x608] sm:$0xff]
  %v205 = vld [vmem:[%s0 + $0x610] sm:$0xff]
  %v206 = vld [vmem:[%s0 + $0x618] sm:$0xff]
  %v207 = vld [vmem:[%s0 + $0x620] sm:$0xff]
  %v208 = vld [vmem:[%s0 + $0x628] sm:$0xff]
  %v209 = vld [vmem:[%s0 + $0x630] sm:$0xff]
  %v210 = vld [vmem:[%s0 + $0x638] sm:$0xff]
  %v211 = vld [vmem:[%s0 + $0x640] sm:$0xff]
  %v212 = vld [vmem:[%s0 + $0x648] sm:$0xff]
  %v213 = vld [vmem:[%s0 + $0x650] sm:$0xff]
  %v214 = vld [vmem:[%s0 + $0x658] sm:$0xff]
  %v215 = vld [vmem:[%s0 + $0x660] sm:$0xff]
  %v216 = vld [vmem:[%s0 + $0x668] sm:$0xff]
  %v217 = vld [vmem:[%s0 + $0x670] sm:$0xff]
  %v218 = vld [vmem:[%s0 + $0x678] sm:$0xff]
  %v219 = vld [vmem:[%s0 + $0x680] sm:$0xff]
  %v220 = vld [vmem:[%s0 + $0x688] sm:$0xff]
  %v221 = vld [vmem:[%s0 + $0x690] sm:$0xff]
  %v222 = vld [vmem:[%s0 + $0x698] sm:$0xff]
  %v223 = vld [vmem:[%s0 + $0x6a0] sm:$0xff]
  %v224 = vld [vmem:[%s0 + $0x6a8] sm:$0xff]
  %v225 = vld [vmem:[%s0 + $0x6b0] sm:$0xff]
  %v226 = vld [vmem:[%s0 + $0x6b8] sm:$0xff]
  %v227 = vld [vmem:[%s0 + $0x6c0] sm:$0xff]
  %v228 = vld [vmem:[%s0 + $0x6c8] sm:$0xff]
  %v229 = vld [vmem:[%s0 + $0x6d0] sm:$0xff]
  %v230 = vld [vmem:[%s0 + $0x6d8] sm:$0xff]
  %v231 = vld [vmem:[%s0 + $0x6e0] sm:$0xff]
  %v232 = vld [vmem:[%s0 + $0x6e8] sm:$0xff]
  %v233 = vld [vmem:[%s0 + $0x6f0] sm:$0xff]
  %v234 = vld [vmem:[%s0 + $0x6f8] sm:$0xff]
  %v235 = vld [vmem:[%s0 + $0x700] sm:$0xff]
  %v236 = vld [vmem:[%s0 + $0x708] sm:$0xff]
  %v237 = vld [vmem:[%s0 + $0x710] sm:$0xff]
  %v238 = vld [vmem:[%s0 + $0x718] sm:$0xff]
  %v239 = vld [vmem:[%s0 + $0x720] sm:$0xff]
  %v240 = vld [vmem:[%s0 + $0x728] sm:$0xff]
  %v241 = vld [vmem:[%s0 + $0x730] sm:$0xff]
  %v242 = vld [vmem:[%s0 + $0x738] sm:$0xff]
  %v243 = vld [vmem:[%s0 + $0x740] sm:$0xff]
  %v244 = vld [vmem:[%s0 + $0x748] sm:$0xff]
  %v245 = vld [vmem:[%s0 + $0x750] sm:$0xff]
  %v246 = vld [vmem:[%s0 + $0x758] sm:$0xff]
  %v247 = vld [vmem:[%s0 + $0x760] sm:$0xff]
  %v248 = vld [vmem:[%s0 + $0x768] sm:$0xff]
  %v249 = vld [vmem:[%s0 + $0x770] sm:$0xff]
  %v250 = vld [vmem:[%s0 + $0x778] sm:$0xff]
  %v251 = vld [vmem:[%s0 + $0x780] sm:$0xff]
  %v252 = vld [vmem:[%s0 + $0x788] sm:$0xff]
  %v253 = vld [vmem:[%s0 + $0x790] sm:$0xff]
  %v254 = vld [vmem:[%s0 + $0x798] sm:$0xff]
  %v255 = vld [vmem:[%s0 + $0x7a0] sm:$0xff]
  %v256 = vld [vmem:[%s0 + $0x7a8] sm:$0xff]
  %v257 = vld [vmem:[%s0 + $0x7b0] sm:$0xff]
  %v258 = vld [vmem:[%s0 + $0x7b8] sm:$0xff]
  %v259 = vld [vmem:[%s0 + $0x7c0] sm:$0xff]
  %v260 = vld [vmem:[%s0 + $0x7c8] sm:$0xff]
  %v261 = vld [vmem:[%s0 + $0x7d0] sm:$0xff]
  %v262 = vld [vmem:[%s0 + $0x7d8] sm:$0xff]
  %v263 = vld [vmem:[%s0 + $0x7e0] sm:$0xff]
  %v264 = vld [vmem:[%s0 + $0x7e8] sm:$0xff]
  %v265 = vld [vmem:[%s0 + $0x7f0] sm:$0xff]
  %v266 = vld [vmem:[%s0 + $0x7f8] sm:$0xff]
  %v267 = vld [vmem:[%s0 + $0x800] sm:$0xff]
  %v268 = vld [vmem:[%s0 + $0x808] sm:$0xff]
  %v269 = vld [vmem:[%s0 + $0x810] sm:$0xff]
  %v270 = vld [vmem:[%s0 + $0x818] sm:$0xff]
  %v271 = vld [vmem:[%s0 + $0x820] sm:$0xff]
  %v272 = vld [vmem:[%s0 + $0x828] sm:$0xff]
  %v273 = vld [vmem:[%s0 + $0x830] sm:$0xff]
  %v274 = vld [vmem:[%s0 + $0x838] sm:$0xff]
  %v275 = vld [vmem:[%s0 + $0x840] sm:$0xff]
  %v276 = vld [vmem:[%s0 + $0x848] sm:$0xff]
  %v277 = vld [vmem:[%s0 + $0x850] sm:$0xff]
  %v278 = vld [vmem:[%s0 + $0x858] sm:$0xff]
  %v279 = vld [vmem:[%s0 + $0x860] sm:$0xff]
  %v280 = vld [vmem:[%s0 + $0x868] sm:$0xff]
  %v281 = vld [vmem:[%s0 + $0x870] sm:$0xff]
  %v282 = vld [vmem:[%s0 + $0x878] sm:$0xff]
  %v283 = vld [vmem:[%s0 + $0x880] sm:$0xff]
  %v284 = vld [vmem:[%s0 + $0x888] sm:$0xff]
  %v285 = vld [vmem:[%s0 + $0x890] sm:$0xff]
  %v286 = vld [vmem:[%s0 + $0x898] sm:$0xff]
  %v287 = vld [vmem:[%s0 + $0x8a0] sm:$0xff]
  %v288 = vld [vmem:[%s0 + $0x8a8] sm:$0xff]
  %v289 = vld [vmem:[%s0 + $0x8b0] sm:$0xff]
  %v290 = vld [vmem:[%s0 + $0x8b8] sm:$0xff]
  %v291 = vld [vmem:[%s0 + $0x8c0] sm:$0xff]
  %v292 = vld [vmem:[%s0 + $0x8c8] sm:$0xff]
  %v293 = vld [vmem:[%s0 + $0x8d0] sm:$0xff]
  %v294 = vld [vmem:[%s0 + $0x8d8] sm:$0xff]
  %v295 = vld [vmem:[%s0 + $0x8e0] sm:$0xff]
  %v296 = vld [vmem:[%s0 + $0x8e8] sm:$0xff]
  %v297 = vld [vmem:[%s0 + $0x8f0] sm:$0xff]
  %v298 = vld [vmem:[%s0 + $0x8f8] sm:$0xff]
  %v299 = vld [vmem:[%s0 + $0x900] sm:$0xff]
  %v300 = vld [vmem:[%s0 + $0x908] sm:$0xff]
  %v301 = vld [vmem:[%s0 + $0x910] sm:$0xff]
  %v302 = vld [vmem:[%s0 + $0x918] sm:$0xff]
  %v303 = vld [vmem:[%s0 + $0x920] sm:$0xff]
  %v304 = vld [vmem:[%s0 + $0x928] sm:$0xff]
  %v305 = vld [vmem:[%s0 + $0x930] sm:$0xff]
  %v306 = vld [vmem:[%s0 + $0x938] sm:$0xff]
  %v307 = vld [vmem:[%s0 + $0x940] sm:$0xff]
  %v308 = vld [vmem:[%s0 + $0x948] sm:$0xff]
  %v309 = vld [vmem:[%s0 + $0x950] sm:$0xff]
  %v310 = vld [vmem:[%s0 + $0x958] sm:$0xff]
  %v311 = vld [vmem:[%s0 + $0x960] sm:$0xff]
  %v312 = vld [vmem:[%s0 + $0x968] sm:$0xff]
  %v313 = vld [vmem:[%s0 + $0x970] sm:$0xff]
  %v314 = vld [vmem:[%s0 + $0x978] sm:$0xff]
  %v315 = vld [vmem:[%s0 + $0x980] sm:$0xff]
  %v316 = vld [vmem:[%s0 + $0x988] sm:$0xff]
  %v317 = vld [vmem:[%s0 + $0x990] sm:$0xff]
  %v318 = vld [vmem:[%s0 + $0x998] sm:$0xff]
  %v319 = vld [vmem:[%s0 + $0x9a0] sm:$0xff]
  %v320 = vld [vmem:[%s0 + $0x9a8] sm:$0xff]
  %v321 = vld [vmem:[%s0 + $0x9b0] sm:$0xff]
  %v322 = vld [vmem:[%s0 + $0x9b8] sm:$0xff]
  %v323 = vld [vmem:[%s0 + $0x9c0] sm:$0xff]
  %v324 = vld [vmem:[%s0 + $0x9c8] sm:$0xff]
  %v325 = vld [vmem:[%s0 + $0x9d0] sm:$0xff]
  %v326 = vld [vmem:[%s0 + $0x9d8] sm:$0xff]
  %v327 = vld [vmem:[%s0 + $0x9e0] sm:$0xff]
  %v328 = vld [vmem:[%s0 + $0x9e8] sm:$0xff]
  %v329 = vld [vmem:[%s0 + $0x9f0] sm:$0xff]
  %v330 = vld [vmem:[%s0 + $0x9f8] sm:$0xff]
  %v331 = vld [vmem:[%s0 + $0xa00] sm:$0xff]
  %v332 = vld [vmem:[%s0 + $0xa08] sm:$0xff]
  %v333 = vld [vmem:[%s0 + $0xa10] sm:$0xff]
  %v334 = vld [vmem:[%s0 + $0xa18] sm:$0xff]
  %v335 = vld [vmem:[%s0 + $0xa20] sm:$0xff]
  %v336 = vld [vmem:[%s0 + $0xa28] sm:$0xff]
  %v337 = vld [vmem:[%s0 + $0xa30] sm:$0xff]
  %v338 = vld [vmem:[%s0 + $0xa38] sm:$0xff]
  %v339 = vld [vmem:[%s0 + $0xa40] sm:$0xff]
  %v340 = vld [vmem:[%s0 + $0xa48] sm:$0xff]
  %v341 = vld [vmem:[%s0 + $0xa50] sm:$0xff]
  %v342 = vld [vmem:[%s0 + $0xa58] sm:$0xff]
  %v343 = vld [vmem:[%s0 + $0xa60] sm:$0xff]
  %v344 = vld [vmem:[%s0 + $0xa68] sm:$0xff]
  %v345 = vld [vmem:[%s0 + $0xa70] sm:$0xff]
  %v346 = vld [vmem:[%s0 + $0xa78] sm:$0xff]
  %v347 = vld [vmem:[%s0 + $0xa80] sm:$0xff]
  %v348 = vld [vmem:[%s0 + $0xa88] sm:$0xff]
  %v349 = vld [vmem:[%s0 + $0xa90] sm:$0xff]
  %v350 = vld [vmem:[%s0 + $0xa98] sm:$0xff]
  %v351 = vld [vmem:[%s0 + $0xaa0] sm:$0xff]
  %v352 = vld [vmem:[%s0 + $0xaa8] sm:$0xff]
  %v353 = vld [vmem:[%s0 + $0xab0] sm:$0xff]
  %v354 = vld [vmem:[%s0 + $0xab8] sm:$0xff]
  %v355 = vld [vmem:[%s0 + $0xac0] sm:$0xff]
  %v356 = vld [vmem:[%s0 + $0xac8] sm:$0xff]
  %v357 = vld [vmem:[%s0 + $0xad0] sm:$0xff]
  %v358 = vld [vmem:[%s0 + $0xad8] sm:$0xff]
  %v359 = vld [vmem:[%s0 + $0xae0] sm:$0xff]
  %v360 = vld [vmem:[%s0 + $0xae8] sm:$0xff]
  %v361 = vld [vmem:[%s0 + $0xaf0] sm:$0xff]
  %v362 = vld [vmem:[%s0 + $0xaf8] sm:$0xff]
  %v363 = vld [vmem:[%s0 + $0xb00] sm:$0xff]
  %v364 = vld [vmem:[%s0 + $0xb08] sm:$0xff]
  %v365 = vld [vmem:[%s0 + $0xb10] sm:$0xff]
  %v366 = vld [vmem:[%s0 + $0xb18] sm:$0xff]
  %v367 = vld [vmem:[%s0 + $0xb20] sm:$0xff]
  %v368 = vld [vmem:[%s0 + $0xb28] sm:$0xff]
  %v369 = vld [vmem:[%s0 + $0xb30] sm:$0xff]
  %v370 = vld [vmem:[%s0 + $0xb38] sm:$0xff]
  %v371 = vld [vmem:[%s0 + $0xb40] sm:$0xff]
  %v372 = vld [vmem:[%s0 + $0xb48] sm:$0xff]
  %v373 = vld [vmem:[%s0 + $0xb50] sm:$0xff]
  %v374 = vld [vmem:[%s0 + $0xb58] sm:$0xff]
  %v375 = vld [vmem:[%s0 + $0xb60] sm:$0xff]
  %v376 = vld [vmem:[%s0 + $0xb68] sm:$0xff]
  %v377 = vld [vmem:[%s0 + $0xb70] sm:$0xff]
  %v378 = vld [vmem:[%s0 + $0xb78] sm:$0xff]
  %v379 = vld [vmem:[%s0 + $0xb80] sm:$0xff]
  %v380 = vld [vmem:[%s0 + $0xb88] sm:$0xff]
  %v381 = vld [vmem:[%s0 + $0xb90] sm:$0xff]
  %v382 = vld [vmem:[%s0 + $0xb98] sm:$0xff]
  %v383 = vld [vmem:[%s0 + $0xba0] sm:$0xff]
  %v384 = vld [vmem:[%s0 + $0xba8] sm:$0xff]
  %v385 = vld [vmem:[%s0 + $0xbb0] sm:$0xff]
  %v386 = vld [vmem:[%s0 + $0xbb8] sm:$0xff]
  %v387 = vld [vmem:[%s0 + $0xbc0] sm:$0xff]
  %v388 = vld [vmem:[%s0 + $0xbc8] sm:$0xff]
  %v389 = vld [vmem:[%s0 + $0xbd0] sm:$0xff]
  %v390 = vld [vmem:[%s0 + $0xbd8] sm:$0xff]
  %v391 = vld [vmem:[%s0 + $0xbe0] sm:$0xff]
  %v392 = vld [vmem:[%s0 + $0xbe8] sm:$0xff]
  %v393 = vld [vmem:[%s0 + $0xbf0] sm:$0xff]
  %v394 = vld [vmem:[%s0 + $0xbf8] sm:$0xff]
  %v395 = vld [vmem:[%s0 + $0xc00] sm:$0xff]
  %v396 = vld [vmem:[%s0 + $0xc08] sm:$0xff]
  %v397 = vld [vmem:[%s0 + $0xc10] sm:$0xff]
  %v398 = vld [vmem:[%s0 + $0xc18] sm:$0xff]
  %v399 = vld [vmem:[%s0 + $0xc20] sm:$0xff]
  %v400 = vld [vmem:[%s0 + $0xc28] sm:$0xff]
  %v401 = vld [vmem:[%s0 + $0xc30] sm:$0xff]
  %v402 = vld [vmem:[%s0 + $0xc38] sm:$0xff]
  %v403 = vld [vmem:[%s0 + $0xc40] sm:$0xff]
  %v404 = vld [vmem:[%s0 + $0xc48] sm:$0xff]
  %v405 = vld [vmem:[%s0 + $0xc50] sm:$0xff]
  %v406 = vld [vmem:[%s0 + $0xc58] sm:$0xff]
  %v407 = vld [vmem:[%s0 + $0xc60] sm:$0xff]
  %v408 = vld [vmem:[%s0 + $0xc68] sm:$0xff]
  %v409 = vld [vmem:[%s0 + $0xc70] sm:$0xff]
  %v410 = vld [vmem:[%s0 + $0xc78] sm:$0xff]
  %v411 = vld [vmem:[%s0 + $0xc80] sm:$0xff]
  %v412 = vld [vmem:[%s0 + $0xc88] sm:$0xff]
  %v413 = vld [vmem:[%s0 + $0xc90] sm:$0xff]
  %v414 = vld [vmem:[%s0 + $0xc98] sm:$0xff]
  %v415 = vld [vmem:[%s0 + $0xca0] sm:$0xff]
  %v416 = vld [vmem:[%s0 + $0xca8] sm:$0xff]
  %v417 = vld [vmem:[%s0 + $0xcb0] sm:$0xff]
  %v418 = vld [vmem:[%s0 + $0xcb8] sm:$0xff]
  %v419 = vld [vmem:[%s0 + $0xcc0] sm:$0xff]
  %v420 = vld [vmem:[%s0 + $0xcc8] sm:$0xff]
  %v421 = vld [vmem:[%s0 + $0xcd0] sm:$0xff]
  %v422 = vld [vmem:[%s0 + $0xcd8] sm:$0xff]
  %v423 = vld [vmem:[%s0 + $0xce0] sm:$0xff]
  %v424 = vld [vmem:[%s0 + $0xce8] sm:$0xff]
  %v425 = vld [vmem:[%s0 + $0xcf0] sm:$0xff]
  %v426 = vld [vmem:[%s0 + $0xcf8] sm:$0xff]
  %v427 = vld [vmem:[%s0 + $0xd00] sm:$0xff]
  %v428 = vld [vmem:[%s0 + $0xd08] sm:$0xff]
  %v429 = vld [vmem:[%s0 + $0xd10] sm:$0xff]
  %v430 = vld [vmem:[%s0 + $0xd18] sm:$0xff]
  %v431 = vld [vmem:[%s0 + $0xd20] sm:$0xff]
  %v432 = vld [vmem:[%s0 + $0xd28] sm:$0xff]
  %v433 = vld [vmem:[%s0 + $0xd30] sm:$0xff]
  %v434 = vld [vmem:[%s0 + $0xd38] sm:$0xff]
  %v435 = vld [vmem:[%s0 + $0xd40] sm:$0xff]
  %v436 = vld [vmem:[%s0 + $0xd48] sm:$0xff]
  %v437 = vld [vmem:[%s0 + $0xd50] sm:$0xff]
  %v438 = vld [vmem:[%s0 + $0xd58] sm:$0xff]
  %v439 = vld [vmem:[%s0 + $0xd60] sm:$0xff]
  %v440 = vld [vmem:[%s0 + $0xd68] sm:$0xff]
  %v441 = vld [vmem:[%s0 + $0xd70] sm:$0xff]
  %v442 = vld [vmem:[%s0 + $0xd78] sm:$0xff]
  %v443 = vld [vmem:[%s0 + $0xd80] sm:$0xff]
  %v444 = vld [vmem:[%s0 + $0xd88] sm:$0xff]
  %v445 = vld [vmem:[%s0 + $0xd90] sm:$0xff]
  %v446 = vld [vmem:[%s0 + $0xd98] sm:$0xff]
  %v447 = vld [vmem:[%s0 + $0xda0] sm:$0xff]
  %v448 = vld [vmem:[%s0 + $0xda8] sm:$0xff]
  %v449 = vld [vmem:[%s0 + $0xdb0] sm:$0xff]
  %v450 = vld [vmem:[%s0 + $0xdb8] sm:$0xff]
  %v451 = vld [vmem:[%s0 + $0xdc0] sm:$0xff]
  %v452 = vld [vmem:[%s0 + $0xdc8] sm:$0xff]
  %v453 = vld [vmem:[%s0 + $0xdd0] sm:$0xff]
  %v454 = vld [vmem:[%s0 + $0xdd8] sm:$0xff]
  %v455 = vld [vmem:[%s0 + $0xde0] sm:$0xff]
  %v456 = vld [vmem:[%s0 + $0xde8] sm:$0xff]
  %v457 = vld [vmem:[%s0 + $0xdf0] sm:$0xff]
  %v458 = vld [vmem:[%s0 + $0xdf8] sm:$0xff]
  %v459 = vld [vmem:[%s0 + $0xe00] sm:$0xff]
  %v460 = vld [vmem:[%s0 + $0xe08] sm:$0xff]
  %v461 = vld [vmem:[%s0 + $0xe10] sm:$0xff]
  %v462 = vld [vmem:[%s0 + $0xe18] sm:$0xff]
  %v463 = vld [vmem:[%s0 + $0xe20] sm:$0xff]
  %v464 = vld [vmem:[%s0 + $0xe28] sm:$0xff]
  %v465 = vld [vmem:[%s0 + $0xe30] sm:$0xff]
  %v466 = vld [vmem:[%s0 + $0xe38] sm:$0xff]
  %v467 = vld [vmem:[%s0 + $0xe40] sm:$0xff]
  %v468 = vld [vmem:[%s0 + $0xe48] sm:$0xff]
  %v469 = vld [vmem:[%s0 + $0xe50] sm:$0xff]
  %v470 = vld [vmem:[%s0 + $0xe58] sm:$0xff]
  %v471 = vld [vmem:[%s0 + $0xe60] sm:$0xff]
  %v472 = vld [vmem:[%s0 + $0xe68] sm:$0xff]
  %v473 = vld [vmem:[%s0 + $0xe70] sm:$0xff]
  %v474 = vld [vmem:[%s0 + $0xe78] sm:$0xff]
  %v475 = vld [vmem:[%s0 + $0xe80] sm:$0xff]
  %v476 = vld [vmem:[%s0 + $0xe88] sm:$0xff]
  %v477 = vld [vmem:[%s0 + $0xe90] sm:$0xff]
  %v478 = vld [vmem:[%s0 + $0xe98] sm:$0xff]
  %v479 = vld [vmem:[%s0 + $0xea0] sm:$0xff]
  %v480 = vld [vmem:[%s0 + $0xea8] sm:$0xff]
  %v481 = vld [vmem:[%s0 + $0xeb0] sm:$0xff]
  %v482 = vld [vmem:[%s0 + $0xeb8] sm:$0xff]
  %v483 = vld [vmem:[%s0 + $0xec0] sm:$0xff]
  %v484 = vld [vmem:[%s0 + $0xec8] sm:$0xff]
  %v485 = vld [vmem:[%s0 + $0xed0] sm:$0xff]
  %v486 = vld [vmem:[%s0 + $0xed8] sm:$0xff]
  %v487 = vld [vmem:[%s0 + $0xee0] sm:$0xff]
  %v488 = vld [vmem:[%s0 + $0xee8] sm:$0xff]
  %v489 = vld [vmem:[%s0 + $0xef0] sm:$0xff]
  %v490 = vld [vmem:[%s0 + $0xef8] sm:$0xff]
  %v491 = vld [vmem:[%s0 + $0xf00] sm:$0xff]
  %v492 = vld [vmem:[%s0 + $0xf08] sm:$0xff]
  %v493 = vld [vmem:[%s0 + $0xf10] sm:$0xff]
  %v494 = vld [vmem:[%s0 + $0xf18] sm:$0xff]
  %v495 = vld [vmem:[%s0 + $0xf20] sm:$0xff]
  %v496 = vld [vmem:[%s0 + $0xf28] sm:$0xff]
  %v497 = vld [vmem:[%s0 + $0xf30] sm:$0xff]
  %v498 = vld [vmem:[%s0 + $0xf38] sm:$0xff]
  %v499 = vld [vmem:[%s0 + $0xf40] sm:$0xff]
  %v500 = vld [vmem:[%s0 + $0xf48] sm:$0xff]
  %v501 = vld [vmem:[%s0 + $0xf50] sm:$0xff]
  %v502 = vld [vmem:[%s0 + $0xf58] sm:$0xff]
  %v503 = vld [vmem:[%s0 + $0xf60] sm:$0xff]
  %v504 = vld [vmem:[%s0 + $0xf68] sm:$0xff]
  %v505 = vld [vmem:[%s0 + $0xf70] sm:$0xff]
  %v506 = vld [vmem:[%s0 + $0xf78] sm:$0xff]
  %v507 = vld [vmem:[%s0 + $0xf80] sm:$0xff]
  %v508 = vld [vmem:[%s0 + $0xf88] sm:$0xff]
  %v509 = vld [vmem:[%s0 + $0xf90] sm:$0xff]
  %v510 = vld [vmem:[%s0 + $0xf98] sm:$0xff]
  %v511 = vld [vmem:[%s0 + $0xfa0] sm:$0xff]
  %v512 = vld [vmem:[%s0 + $0xfa8] sm:$0xff]
  %v513 = vld [vmem:[%s0 + $0xfb0] sm:$0xff]
  %v514 = vld [vmem:[%s0 + $0xfb8] sm:$0xff]
  %v515 = vld [vmem:[%s0 + $0xfc0] sm:$0xff]
  %v516 = vld [vmem:[%s0 + $0xfc8] sm:$0xff]
  %v517 = vld [vmem:[%s0 + $0xfd0] sm:$0xff]
  %v518 = vld [vmem:[%s0 + $0xfd8] sm:$0xff]
  %v519 = vld [vmem:[%s0 + $0xfe0] sm:$0xff]
  %v520 = vld [vmem:[%s0 + $0xfe8] sm:$0xff]
  %v521 = vld [vmem:[%s0 + $0xff0] sm:$0xff]
  %v522 = vld [vmem:[%s0 + $0xff8] sm:$0xff]
  %v523 = vld [vmem:[%s0 + $0x1000] sm:$0xff]
  %v524 = vld [vmem:[%s0 + $0x1008] sm:$0xff]
  %v525 = vld [vmem:[%s0 + $0x1010] sm:$0xff]
  %v526 = vld [vmem:[%s0 + $0x1018] sm:$0xff]
  %v527 = vld [vmem:[%s0 + $0x1020] sm:$0xff]
  %v528 = vld [vmem:[%s0 + $0x1028] sm:$0xff]
  %v529 = vld [vmem:[%s0 + $0x1030] sm:$0xff]
  %v530 = vld [vmem:[%s0 + $0x1038] sm:$0xff]
  %v531 = vld [vmem:[%s0 + $0x1040] sm:$0xff]
  %v532 = vld [vmem:[%s0 + $0x1048] sm:$0xff]
  %v533 = vld [vmem:[%s0 + $0x1050] sm:$0xff]
  %v534 = vld [vmem:[%s0 + $0x1058] sm:$0xff]
  %v535 = vld [vmem:[%s0 + $0x1060] sm:$0xff]
  %v536 = vld [vmem:[%s0 + $0x1068] sm:$0xff]
  %v537 = vld [vmem:[%s0 + $0x1070] sm:$0xff]
  %v538 = vld [vmem:[%s0 + $0x1078] sm:$0xff]
  %v539 = vld [vmem:[%s0 + $0x1080] sm:$0xff]
  %v540 = vld [vmem:[%s0 + $0x1088] sm:$0xff]
  %v541 = vld [vmem:[%s0 + $0x1090] sm:$0xff]
  %v542 = vld [vmem:[%s0 + $0x1098] sm:$0xff]
  %v543 = vld [vmem:[%s0 + $0x10a0] sm:$0xff]
  %v544 = vld [vmem:[%s0 + $0x10a8] sm:$0xff]
  %v545 = vld [vmem:[%s0 + $0x10b0] sm:$0xff]
  %v546 = vld [vmem:[%s0 + $0x10b8] sm:$0xff]
  %v547 = vld [vmem:[%s0 + $0x10c0] sm:$0xff]
  %v548 = vld [vmem:[%s0 + $0x10c8] sm:$0xff]
  %v549 = vld [vmem:[%s0 + $0x10d0] sm:$0xff]
  %v550 = vld [vmem:[%s0 + $0x10d8] sm:$0xff]
  %v551 = vld [vmem:[%s0 + $0x10e0] sm:$0xff]
  %v552 = vld [vmem:[%s0 + $0x10e8] sm:$0xff]
  %v553 = vld [vmem:[%s0 + $0x10f0] sm:$0xff]
  %v554 = vld [vmem:[%s0 + $0x10f8] sm:$0xff]
  %v555 = vld [vmem:[%s0 + $0x1100] sm:$0xff]
  %v556 = vld [vmem:[%s0 + $0x1108] sm:$0xff]
  %v557 = vld [vmem:[%s0 + $0x1110] sm:$0xff]
  %v558 = vld [vmem:[%s0 + $0x1118] sm:$0xff]
  %v559 = vld [vmem:[%s0 + $0x1120] sm:$0xff]
  %v560 = vld [vmem:[%s0 + $0x1128] sm:$0xff]
  %v561 = vld [vmem:[%s0 + $0x1130] sm:$0xff]
  %v562 = vld [vmem:[%s0 + $0x1138] sm:$0xff]
  %v563 = vld [vmem:[%s0 + $0x1140] sm:$0xff]
  %v564 = vld [vmem:[%s0 + $0x1148] sm:$0xff]
  %v565 = vld [vmem:[%s0 + $0x1150] sm:$0xff]
  %v566 = vld [vmem:[%s0 + $0x1158] sm:$0xff]
  %v567 = vld [vmem:[%s0 + $0x1160] sm:$0xff]
  %v568 = vld [vmem:[%s0 + $0x1168] sm:$0xff]
  %v569 = vld [vmem:[%s0 + $0x1170] sm:$0xff]
  %v570 = vld [vmem:[%s0 + $0x1178] sm:$0xff]
  %v571 = vld [vmem:[%s0 + $0x1180] sm:$0xff]
  %v572 = vld [vmem:[%s0 + $0x1188] sm:$0xff]
  %v573 = vld [vmem:[%s0 + $0x1190] sm:$0xff]
  %v574 = vld [vmem:[%s0 + $0x1198] sm:$0xff]
  %v575 = vld [vmem:[%s0 + $0x11a0] sm:$0xff]
  %v576 = vld [vmem:[%s0 + $0x11a8] sm:$0xff]
  %v577 = vld [vmem:[%s0 + $0x11b0] sm:$0xff]
  %v578 = vld [vmem:[%s0 + $0x11b8] sm:$0xff]
  %v579 = vld [vmem:[%s0 + $0x11c0] sm:$0xff]
  %v580 = vld [vmem:[%s0 + $0x11c8] sm:$0xff]
  %v581 = vld [vmem:[%s0 + $0x11d0] sm:$0xff]
  %v582 = vld [vmem:[%s0 + $0x11d8] sm:$0xff]
  %v583 = vld [vmem:[%s0 + $0x11e0] sm:$0xff]
  %v584 = vld [vmem:[%s0 + $0x11e8] sm:$0xff]
  %v585 = vld [vmem:[%s0 + $0x11f0] sm:$0xff]
  %v586 = vld [vmem:[%s0 + $0x11f8] sm:$0xff]
  %v587 = vld [vmem:[%s0 + $0x1200] sm:$0xff]
  %v588 = vld [vmem:[%s0 + $0x1208] sm:$0xff]
  %v589 = vld [vmem:[%s0 + $0x1210] sm:$0xff]
  %v590 = vld [vmem:[%s0 + $0x1218] sm:$0xff]
  %v591 = vld [vmem:[%s0 + $0x1220] sm:$0xff]
  %v592 = vld [vmem:[%s0 + $0x1228] sm:$0xff]
  %v593 = vld [vmem:[%s0 + $0x1230] sm:$0xff]
  %v594 = vld [vmem:[%s0 + $0x1238] sm:$0xff]
  %v595 = vld [vmem:[%s0 + $0x1240] sm:$0xff]
  %v596 = vld [vmem:[%s0 + $0x1248] sm:$0xff]
  %v597 = vld [vmem:[%s0 + $0x1250] sm:$0xff]
  %v598 = vld [vmem:[%s0 + $0x1258] sm:$0xff]
  %v599 = vld [vmem:[%s0 + $0x1260] sm:$0xff]
  %v600 = vld [vmem:[%s0 + $0x1268] sm:$0xff]
  %v601 = vld [vmem:[%s0 + $0x1270] sm:$0xff]
  %v602 = vld [vmem:[%s0 + $0x1278] sm:$0xff]
  %v603 = vld [vmem:[%s0 + $0x1280] sm:$0xff]
  %v604 = vld [vmem:[%s0 + $0x1288] sm:$0xff]
  %v605 = vld [vmem:[%s0 + $0x1290] sm:$0xff]
  %v606 = vld [vmem:[%s0 + $0x1298] sm:$0xff]
  %v607 = vld [vmem:[%s0 + $0x12a0] sm:$0xff]
  %v608 = vld [vmem:[%s0 + $0x12a8] sm:$0xff]
  %v609 = vld [vmem:[%s0 + $0x12b0] sm:$0xff]
  %v610 = vld [vmem:[%s0 + $0x12b8] sm:$0xff]
  %v611 = vld [vmem:[%s0 + $0x12c0] sm:$0xff]
  %v612 = vld [vmem:[%s0 + $0x12c8] sm:$0xff]
  %v613 = vld [vmem:[%s0 + $0x12d0] sm:$0xff]
  %v614 = vld [vmem:[%s0 + $0x12d8] sm:$0xff]
  %v615 = vld [vmem:[%s0 + $0x12e0] sm:$0xff]
  %v616 = vld [vmem:[%s0 + $0x12e8] sm:$0xff]
  %v617 = vld [vmem:[%s0 + $0x12f0] sm:$0xff]
  %v618 = vld [vmem:[%s0 + $0x12f8] sm:$0xff]
  %v619 = vld [vmem:[%s0 + $0x1300] sm:$0xff]
  %v620 = vld [vmem:[%s0 + $0x1308] sm:$0xff]
  %v621 = vld [vmem:[%s0 + $0x1310] sm:$0xff]
  %v622 = vld [vmem:[%s0 + $0x1318] sm:$0xff]
  %v623 = vld [vmem:[%s0 + $0x1320] sm:$0xff]
  %v624 = vld [vmem:[%s0 + $0x1328] sm:$0xff]
  %v625 = vld [vmem:[%s0 + $0x1330] sm:$0xff]
  %v626 = vld [vmem:[%s0 + $0x1338] sm:$0xff]
  %v627 = vld [vmem:[%s0 + $0x1340] sm:$0xff]
  %v628 = vld [vmem:[%s0 + $0x1348] sm:$0xff]
  %v629 = vld [vmem:[%s0 + $0x1350] sm:$0xff]
  %v630 = vld [vmem:[%s0 + $0x1358] sm:$0xff]
  %v631 = vld [vmem:[%s0 + $0x1360] sm:$0xff]
  %v632 = vld [vmem:[%s0 + $0x1368] sm:$0xff]
  %v633 = vld [vmem:[%s0 + $0x1370] sm:$0xff]
  %v634 = vld [vmem:[%s0 + $0x1378] sm:$0xff]
  %v635 = vld [vmem:[%s0 + $0x1380] sm:$0xff]
  %v636 = vld [vmem:[%s0 + $0x1388] sm:$0xff]
  %v637 = vld [vmem:[%s0 + $0x1390] sm:$0xff]
  %v638 = vld [vmem:[%s0 + $0x1398] sm:$0xff]
  %v639 = vld [vmem:[%s0 + $0x13a0] sm:$0xff]
  %v640 = vld [vmem:[%s0 + $0x13a8] sm:$0xff]
  %v641 = vld [vmem:[%s0 + $0x13b0] sm:$0xff]
  %v642 = vld [vmem:[%s0 + $0x13b8] sm:$0xff]
  %v643 = vld [vmem:[%s0 + $0x13c0] sm:$0xff]
  %v644 = vld [vmem:[%s0 + $0x13c8] sm:$0xff]
  %v645 = vld [vmem:[%s0 + $0x13d0] sm:$0xff]
  %v646 = vld [vmem:[%s0 + $0x13d8] sm:$0xff]
  %v647 = vld [vmem:[%s0 + $0x13e0] sm:$0xff]
  %v648 = vld [vmem:[%s0 + $0x13e8] sm:$0xff]
  %v649 = vld [vmem:[%s0 + $0x13f0] sm:$0xff]
  %v650 = vld [vmem:[%s0 + $0x13f8] sm:$0xff]
  %v651 = vld [vmem:[%s0 + $0x1400] sm:$0xff]
  %v652 = vld [vmem:[%s0 + $0x1408] sm:$0xff]
  %v653 = vld [vmem:[%s0 + $0x1410] sm:$0xff]
  %v654 = vld [vmem:[%s0 + $0x1418] sm:$0xff]
  %v655 = vld [vmem:[%s0 + $0x1420] sm:$0xff]
  %v656 = vld [vmem:[%s0 + $0x1428] sm:$0xff]
  %v657 = vld [vmem:[%s0 + $0x1430] sm:$0xff]
  %v658 = vld [vmem:[%s0 + $0x1438] sm:$0xff]
  %v659 = vld [vmem:[%s0 + $0x1440] sm:$0xff]
  %v660 = vld [vmem:[%s0 + $0x1448] sm:$0xff]
  %v661 = vld [vmem:[%s0 + $0x1450] sm:$0xff]
  %v662 = vld [vmem:[%s0 + $0x1458] sm:$0xff]
  %v663 = vld [vmem:[%s0 + $0x1460] sm:$0xff]
  %v664 = vld [vmem:[%s0 + $0x1468] sm:$0xff]
  %v665 = vld [vmem:[%s0 + $0x1470] sm:$0xff]
  %v666 = vld [vmem:[%s0 + $0x1478] sm:$0xff]
  %v667 = vld [vmem:[%s0 + $0x1480] sm:$0xff]
  %v668 = vld [vmem:[%s0 + $0x1488] sm:$0xff]
  %v669 = vld [vmem:[%s0 + $0x1490] sm:$0xff]
  %v670 = vld [vmem:[%s0 + $0x1498] sm:$0xff]
  %v671 = vld [vmem:[%s0 + $0x14a0] sm:$0xff]
  %v672 = vld [vmem:[%s0 + $0x14a8] sm:$0xff]
  %v673 = vld [vmem:[%s0 + $0x14b0] sm:$0xff]
  %v674 = vld [vmem:[%s0 + $0x14b8] sm:$0xff]
  %v675 = vld [vmem:[%s0 + $0x14c0] sm:$0xff]
  %v676 = vld [vmem:[%s0 + $0x14c8] sm:$0xff]
  %v677 = vld [vmem:[%s0 + $0x14d0] sm:$0xff]
  %v678 = vld [vmem:[%s0 + $0x14d8] sm:$0xff]
  %v679 = vld [vmem:[%s0 + $0x14e0] sm:$0xff]
  %v680 = vld [vmem:[%s0 + $0x14e8] sm:$0xff]
  %v681 = vld [vmem:[%s0 + $0x14f0] sm:$0xff]
  %v682 = vld [vmem:[%s0 + $0x14f8] sm:$0xff]
  %v683 = vld [vmem:[%s0 + $0x1500] sm:$0xff]
  %v684 = vld [vmem:[%s0 + $0x1508] sm:$0xff]
  %v685 = vld [vmem:[%s0 + $0x1510] sm:$0xff]
  %v686 = vld [vmem:[%s0 + $0x1518] sm:$0xff]
  %v687 = vld [vmem:[%s0 + $0x1520] sm:$0xff]
  %v688 = vld [vmem:[%s0 + $0x1528] sm:$0xff]
  %v689 = vld [vmem:[%s0 + $0x1530] sm:$0xff]
  %v690 = vld [vmem:[%s0 + $0x1538] sm:$0xff]
  %v691 = vld [vmem:[%s0 + $0x1540] sm:$0xff]
  %v692 = vld [vmem:[%s0 + $0x1548] sm:$0xff]
  %v693 = vld [vmem:[%s0 + $0x1550] sm:$0xff]
  %v694 = vld [vmem:[%s0 + $0x1558] sm:$0xff]
  %v695 = vld [vmem:[%s0 + $0x1560] sm:$0xff]
  %v696 = vld [vmem:[%s0 + $0x1568] sm:$0xff]
  %v697 = vld [vmem:[%s0 + $0x1570] sm:$0xff]
  %v698 = vld [vmem:[%s0 + $0x1578] sm:$0xff]
  %v699 = vld [vmem:[%s0 + $0x1580] sm:$0xff]
  %v700 = vld [vmem:[%s0 + $0x1588] sm:$0xff]
  %v701 = vld [vmem:[%s0 + $0x1590] sm:$0xff]
  %v702 = vld [vmem:[%s0 + $0x1598] sm:$0xff]
  %v703 = vld [vmem:[%s0 + $0x15a0] sm:$0xff]
  %v704 = vld [vmem:[%s0 + $0x15a8] sm:$0xff]
  %v705 = vld [vmem:[%s0 + $0x15b0] sm:$0xff]
  %v706 = vld [vmem:[%s0 + $0x15b8] sm:$0xff]
  %v707 = vld [vmem:[%s0 + $0x15c0] sm:$0xff]
  %v708 = vld [vmem:[%s0 + $0x15c8] sm:$0xff]
  %v709 = vld [vmem:[%s0 + $0x15d0] sm:$0xff]
  %v710 = vld [vmem:[%s0 + $0x15d8] sm:$0xff]
  %v711 = vld [vmem:[%s0 + $0x15e0] sm:$0xff]
  %v712 = vld [vmem:[%s0 + $0x15e8] sm:$0xff]
  %v713 = vld [vmem:[%s0 + $0x15f0] sm:$0xff]
  %v714 = vld [vmem:[%s0 + $0x15f8] sm:$0xff]
  %v715 = vld [vmem:[%s0 + $0x1600] sm:$0xff]
  %v716 = vld [vmem:[%s0 + $0x1608] sm:$0xff]
  %v717 = vld [vmem:[%s0 + $0x1610] sm:$0xff]
  %v718 = vld [vmem:[%s0 + $0x1618] sm:$0xff]
  %v719 = vld [vmem:[%s0 + $0x1620] sm:$0xff]
  %v720 = vld [vmem:[%s0 + $0x1628] sm:$0xff]
  %v721 = vld [vmem:[%s0 + $0x1630] sm:$0xff]
  %v722 = vld [vmem:[%s1] sm:$0xff]
  %v723 = vld [vmem:[%s1 + $0x8] sm:$0xff]
  %v724 = vld [vmem:[%s1 + $0x10] sm:$0xff]
  %v725 = vld [vmem:[%s1 + $0x18] sm:$0xff]
  %v726 = vld [vmem:[%s1 + $0x20] sm:$0xff]
  %v727 = vld [vmem:[%s1 + $0x28] sm:$0xff]
  %v728 = vld [vmem:[%s1 + $0x30] sm:$0xff]
  %v729 = vld [vmem:[%s1 + $0x38] sm:$0xff]
  %v730 = vld [vmem:[%s1 + $0x40] sm:$0xff]
  %v731 = vld [vmem:[%s1 + $0x48] sm:$0xff]
  %v732 = vld [vmem:[%s1 + $0x50] sm:$0xff]
  %v733 = vld [vmem:[%s1 + $0x58] sm:$0xff]
  %v734 = vld [vmem:[%s1 + $0x60] sm:$0xff]
  %v735 = vld [vmem:[%s1 + $0x68] sm:$0xff]
  %v736 = vld [vmem:[%s1 + $0x70] sm:$0xff]
  %v737 = vld [vmem:[%s1 + $0x78] sm:$0xff]
  %v738 = vld [vmem:[%s1 + $0x80] sm:$0xff]
  %v739 = vld [vmem:[%s1 + $0x88] sm:$0xff]
  %v740 = vld [vmem:[%s1 + $0x90] sm:$0xff]
  %v741 = vld [vmem:[%s1 + $0x98] sm:$0xff]
  %v742 = vld [vmem:[%s1 + $0xa0] sm:$0xff]
  %v743 = vld [vmem:[%s1 + $0xa8] sm:$0xff]
  %v744 = vld [vmem:[%s1 + $0xb0] sm:$0xff]
  %v745 = vld [vmem:[%s1 + $0xb8] sm:$0xff]
  %v746 = vld [vmem:[%s1 + $0xc0] sm:$0xff]
  %v747 = vld [vmem:[%s1 + $0xc8] sm:$0xff]
  %v748 = vld [vmem:[%s1 + $0xd0] sm:$0xff]
  %v749 = vld [vmem:[%s1 + $0xd8] sm:$0xff]
  %v750 = vld [vmem:[%s1 + $0xe0] sm:$0xff]
  %v751 = vld [vmem:[%s1 + $0xe8] sm:$0xff]
  %v752 = vld [vmem:[%s1 + $0xf0] sm:$0xff]
  %v753 = vld [vmem:[%s1 + $0xf8] sm:$0xff]
  %v754 = vld [vmem:[%s1 + $0x100] sm:$0xff]
  %v755 = vld [vmem:[%s1 + $0x108] sm:$0xff]
  %v756 = vld [vmem:[%s1 + $0x110] sm:$0xff]
  %v757 = vld [vmem:[%s1 + $0x118] sm:$0xff]
  %v758 = vld [vmem:[%s1 + $0x120] sm:$0xff]
  %v759 = vld [vmem:[%s1 + $0x128] sm:$0xff]
  %v760 = vld [vmem:[%s1 + $0x130] sm:$0xff]
  %v761 = vld [vmem:[%s1 + $0x138] sm:$0xff]
  %v762 = vld [vmem:[%s1 + $0x140] sm:$0xff]
  %v763 = vld [vmem:[%s1 + $0x148] sm:$0xff]
  %v764 = vld [vmem:[%s1 + $0x150] sm:$0xff]
  %v765 = vld [vmem:[%s1 + $0x158] sm:$0xff]
  %v766 = vld [vmem:[%s1 + $0x160] sm:$0xff]
  %v767 = vld [vmem:[%s1 + $0x168] sm:$0xff]
  %v768 = vld [vmem:[%s1 + $0x170] sm:$0xff]
  %v769 = vld [vmem:[%s1 + $0x178] sm:$0xff]
  %v770 = vld [vmem:[%s1 + $0x180] sm:$0xff]
  %v771 = vld [vmem:[%s1 + $0x188] sm:$0xff]
  %v772 = vld [vmem:[%s1 + $0x190] sm:$0xff]
  %v773 = vld [vmem:[%s1 + $0x198] sm:$0xff]
  %v774 = vld [vmem:[%s1 + $0x1a0] sm:$0xff]
  %v775 = vld [vmem:[%s1 + $0x1a8] sm:$0xff]
  %v776 = vld [vmem:[%s1 + $0x1b0] sm:$0xff]
  %v777 = vld [vmem:[%s1 + $0x1b8] sm:$0xff]
  %v778 = vld [vmem:[%s1 + $0x1c0] sm:$0xff]
  %v779 = vld [vmem:[%s1 + $0x1c8] sm:$0xff]
  %v780 = vld [vmem:[%s1 + $0x1d0] sm:$0xff]
  %v781 = vld [vmem:[%s1 + $0x1d8] sm:$0xff]
  %v782 = vld [vmem:[%s1 + $0x1e0] sm:$0xff]
  %v783 = vld [vmem:[%s1 + $0x1e8] sm:$0xff]
  %v784 = vld [vmem:[%s1 + $0x1f0] sm:$0xff]
  %v785 = vld [vmem:[%s1 + $0x1f8] sm:$0xff]
  %v786 = vld [vmem:[%s1 + $0x200] sm:$0xff]
  %v787 = vld [vmem:[%s1 + $0x208] sm:$0xff]
  %v788 = vld [vmem:[%s1 + $0x210] sm:$0xff]
  %v789 = vld [vmem:[%s1 + $0x218] sm:$0xff]
  %v790 = vld [vmem:[%s1 + $0x220] sm:$0xff]
  %v791 = vld [vmem:[%s1 + $0x228] sm:$0xff]
  %v792 = vld [vmem:[%s1 + $0x230] sm:$0xff]
  %v793 = vld [vmem:[%s1 + $0x238] sm:$0xff]
  %v794 = vld [vmem:[%s1 + $0x240] sm:$0xff]
  %v795 = vld [vmem:[%s1 + $0x248] sm:$0xff]
  %v796 = vld [vmem:[%s1 + $0x250] sm:$0xff]
  %v797 = vld [vmem:[%s1 + $0x258] sm:$0xff]
  %v798 = vld [vmem:[%s1 + $0x260] sm:$0xff]
  %v799 = vld [vmem:[%s1 + $0x268] sm:$0xff]
  %v800 = vld [vmem:[%s1 + $0x270] sm:$0xff]
  %v801 = vld [vmem:[%s1 + $0x278] sm:$0xff]
  %v802 = vld [vmem:[%s1 + $0x280] sm:$0xff]
  %v803 = vld [vmem:[%s1 + $0x288] sm:$0xff]
  %v804 = vld [vmem:[%s1 + $0x290] sm:$0xff]
  %v805 = vld [vmem:[%s1 + $0x298] sm:$0xff]
  %v806 = vld [vmem:[%s1 + $0x2a0] sm:$0xff]
  %v807 = vld [vmem:[%s1 + $0x2a8] sm:$0xff]
  %v808 = vld [vmem:[%s1 + $0x2b0] sm:$0xff]
  %v809 = vld [vmem:[%s1 + $0x2b8] sm:$0xff]
  %v810 = vld [vmem:[%s1 + $0x2c0] sm:$0xff]
  %v811 = vld [vmem:[%s1 + $0x2c8] sm:$0xff]
  %v812 = vld [vmem:[%s1 + $0x2d0] sm:$0xff]
  %v813 = vld [vmem:[%s1 + $0x2d8] sm:$0xff]
  %v814 = vld [vmem:[%s1 + $0x2e0] sm:$0xff]
  %v815 = vld [vmem:[%s1 + $0x2e8] sm:$0xff]
  %v816 = vld [vmem:[%s1 + $0x2f0] sm:$0xff]
  %v817 = vld [vmem:[%s1 + $0x2f8] sm:$0xff]
  %v818 = vld [vmem:[%s1 + $0x300] sm:$0xff]
  %v819 = vld [vmem:[%s1 + $0x308] sm:$0xff]
  %v820 = vld [vmem:[%s1 + $0x310] sm:$0xff]
  %v821 = vld [vmem:[%s1 + $0x318] sm:$0xff]
  %v822 = vld [vmem:[%s1 + $0x320] sm:$0xff]
  %v823 = vld [vmem:[%s1 + $0x328] sm:$0xff]
  %v824 = vld [vmem:[%s1 + $0x330] sm:$0xff]
  %v825 = vld [vmem:[%s1 + $0x338] sm:$0xff]
  %v826 = vld [vmem:[%s1 + $0x340] sm:$0xff]
  %v827 = vld [vmem:[%s1 + $0x348] sm:$0xff]
  %v828 = vld [vmem:[%s1 + $0x350] sm:$0xff]
  %v829 = vld [vmem:[%s1 + $0x358] sm:$0xff]
  %v830 = vld [vmem:[%s1 + $0x360] sm:$0xff]
  %v831 = vld [vmem:[%s1 + $0x368] sm:$0xff]
  %v832 = vld [vmem:[%s1 + $0x370] sm:$0xff]
  %v833 = vld [vmem:[%s1 + $0x378] sm:$0xff]
  %v834 = vld [vmem:[%s1 + $0x380] sm:$0xff]
  %v835 = vld [vmem:[%s1 + $0x388] sm:$0xff]
  %v836 = vld [vmem:[%s1 + $0x390] sm:$0xff]
  %v837 = vld [vmem:[%s1 + $0x398] sm:$0xff]
  %v838 = vld [vmem:[%s1 + $0x3a0] sm:$0xff]
  %v839 = vld [vmem:[%s1 + $0x3a8] sm:$0xff]
  %v840 = vld [vmem:[%s1 + $0x3b0] sm:$0xff]
  %v841 = vld [vmem:[%s1 + $0x3b8] sm:$0xff]
  %v842 = vld [vmem:[%s1 + $0x3c0] sm:$0xff]
  %v843 = vld [vmem:[%s1 + $0x3c8] sm:$0xff]
  %v844 = vld [vmem:[%s1 + $0x3d0] sm:$0xff]
  %v845 = vld [vmem:[%s1 + $0x3d8] sm:$0xff]
  %v846 = vld [vmem:[%s1 + $0x3e0] sm:$0xff]
  %v847 = vld [vmem:[%s1 + $0x3e8] sm:$0xff]
  %v848 = vld [vmem:[%s1 + $0x3f0] sm:$0xff]
  %v849 = vld [vmem:[%s1 + $0x3f8] sm:$0xff]
  %v850 = vld [vmem:[%s1 + $0x400] sm:$0xff]
  %v851 = vld [vmem:[%s1 + $0x408] sm:$0xff]
  %v852 = vld [vmem:[%s1 + $0x410] sm:$0xff]
  %v853 = vld [vmem:[%s1 + $0x418] sm:$0xff]
  %v854 = vld [vmem:[%s1 + $0x420] sm:$0xff]
  %v855 = vld [vmem:[%s1 + $0x428] sm:$0xff]
  %v856 = vld [vmem:[%s1 + $0x430] sm:$0xff]
  %v857 = vld [vmem:[%s1 + $0x438] sm:$0xff]
  %v858 = vld [vmem:[%s1 + $0x440] sm:$0xff]
  %v859 = vld [vmem:[%s1 + $0x448] sm:$0xff]
  %v860 = vld [vmem:[%s1 + $0x450] sm:$0xff]
  %v861 = vld [vmem:[%s1 + $0x458] sm:$0xff]
  %v862 = vld [vmem:[%s1 + $0x460] sm:$0xff]
  %v863 = vld [vmem:[%s1 + $0x468] sm:$0xff]
  %v864 = vld [vmem:[%s1 + $0x470] sm:$0xff]
  %v865 = vld [vmem:[%s1 + $0x478] sm:$0xff]
  %v866 = vld [vmem:[%s1 + $0x480] sm:$0xff]
  %v867 = vld [vmem:[%s1 + $0x488] sm:$0xff]
  %v868 = vld [vmem:[%s1 + $0x490] sm:$0xff]
  %v869 = vld [vmem:[%s1 + $0x498] sm:$0xff]
  %v870 = vld [vmem:[%s1 + $0x4a0] sm:$0xff]
  %v871 = vld [vmem:[%s1 + $0x4a8] sm:$0xff]
  %v872 = vld [vmem:[%s1 + $0x4b0] sm:$0xff]
  %v873 = vld [vmem:[%s1 + $0x4b8] sm:$0xff]
  %v874 = vld [vmem:[%s1 + $0x4c0] sm:$0xff]
  %v875 = vld [vmem:[%s1 + $0x4c8] sm:$0xff]
  %v876 = vld [vmem:[%s1 + $0x4d0] sm:$0xff]
  %v877 = vld [vmem:[%s1 + $0x4d8] sm:$0xff]
  %v878 = vld [vmem:[%s1 + $0x4e0] sm:$0xff]
  %v879 = vld [vmem:[%s1 + $0x4e8] sm:$0xff]
  %v880 = vld [vmem:[%s1 + $0x4f0] sm:$0xff]
  %v881 = vld [vmem:[%s1 + $0x4f8] sm:$0xff]
  %v882 = vld [vmem:[%s1 + $0x500] sm:$0xff]
  %v883 = vld [vmem:[%s1 + $0x508] sm:$0xff]
  %v884 = vld [vmem:[%s1 + $0x510] sm:$0xff]
  %v885 = vld [vmem:[%s1 + $0x518] sm:$0xff]
  %v886 = vld [vmem:[%s1 + $0x520] sm:$0xff]
  %v887 = vld [vmem:[%s1 + $0x528] sm:$0xff]
  %v888 = vld [vmem:[%s1 + $0x530] sm:$0xff]
  %v889 = vld [vmem:[%s1 + $0x538] sm:$0xff]
  %v890 = vld [vmem:[%s1 + $0x540] sm:$0xff]
  %v891 = vld [vmem:[%s1 + $0x548] sm:$0xff]
  %v892 = vld [vmem:[%s1 + $0x550] sm:$0xff]
  %v893 = vld [vmem:[%s1 + $0x558] sm:$0xff]
  %v894 = vld [vmem:[%s1 + $0x560] sm:$0xff]
  %v895 = vld [vmem:[%s1 + $0x568] sm:$0xff]
  %v896 = vld [vmem:[%s1 + $0x570] sm:$0xff]
  %v897 = vld [vmem:[%s1 + $0x578] sm:$0xff]
  %v898 = vld [vmem:[%s1 + $0x580] sm:$0xff]
  %v899 = vld [vmem:[%s1 + $0x588] sm:$0xff]
  %v900 = vld [vmem:[%s1 + $0x590] sm:$0xff]
  %v901 = vld [vmem:[%s1 + $0x598] sm:$0xff]
  %v902 = vld [vmem:[%s1 + $0x5a0] sm:$0xff]
  %v903 = vld [vmem:[%s1 + $0x5a8] sm:$0xff]
  %v904 = vld [vmem:[%s1 + $0x5b0] sm:$0xff]
  %v905 = vld [vmem:[%s1 + $0x5b8] sm:$0xff]
  %v906 = vld [vmem:[%s1 + $0x5c0] sm:$0xff]
  %v907 = vld [vmem:[%s1 + $0x5c8] sm:$0xff]
  %v908 = vld [vmem:[%s1 + $0x5d0] sm:$0xff]
  %v909 = vld [vmem:[%s1 + $0x5d8] sm:$0xff]
  %v910 = vld [vmem:[%s1 + $0x5e0] sm:$0xff]
  %v911 = vld [vmem:[%s1 + $0x5e8] sm:$0xff]
  %v912 = vld [vmem:[%s1 + $0x5f0] sm:$0xff]
  %v913 = vld [vmem:[%s1 + $0x5f8] sm:$0xff]
  %v914 = vld [vmem:[%s1 + $0x600] sm:$0xff]
  %v915 = vld [vmem:[%s1 + $0x608] sm:$0xff]
  %v916 = vld [vmem:[%s1 + $0x610] sm:$0xff]
  %v917 = vld [vmem:[%s1 + $0x618] sm:$0xff]
  %v918 = vld [vmem:[%s1 + $0x620] sm:$0xff]
  %v919 = vld [vmem:[%s1 + $0x628] sm:$0xff]
  %v920 = vld [vmem:[%s1 + $0x630] sm:$0xff]
  %v921 = vld [vmem:[%s1 + $0x638] sm:$0xff]
  %v922 = vld [vmem:[%s1 + $0x640] sm:$0xff]
  %v923 = vld [vmem:[%s1 + $0x648] sm:$0xff]
  %v924 = vld [vmem:[%s1 + $0x650] sm:$0xff]
  %v925 = vld [vmem:[%s1 + $0x658] sm:$0xff]
  %v926 = vld [vmem:[%s1 + $0x660] sm:$0xff]
  %v927 = vld [vmem:[%s1 + $0x668] sm:$0xff]
  %v928 = vld [vmem:[%s1 + $0x670] sm:$0xff]
  %v929 = vld [vmem:[%s1 + $0x678] sm:$0xff]
  %v930 = vld [vmem:[%s1 + $0x680] sm:$0xff]
  %v931 = vld [vmem:[%s1 + $0x688] sm:$0xff]
  %v932 = vld [vmem:[%s1 + $0x690] sm:$0xff]
  %v933 = vld [vmem:[%s1 + $0x698] sm:$0xff]
  %v934 = vld [vmem:[%s1 + $0x6a0] sm:$0xff]
  %v935 = vld [vmem:[%s1 + $0x6a8] sm:$0xff]
  %v936 = vld [vmem:[%s1 + $0x6b0] sm:$0xff]
  %v937 = vld [vmem:[%s1 + $0x6b8] sm:$0xff]
  %v938 = vld [vmem:[%s1 + $0x6c0] sm:$0xff]
  %v939 = vld [vmem:[%s1 + $0x6c8] sm:$0xff]
  %v940 = vld [vmem:[%s1 + $0x6d0] sm:$0xff]
  %v941 = vld [vmem:[%s1 + $0x6d8] sm:$0xff]
  %v942 = vld [vmem:[%s1 + $0x6e0] sm:$0xff]
  %v943 = vld [vmem:[%s1 + $0x6e8] sm:$0xff]
  %v944 = vld [vmem:[%s1 + $0x6f0] sm:$0xff]
  %v945 = vld [vmem:[%s1 + $0x6f8] sm:$0xff]
  %v946 = vld [vmem:[%s1 + $0x700] sm:$0xff]
  %v947 = vld [vmem:[%s1 + $0x708] sm:$0xff]
  %v948 = vld [vmem:[%s1 + $0x710] sm:$0xff]
  %v949 = vld [vmem:[%s1 + $0x718] sm:$0xff]
  %v950 = vld [vmem:[%s1 + $0x720] sm:$0xff]
  %v951 = vld [vmem:[%s1 + $0x728] sm:$0xff]
  %v952 = vld [vmem:[%s1 + $0x730] sm:$0xff]
  %v953 = vld [vmem:[%s1 + $0x738] sm:$0xff]
  %v954 = vld [vmem:[%s1 + $0x740] sm:$0xff]
  %v955 = vld [vmem:[%s1 + $0x748] sm:$0xff]
  %v956 = vld [vmem:[%s1 + $0x750] sm:$0xff]
  %v957 = vld [vmem:[%s1 + $0x758] sm:$0xff]
  %v958 = vld [vmem:[%s1 + $0x760] sm:$0xff]
  %v959 = vld [vmem:[%s1 + $0x768] sm:$0xff]
  %v960 = vld [vmem:[%s1 + $0x770] sm:$0xff]
  %v961 = vld [vmem:[%s1 + $0x778] sm:$0xff]
  %v962 = vld [vmem:[%s1 + $0x780] sm:$0xff]
  %v963 = vld [vmem:[%s1 + $0x788] sm:$0xff]
  %v964 = vld [vmem:[%s1 + $0x790] sm:$0xff]
  %v965 = vld [vmem:[%s1 + $0x798] sm:$0xff]
  %v966 = vld [vmem:[%s1 + $0x7a0] sm:$0xff]
  %v967 = vld [vmem:[%s1 + $0x7a8] sm:$0xff]
  %v968 = vld [vmem:[%s1 + $0x7b0] sm:$0xff]
  %v969 = vld [vmem:[%s1 + $0x7b8] sm:$0xff]
  %v970 = vld [vmem:[%s1 + $0x7c0] sm:$0xff]
  %v971 = vld [vmem:[%s1 + $0x7c8] sm:$0xff]
  %v972 = vld [vmem:[%s1 + $0x7d0] sm:$0xff]
  %v973 = vld [vmem:[%s1 + $0x7d8] sm:$0xff]
  %v974 = vld [vmem:[%s1 + $0x7e0] sm:$0xff]
  %v975 = vld [vmem:[%s1 + $0x7e8] sm:$0xff]
  %v976 = vld [vmem:[%s1 + $0x7f0] sm:$0xff]
  %v977 = vld [vmem:[%s1 + $0x7f8] sm:$0xff]
  %v978 = vld [vmem:[%s1 + $0x800] sm:$0xff]
  %v979 = vld [vmem:[%s1 + $0x808] sm:$0xff]
  %v980 = vld [vmem:[%s1 + $0x810] sm:$0xff]
  %v981 = vld [vmem:[%s1 + $0x818] sm:$0xff]
  %v982 = vld [vmem:[%s1 + $0x820] sm:$0xff]
  %v983 = vld [vmem:[%s1 + $0x828] sm:$0xff]
  %v984 = vld [vmem:[%s1 + $0x830] sm:$0xff]
  %v985 = vld [vmem:[%s1 + $0x838] sm:$0xff]
  %v986 = vld [vmem:[%s1 + $0x840] sm:$0xff]
  %v987 = vld [vmem:[%s1 + $0x848] sm:$0xff]
  %v988 = vld [vmem:[%s1 + $0x850] sm:$0xff]
  %v989 = vld [vmem:[%s1 + $0x858] sm:$0xff]
  %v990 = vld [vmem:[%s1 + $0x860] sm:$0xff]
  %v991 = vld [vmem:[%s1 + $0x868] sm:$0xff]
  %v992 = vld [vmem:[%s1 + $0x870] sm:$0xff]
  %v993 = vld [vmem:[%s1 + $0x878] sm:$0xff]
  %v994 = vld [vmem:[%s1 + $0x880] sm:$0xff]
  %v995 = vld [vmem:[%s1 + $0x888] sm:$0xff]
  %v996 = vld [vmem:[%s1 + $0x890] sm:$0xff]
  %v997 = vld [vmem:[%s1 + $0x898] sm:$0xff]
  %v998 = vld [vmem:[%s1 + $0x8a0] sm:$0xff]
  %v999 = vld [vmem:[%s1 + $0x8a8] sm:$0xff]
  %v1000 = vld [vmem:[%s1 + $0x8b0] sm:$0xff]
  %v1001 = vld [vmem:[%s1 + $0x8b8] sm:$0xff]
  %v1002 = vld [vmem:[%s1 + $0x8c0] sm:$0xff]
  %v1003 = vld [vmem:[%s1 + $0x8c8] sm:$0xff]
  %v1004 = vld [vmem:[%s1 + $0x8d0] sm:$0xff]
  %v1005 = vld [vmem:[%s1 + $0x8d8] sm:$0xff]
  %v1006 = vld [vmem:[%s1 + $0x8e0] sm:$0xff]
  %v1007 = vld [vmem:[%s1 + $0x8e8] sm:$0xff]
  %v1008 = vld [vmem:[%s1 + $0x8f0] sm:$0xff]
  %v1009 = vld [vmem:[%s1 + $0x8f8] sm:$0xff]
  %v1010 = vld [vmem:[%s1 + $0x900] sm:$0xff]
  %v1011 = vld [vmem:[%s1 + $0x908] sm:$0xff]
  %v1012 = vld [vmem:[%s1 + $0x910] sm:$0xff]
  %v1013 = vld [vmem:[%s1 + $0x918] sm:$0xff]
  %v1014 = vld [vmem:[%s1 + $0x920] sm:$0xff]
  %v1015 = vld [vmem:[%s1 + $0x928] sm:$0xff]
  %v1016 = vld [vmem:[%s1 + $0x930] sm:$0xff]
  %v1017 = vld [vmem:[%s1 + $0x938] sm:$0xff]
  %v1018 = vld [vmem:[%s1 + $0x940] sm:$0xff]
  %v1019 = vld [vmem:[%s1 + $0x948] sm:$0xff]
  %v1020 = vld [vmem:[%s1 + $0x950] sm:$0xff]
  %v1021 = vld [vmem:[%s1 + $0x958] sm:$0xff]
  %v1022 = vld [vmem:[%s1 + $0x960] sm:$0xff]
  %v1023 = vld [vmem:[%s1 + $0x968] sm:$0xff]
  %v1024 = vld [vmem:[%s1 + $0x970] sm:$0xff]
  %v1025 = vld [vmem:[%s1 + $0x978] sm:$0xff]
  %v1026 = vld [vmem:[%s1 + $0x980] sm:$0xff]
  %v1027 = vld [vmem:[%s1 + $0x988] sm:$0xff]
  %v1028 = vld [vmem:[%s1 + $0x990] sm:$0xff]
  %v1029 = vld [vmem:[%s1 + $0x998] sm:$0xff]
  %v1030 = vld [vmem:[%s1 + $0x9a0] sm:$0xff]
  %v1031 = vld [vmem:[%s1 + $0x9a8] sm:$0xff]
  %v1032 = vld [vmem:[%s1 + $0x9b0] sm:$0xff]
  %v1033 = vld [vmem:[%s1 + $0x9b8] sm:$0xff]
  %v1034 = vld [vmem:[%s1 + $0x9c0] sm:$0xff]
  %v1035 = vld [vmem:[%s1 + $0x9c8] sm:$0xff]
  %v1036 = vld [vmem:[%s1 + $0x9d0] sm:$0xff]
  %v1037 = vld [vmem:[%s1 + $0x9d8] sm:$0xff]
  %v1038 = vld [vmem:[%s1 + $0x9e0] sm:$0xff]
  %v1039 = vld [vmem:[%s1 + $0x9e8] sm:$0xff]
  %v1040 = vld [vmem:[%s1 + $0x9f0] sm:$0xff]
  %v1041 = vld [vmem:[%s1 + $0x9f8] sm:$0xff]
  %v1042 = vld [vmem:[%s1 + $0xa00] sm:$0xff]
  %v1043 = vld [vmem:[%s1 + $0xa08] sm:$0xff]
  %v1044 = vld [vmem:[%s1 + $0xa10] sm:$0xff]
  %v1045 = vld [vmem:[%s1 + $0xa18] sm:$0xff]
  %v1046 = vld [vmem:[%s1 + $0xa20] sm:$0xff]
  %v1047 = vld [vmem:[%s1 + $0xa28] sm:$0xff]
  %v1048 = vld [vmem:[%s1 + $0xa30] sm:$0xff]
  %v1049 = vld [vmem:[%s1 + $0xa38] sm:$0xff]
  %v1050 = vld [vmem:[%s1 + $0xa40] sm:$0xff]
  %v1051 = vld [vmem:[%s1 + $0xa48] sm:$0xff]
  %v1052 = vld [vmem:[%s1 + $0xa50] sm:$0xff]
  %v1053 = vld [vmem:[%s1 + $0xa58] sm:$0xff]
  %v1054 = vld [vmem:[%s1 + $0xa60] sm:$0xff]
  %v1055 = vld [vmem:[%s1 + $0xa68] sm:$0xff]
  %v1056 = vld [vmem:[%s1 + $0xa70] sm:$0xff]
  %v1057 = vld [vmem:[%s1 + $0xa78] sm:$0xff]
  %v1058 = vld [vmem:[%s1 + $0xa80] sm:$0xff]
  %v1059 = vld [vmem:[%s1 + $0xa88] sm:$0xff]
  %v1060 = vld [vmem:[%s1 + $0xa90] sm:$0xff]
  %v1061 = vld [vmem:[%s1 + $0xa98] sm:$0xff]
  %v1062 = vld [vmem:[%s1 + $0xaa0] sm:$0xff]
  %v1063 = vld [vmem:[%s1 + $0xaa8] sm:$0xff]
  %v1064 = vld [vmem:[%s1 + $0xab0] sm:$0xff]
  %v1065 = vld [vmem:[%s1 + $0xab8] sm:$0xff]
  %v1066 = vld [vmem:[%s1 + $0xac0] sm:$0xff]
  %v1067 = vld [vmem:[%s1 + $0xac8] sm:$0xff]
  %v1068 = vld [vmem:[%s1 + $0xad0] sm:$0xff]
  %v1069 = vld [vmem:[%s1 + $0xad8] sm:$0xff]
  %v1070 = vld [vmem:[%s1 + $0xae0] sm:$0xff]
  %v1071 = vld [vmem:[%s1 + $0xae8] sm:$0xff]
  %v1072 = vld [vmem:[%s1 + $0xaf0] sm:$0xff]
  %v1073 = vld [vmem:[%s1 + $0xaf8] sm:$0xff]
  %v1074 = vld [vmem:[%s1 + $0xb00] sm:$0xff]
  %v1075 = vld [vmem:[%s1 + $0xb08] sm:$0xff]
  %v1076 = vld [vmem:[%s1 + $0xb10] sm:$0xff]
  %v1077 = vld [vmem:[%s1 + $0xb18] sm:$0xff]
  %v1078 = vld [vmem:[%s1 + $0xb20] sm:$0xff]
  %v1079 = vld [vmem:[%s1 + $0xb28] sm:$0xff]
  %v1080 = vld [vmem:[%s1 + $0xb30] sm:$0xff]
  %v1081 = vld [vmem:[%s1 + $0xb38] sm:$0xff]
  %v1082 = vld [vmem:[%s1 + $0xb40] sm:$0xff]
  %v1083 = vld [vmem:[%s1 + $0xb48] sm:$0xff]
  %v1084 = vld [vmem:[%s1 + $0xb50] sm:$0xff]
  %v1085 = vld [vmem:[%s1 + $0xb58] sm:$0xff]
  %v1086 = vld [vmem:[%s1 + $0xb60] sm:$0xff]
  %v1087 = vld [vmem:[%s1 + $0xb68] sm:$0xff]
  %v1088 = vld [vmem:[%s1 + $0xb70] sm:$0xff]
  %v1089 = vld [vmem:[%s1 + $0xb78] sm:$0xff]
  %v1090 = vld [vmem:[%s1 + $0xb80] sm:$0xff]
  %v1091 = vld [vmem:[%s1 + $0xb88] sm:$0xff]
  %v1092 = vld [vmem:[%s1 + $0xb90] sm:$0xff]
  %v1093 = vld [vmem:[%s1 + $0xb98] sm:$0xff]
  %v1094 = vld [vmem:[%s1 + $0xba0] sm:$0xff]
  %v1095 = vld [vmem:[%s1 + $0xba8] sm:$0xff]
  %v1096 = vld [vmem:[%s1 + $0xbb0] sm:$0xff]
  %v1097 = vld [vmem:[%s1 + $0xbb8] sm:$0xff]
  %v1098 = vld [vmem:[%s1 + $0xbc0] sm:$0xff]
  %v1099 = vld [vmem:[%s1 + $0xbc8] sm:$0xff]
  %v1100 = vld [vmem:[%s1 + $0xbd0] sm:$0xff]
  %v1101 = vld [vmem:[%s1 + $0xbd8] sm:$0xff]
  %v1102 = vld [vmem:[%s1 + $0xbe0] sm:$0xff]
  %v1103 = vld [vmem:[%s1 + $0xbe8] sm:$0xff]
  %v1104 = vld [vmem:[%s1 + $0xbf0] sm:$0xff]
  %v1105 = vld [vmem:[%s1 + $0xbf8] sm:$0xff]
  %v1106 = vld [vmem:[%s1 + $0xc00] sm:$0xff]
  %v1107 = vld [vmem:[%s1 + $0xc08] sm:$0xff]
  %v1108 = vld [vmem:[%s1 + $0xc10] sm:$0xff]
  %v1109 = vld [vmem:[%s1 + $0xc18] sm:$0xff]
  %v1110 = vld [vmem:[%s1 + $0xc20] sm:$0xff]
  %v1111 = vld [vmem:[%s1 + $0xc28] sm:$0xff]
  %v1112 = vld [vmem:[%s1 + $0xc30] sm:$0xff]
  %v1113 = vld [vmem:[%s1 + $0xc38] sm:$0xff]
  %v1114 = vld [vmem:[%s1 + $0xc40] sm:$0xff]
  %v1115 = vld [vmem:[%s1 + $0xc48] sm:$0xff]
  %v1116 = vld [vmem:[%s1 + $0xc50] sm:$0xff]
  %v1117 = vld [vmem:[%s1 + $0xc58] sm:$0xff]
  %v1118 = vld [vmem:[%s1 + $0xc60] sm:$0xff]
  %v1119 = vld [vmem:[%s1 + $0xc68] sm:$0xff]
  %v1120 = vld [vmem:[%s1 + $0xc70] sm:$0xff]
  %v1121 = vld [vmem:[%s1 + $0xc78] sm:$0xff]
  %v1122 = vld [vmem:[%s1 + $0xc80] sm:$0xff]
  %v1123 = vld [vmem:[%s1 + $0xc88] sm:$0xff]
  %v1124 = vld [vmem:[%s1 + $0xc90] sm:$0xff]
  %v1125 = vld [vmem:[%s1 + $0xc98] sm:$0xff]
  %v1126 = vld [vmem:[%s1 + $0xca0] sm:$0xff]
  %v1127 = vld [vmem:[%s1 + $0xca8] sm:$0xff]
  %v1128 = vld [vmem:[%s1 + $0xcb0] sm:$0xff]
  %v1129 = vld [vmem:[%s1 + $0xcb8] sm:$0xff]
  %v1130 = vld [vmem:[%s1 + $0xcc0] sm:$0xff]
  %v1131 = vld [vmem:[%s1 + $0xcc8] sm:$0xff]
  %v1132 = vld [vmem:[%s1 + $0xcd0] sm:$0xff]
  %v1133 = vld [vmem:[%s1 + $0xcd8] sm:$0xff]
  %v1134 = vld [vmem:[%s1 + $0xce0] sm:$0xff]
  %v1135 = vld [vmem:[%s1 + $0xce8] sm:$0xff]
  %v1136 = vld [vmem:[%s1 + $0xcf0] sm:$0xff]
  %v1137 = vld [vmem:[%s1 + $0xcf8] sm:$0xff]
  %v1138 = vld [vmem:[%s1 + $0xd00] sm:$0xff]
  %v1139 = vld [vmem:[%s1 + $0xd08] sm:$0xff]
  %v1140 = vld [vmem:[%s1 + $0xd10] sm:$0xff]
  %v1141 = vld [vmem:[%s1 + $0xd18] sm:$0xff]
  %v1142 = vld [vmem:[%s1 + $0xd20] sm:$0xff]
  %v1143 = vld [vmem:[%s1 + $0xd28] sm:$0xff]
  %v1144 = vld [vmem:[%s1 + $0xd30] sm:$0xff]
  %v1145 = vld [vmem:[%s1 + $0xd38] sm:$0xff]
  %v1146 = vld [vmem:[%s1 + $0xd40] sm:$0xff]
  %v1147 = vld [vmem:[%s1 + $0xd48] sm:$0xff]
  %v1148 = vld [vmem:[%s1 + $0xd50] sm:$0xff]
  %v1149 = vld [vmem:[%s1 + $0xd58] sm:$0xff]
  %v1150 = vld [vmem:[%s1 + $0xd60] sm:$0xff]
  %v1151 = vld [vmem:[%s1 + $0xd68] sm:$0xff]
  %v1152 = vld [vmem:[%s1 + $0xd70] sm:$0xff]
  %v1153 = vld [vmem:[%s1 + $0xd78] sm:$0xff]
  %v1154 = vld [vmem:[%s1 + $0xd80] sm:$0xff]
  %v1155 = vld [vmem:[%s1 + $0xd88] sm:$0xff]
  %v1156 = vld [vmem:[%s1 + $0xd90] sm:$0xff]
  %v1157 = vld [vmem:[%s1 + $0xd98] sm:$0xff]
  %v1158 = vld [vmem:[%s1 + $0xda0] sm:$0xff]
  %v1159 = vld [vmem:[%s1 + $0xda8] sm:$0xff]
  %v1160 = vld [vmem:[%s1 + $0xdb0] sm:$0xff]
  %v1161 = vld [vmem:[%s1 + $0xdb8] sm:$0xff]
  %v1162 = vld [vmem:[%s1 + $0xdc0] sm:$0xff]
  %v1163 = vld [vmem:[%s1 + $0xdc8] sm:$0xff]
  %v1164 = vld [vmem:[%s1 + $0xdd0] sm:$0xff]
  %v1165 = vld [vmem:[%s1 + $0xdd8] sm:$0xff]
  %v1166 = vld [vmem:[%s1 + $0xde0] sm:$0xff]
  %v1167 = vld [vmem:[%s1 + $0xde8] sm:$0xff]
  %v1168 = vld [vmem:[%s1 + $0xdf0] sm:$0xff]
  %v1169 = vld [vmem:[%s1 + $0xdf8] sm:$0xff]
  %v1170 = vld [vmem:[%s1 + $0xe00] sm:$0xff]
  %v1171 = vld [vmem:[%s1 + $0xe08] sm:$0xff]
  %v1172 = vld [vmem:[%s1 + $0xe10] sm:$0xff]
  %v1173 = vld [vmem:[%s1 + $0xe18] sm:$0xff]
  %v1174 = vld [vmem:[%s1 + $0xe20] sm:$0xff]
  %v1175 = vld [vmem:[%s1 + $0xe28] sm:$0xff]
  %v1176 = vld [vmem:[%s1 + $0xe30] sm:$0xff]
  %v1177 = vld [vmem:[%s1 + $0xe38] sm:$0xff]
  %v1178 = vld [vmem:[%s1 + $0xe40] sm:$0xff]
  %v1179 = vld [vmem:[%s1 + $0xe48] sm:$0xff]
  %v1180 = vld [vmem:[%s1 + $0xe50] sm:$0xff]
  %v1181 = vld [vmem:[%s1 + $0xe58] sm:$0xff]
  %v1182 = vld [vmem:[%s1 + $0xe60] sm:$0xff]
  %v1183 = vld [vmem:[%s1 + $0xe68] sm:$0xff]
  %v1184 = vld [vmem:[%s1 + $0xe70] sm:$0xff]
  %v1185 = vld [vmem:[%s1 + $0xe78] sm:$0xff]
  %v1186 = vld [vmem:[%s1 + $0xe80] sm:$0xff]
  %v1187 = vld [vmem:[%s1 + $0xe88] sm:$0xff]
  %v1188 = vld [vmem:[%s1 + $0xe90] sm:$0xff]
  %v1189 = vld [vmem:[%s1 + $0xe98] sm:$0xff]
  %v1190 = vld [vmem:[%s1 + $0xea0] sm:$0xff]
  %v1191 = vld [vmem:[%s1 + $0xea8] sm:$0xff]
  %v1192 = vld [vmem:[%s1 + $0xeb0] sm:$0xff]
  %v1193 = vld [vmem:[%s1 + $0xeb8] sm:$0xff]
  %v1194 = vld [vmem:[%s1 + $0xec0] sm:$0xff]
  %v1195 = vld [vmem:[%s1 + $0xec8] sm:$0xff]
  %v1196 = vld [vmem:[%s1 + $0xed0] sm:$0xff]
  %v1197 = vld [vmem:[%s1 + $0xed8] sm:$0xff]
  %v1198 = vld [vmem:[%s1 + $0xee0] sm:$0xff]
  %v1199 = vld [vmem:[%s1 + $0xee8] sm:$0xff]
  %v1200 = vld [vmem:[%s1 + $0xef0] sm:$0xff]
  %v1201 = vld [vmem:[%s1 + $0xef8] sm:$0xff]
  %v1202 = vld [vmem:[%s1 + $0xf00] sm:$0xff]
  %v1203 = vld [vmem:[%s1 + $0xf08] sm:$0xff]
  %v1204 = vld [vmem:[%s1 + $0xf10] sm:$0xff]
  %v1205 = vld [vmem:[%s1 + $0xf18] sm:$0xff]
  %v1206 = vld [vmem:[%s1 + $0xf20] sm:$0xff]
  %v1207 = vld [vmem:[%s1 + $0xf28] sm:$0xff]
  %v1208 = vld [vmem:[%s1 + $0xf30] sm:$0xff]
  %v1209 = vld [vmem:[%s1 + $0xf38] sm:$0xff]
  %v1210 = vld [vmem:[%s1 + $0xf40] sm:$0xff]
  %v1211 = vld [vmem:[%s1 + $0xf48] sm:$0xff]
  %v1212 = vld [vmem:[%s1 + $0xf50] sm:$0xff]
  %v1213 = vld [vmem:[%s1 + $0xf58] sm:$0xff]
  %v1214 = vld [vmem:[%s1 + $0xf60] sm:$0xff]
  %v1215 = vld [vmem:[%s1 + $0xf68] sm:$0xff]
  %v1216 = vld [vmem:[%s1 + $0xf70] sm:$0xff]
  %v1217 = vld [vmem:[%s1 + $0xf78] sm:$0xff]
  %v1218 = vld [vmem:[%s1 + $0xf80] sm:$0xff]
  %v1219 = vld [vmem:[%s1 + $0xf88] sm:$0xff]
  %v1220 = vld [vmem:[%s1 + $0xf90] sm:$0xff]
  %v1221 = vld [vmem:[%s1 + $0xf98] sm:$0xff]
  %v1222 = vld [vmem:[%s1 + $0xfa0] sm:$0xff]
  %v1223 = vld [vmem:[%s1 + $0xfa8] sm:$0xff]
  %v1224 = vld [vmem:[%s1 + $0xfb0] sm:$0xff]
  %v1225 = vld [vmem:[%s1 + $0xfb8] sm:$0xff]
  %v1226 = vld [vmem:[%s1 + $0xfc0] sm:$0xff]
  %v1227 = vld [vmem:[%s1 + $0xfc8] sm:$0xff]
  %v1228 = vld [vmem:[%s1 + $0xfd0] sm:$0xff]
  %v1229 = vld [vmem:[%s1 + $0xfd8] sm:$0xff]
  %v1230 = vld [vmem:[%s1 + $0xfe0] sm:$0xff]
  %v1231 = vld [vmem:[%s1 + $0xfe8] sm:$0xff]
  %v1232 = vld [vmem:[%s1 + $0xff0] sm:$0xff]
  %v1233 = vld [vmem:[%s1 + $0xff8] sm:$0xff]
  %v1234 = vld [vmem:[%s1 + $0x1000] sm:$0xff]
  %v1235 = vld [vmem:[%s1 + $0x1008] sm:$0xff]
  %v1236 = vld [vmem:[%s1 + $0x1010] sm:$0xff]
  %v1237 = vld [vmem:[%s1 + $0x1018] sm:$0xff]
  %v1238 = vld [vmem:[%s1 + $0x1020] sm:$0xff]
  %v1239 = vld [vmem:[%s1 + $0x1028] sm:$0xff]
  %v1240 = vld [vmem:[%s1 + $0x1030] sm:$0xff]
  %v1241 = vld [vmem:[%s1 + $0x1038] sm:$0xff]
  %v1242 = vld [vmem:[%s1 + $0x1040] sm:$0xff]
  %v1243 = vld [vmem:[%s1 + $0x1048] sm:$0xff]
  %v1244 = vld [vmem:[%s1 + $0x1050] sm:$0xff]
  %v1245 = vld [vmem:[%s1 + $0x1058] sm:$0xff]
  %v1246 = vld [vmem:[%s1 + $0x1060] sm:$0xff]
  %v1247 = vld [vmem:[%s1 + $0x1068] sm:$0xff]
  %v1248 = vld [vmem:[%s1 + $0x1070] sm:$0xff]
  %v1249 = vld [vmem:[%s1 + $0x1078] sm:$0xff]
  %v1250 = vld [vmem:[%s1 + $0x1080] sm:$0xff]
  %v1251 = vld [vmem:[%s1 + $0x1088] sm:$0xff]
  %v1252 = vld [vmem:[%s1 + $0x1090] sm:$0xff]
  %v1253 = vld [vmem:[%s1 + $0x1098] sm:$0xff]
  %v1254 = vld [vmem:[%s1 + $0x10a0] sm:$0xff]
  %v1255 = vld [vmem:[%s1 + $0x10a8] sm:$0xff]
  %v1256 = vld [vmem:[%s1 + $0x10b0] sm:$0xff]
  %v1257 = vld [vmem:[%s1 + $0x10b8] sm:$0xff]
  %v1258 = vld [vmem:[%s1 + $0x10c0] sm:$0xff]
  %v1259 = vld [vmem:[%s1 + $0x10c8] sm:$0xff]
  %v1260 = vld [vmem:[%s1 + $0x10d0] sm:$0xff]
  %v1261 = vld [vmem:[%s1 + $0x10d8] sm:$0xff]
  %v1262 = vld [vmem:[%s1 + $0x10e0] sm:$0xff]
  %v1263 = vld [vmem:[%s1 + $0x10e8] sm:$0xff]
  %v1264 = vld [vmem:[%s1 + $0x10f0] sm:$0xff]
  %v1265 = vld [vmem:[%s1 + $0x10f8] sm:$0xff]
  %v1266 = vld [vmem:[%s1 + $0x1100] sm:$0xff]
  %v1267 = vld [vmem:[%s1 + $0x1108] sm:$0xff]
  %v1268 = vld [vmem:[%s1 + $0x1110] sm:$0xff]
  %v1269 = vld [vmem:[%s1 + $0x1118] sm:$0xff]
  %v1270 = vld [vmem:[%s1 + $0x1120] sm:$0xff]
  %v1271 = vld [vmem:[%s1 + $0x1128] sm:$0xff]
  %v1272 = vld [vmem:[%s1 + $0x1130] sm:$0xff]
  %v1273 = vld [vmem:[%s1 + $0x1138] sm:$0xff]
  %v1274 = vld [vmem:[%s1 + $0x1140] sm:$0xff]
  %v1275 = vld [vmem:[%s1 + $0x1148] sm:$0xff]
  %v1276 = vld [vmem:[%s1 + $0x1150] sm:$0xff]
  %v1277 = vld [vmem:[%s1 + $0x1158] sm:$0xff]
  %v1278 = vld [vmem:[%s1 + $0x1160] sm:$0xff]
  %v1279 = vld [vmem:[%s1 + $0x1168] sm:$0xff]
  %v1280 = vld [vmem:[%s1 + $0x1170] sm:$0xff]
  %v1281 = vld [vmem:[%s1 + $0x1178] sm:$0xff]
  %v1282 = vld [vmem:[%s1 + $0x1180] sm:$0xff]
  %v1283 = vld [vmem:[%s1 + $0x1188] sm:$0xff]
  %v1284 = vld [vmem:[%s1 + $0x1190] sm:$0xff]
  %v1285 = vld [vmem:[%s1 + $0x1198] sm:$0xff]
  %v1286 = vld [vmem:[%s1 + $0x11a0] sm:$0xff]
  %v1287 = vld [vmem:[%s1 + $0x11a8] sm:$0xff]
  %v1288 = vld [vmem:[%s1 + $0x11b0] sm:$0xff]
  %v1289 = vld [vmem:[%s1 + $0x11b8] sm:$0xff]
  %v1290 = vld [vmem:[%s1 + $0x11c0] sm:$0xff]
  %v1291 = vld [vmem:[%s1 + $0x11c8] sm:$0xff]
  %v1292 = vld [vmem:[%s1 + $0x11d0] sm:$0xff]
  %v1293 = vld [vmem:[%s1 + $0x11d8] sm:$0xff]
  %v1294 = vld [vmem:[%s1 + $0x11e0] sm:$0xff]
  %v1295 = vld [vmem:[%s1 + $0x11e8] sm:$0xff]
  %v1296 = vld [vmem:[%s1 + $0x11f0] sm:$0xff]
  %v1297 = vld [vmem:[%s1 + $0x11f8] sm:$0xff]
  %v1298 = vld [vmem:[%s1 + $0x1200] sm:$0xff]
  %v1299 = vld [vmem:[%s1 + $0x1208] sm:$0xff]
  %v1300 = vld [vmem:[%s1 + $0x1210] sm:$0xff]
  %v1301 = vld [vmem:[%s1 + $0x1218] sm:$0xff]
  %v1302 = vld [vmem:[%s1 + $0x1220] sm:$0xff]
  %v1303 = vld [vmem:[%s1 + $0x1228] sm:$0xff]
  %v1304 = vld [vmem:[%s1 + $0x1230] sm:$0xff]
  %v1305 = vld [vmem:[%s1 + $0x1238] sm:$0xff]
  %v1306 = vld [vmem:[%s1 + $0x1240] sm:$0xff]
  %v1307 = vld [vmem:[%s1 + $0x1248] sm:$0xff]
  %v1308 = vld [vmem:[%s1 + $0x1250] sm:$0xff]
  %v1309 = vld [vmem:[%s1 + $0x1258] sm:$0xff]
  %v1310 = vld [vmem:[%s1 + $0x1260] sm:$0xff]
  %v1311 = vld [vmem:[%s1 + $0x1268] sm:$0xff]
  %v1312 = vld [vmem:[%s1 + $0x1270] sm:$0xff]
  %v1313 = vld [vmem:[%s1 + $0x1278] sm:$0xff]
  %v1314 = vld [vmem:[%s1 + $0x1280] sm:$0xff]
  %v1315 = vld [vmem:[%s1 + $0x1288] sm:$0xff]
  %v1316 = vld [vmem:[%s1 + $0x1290] sm:$0xff]
  %v1317 = vld [vmem:[%s1 + $0x1298] sm:$0xff]
  %v1318 = vld [vmem:[%s1 + $0x12a0] sm:$0xff]
  %v1319 = vld [vmem:[%s1 + $0x12a8] sm:$0xff]
  %v1320 = vld [vmem:[%s1 + $0x12b0] sm:$0xff]
  %v1321 = vld [vmem:[%s1 + $0x12b8] sm:$0xff]
  %v1322 = vld [vmem:[%s1 + $0x12c0] sm:$0xff]
  %v1323 = vld [vmem:[%s1 + $0x12c8] sm:$0xff]
  %v1324 = vld [vmem:[%s1 + $0x12d0] sm:$0xff]
  %v1325 = vld [vmem:[%s1 + $0x12d8] sm:$0xff]
  %v1326 = vld [vmem:[%s1 + $0x12e0] sm:$0xff]
  %v1327 = vld [vmem:[%s1 + $0x12e8] sm:$0xff]
  %v1328 = vld [vmem:[%s1 + $0x12f0] sm:$0xff]
  %v1329 = vld [vmem:[%s1 + $0x12f8] sm:$0xff]
  %v1330 = vld [vmem:[%s1 + $0x1300] sm:$0xff]
  %v1331 = vld [vmem:[%s1 + $0x1308] sm:$0xff]
  %v1332 = vld [vmem:[%s1 + $0x1310] sm:$0xff]
  %v1333 = vld [vmem:[%s1 + $0x1318] sm:$0xff]
  %v1334 = vld [vmem:[%s1 + $0x1320] sm:$0xff]
  %v1335 = vld [vmem:[%s1 + $0x1328] sm:$0xff]
  %v1336 = vld [vmem:[%s1 + $0x1330] sm:$0xff]
  %v1337 = vld [vmem:[%s1 + $0x1338] sm:$0xff]
  %v1338 = vld [vmem:[%s1 + $0x1340] sm:$0xff]
  %v1339 = vld [vmem:[%s1 + $0x1348] sm:$0xff]
  %v1340 = vld [vmem:[%s1 + $0x1350] sm:$0xff]
  %v1341 = vld [vmem:[%s1 + $0x1358] sm:$0xff]
  %v1342 = vld [vmem:[%s1 + $0x1360] sm:$0xff]
  %v1343 = vld [vmem:[%s1 + $0x1368] sm:$0xff]
  %v1344 = vld [vmem:[%s1 + $0x1370] sm:$0xff]
  %v1345 = vld [vmem:[%s1 + $0x1378] sm:$0xff]
  %v1346 = vld [vmem:[%s1 + $0x1380] sm:$0xff]
  %v1347 = vld [vmem:[%s1 + $0x1388] sm:$0xff]
  %v1348 = vld [vmem:[%s1 + $0x1390] sm:$0xff]
  %v1349 = vld [vmem:[%s1 + $0x1398] sm:$0xff]
  %v1350 = vld [vmem:[%s1 + $0x13a0] sm:$0xff]
  %v1351 = vld [vmem:[%s1 + $0x13a8] sm:$0xff]
  %v1352 = vld [vmem:[%s1 + $0x13b0] sm:$0xff]
  %v1353 = vld [vmem:[%s1 + $0x13b8] sm:$0xff]
  %v1354 = vld [vmem:[%s1 + $0x13c0] sm:$0xff]
  %v1355 = vld [vmem:[%s1 + $0x13c8] sm:$0xff]
  %v1356 = vld [vmem:[%s1 + $0x13d0] sm:$0xff]
  %v1357 = vld [vmem:[%s1 + $0x13d8] sm:$0xff]
  %v1358 = vld [vmem:[%s1 + $0x13e0] sm:$0xff]
  %v1359 = vld [vmem:[%s1 + $0x13e8] sm:$0xff]
  %v1360 = vld [vmem:[%s1 + $0x13f0] sm:$0xff]
  %v1361 = vld [vmem:[%s1 + $0x13f8] sm:$0xff]
  %v1362 = vld [vmem:[%s1 + $0x1400] sm:$0xff]
  %v1363 = vld [vmem:[%s1 + $0x1408] sm:$0xff]
  %v1364 = vld [vmem:[%s1 + $0x1410] sm:$0xff]
  %v1365 = vld [vmem:[%s1 + $0x1418] sm:$0xff]
  %v1366 = vld [vmem:[%s1 + $0x1420] sm:$0xff]
  %v1367 = vld [vmem:[%s1 + $0x1428] sm:$0xff]
  %v1368 = vld [vmem:[%s1 + $0x1430] sm:$0xff]
  %v1369 = vld [vmem:[%s1 + $0x1438] sm:$0xff]
  %v1370 = vld [vmem:[%s1 + $0x1440] sm:$0xff]
  %v1371 = vld [vmem:[%s1 + $0x1448] sm:$0xff]
  %v1372 = vld [vmem:[%s1 + $0x1450] sm:$0xff]
  %v1373 = vld [vmem:[%s1 + $0x1458] sm:$0xff]
  %v1374 = vld [vmem:[%s1 + $0x1460] sm:$0xff]
  %v1375 = vld [vmem:[%s1 + $0x1468] sm:$0xff]
  %v1376 = vld [vmem:[%s1 + $0x1470] sm:$0xff]
  %v1377 = vld [vmem:[%s1 + $0x1478] sm:$0xff]
  %v1378 = vld [vmem:[%s1 + $0x1480] sm:$0xff]
  %v1379 = vld [vmem:[%s1 + $0x1488] sm:$0xff]
  %v1380 = vld [vmem:[%s1 + $0x1490] sm:$0xff]
  %v1381 = vld [vmem:[%s1 + $0x1498] sm:$0xff]
  %v1382 = vld [vmem:[%s1 + $0x14a0] sm:$0xff]
  %v1383 = vld [vmem:[%s1 + $0x14a8] sm:$0xff]
  %v1384 = vld [vmem:[%s1 + $0x14b0] sm:$0xff]
  %v1385 = vld [vmem:[%s1 + $0x14b8] sm:$0xff]
  %v1386 = vld [vmem:[%s1 + $0x14c0] sm:$0xff]
  %v1387 = vld [vmem:[%s1 + $0x14c8] sm:$0xff]
  %v1388 = vld [vmem:[%s1 + $0x14d0] sm:$0xff]
  %v1389 = vld [vmem:[%s1 + $0x14d8] sm:$0xff]
  %v1390 = vld [vmem:[%s1 + $0x14e0] sm:$0xff]
  %v1391 = vld [vmem:[%s1 + $0x14e8] sm:$0xff]
  %v1392 = vld [vmem:[%s1 + $0x14f0] sm:$0xff]
  %v1393 = vld [vmem:[%s1 + $0x14f8] sm:$0xff]
  %v1394 = vld [vmem:[%s1 + $0x1500] sm:$0xff]
  %v1395 = vld [vmem:[%s1 + $0x1508] sm:$0xff]
  %v1396 = vld [vmem:[%s1 + $0x1510] sm:$0xff]
  %v1397 = vld [vmem:[%s1 + $0x1518] sm:$0xff]
  %v1398 = vld [vmem:[%s1 + $0x1520] sm:$0xff]
  %v1399 = vld [vmem:[%s1 + $0x1528] sm:$0xff]
  %v1400 = vld [vmem:[%s1 + $0x1530] sm:$0xff]
  %v1401 = vld [vmem:[%s1 + $0x1538] sm:$0xff]
  %v1402 = vld [vmem:[%s1 + $0x1540] sm:$0xff]
  %v1403 = vld [vmem:[%s1 + $0x1548] sm:$0xff]
  %v1404 = vld [vmem:[%s1 + $0x1550] sm:$0xff]
  %v1405 = vld [vmem:[%s1 + $0x1558] sm:$0xff]
  %v1406 = vld [vmem:[%s1 + $0x1560] sm:$0xff]
  %v1407 = vld [vmem:[%s1 + $0x1568] sm:$0xff]
  %v1408 = vld [vmem:[%s1 + $0x1570] sm:$0xff]
  %v1409 = vld [vmem:[%s1 + $0x1578] sm:$0xff]
  %v1410 = vld [vmem:[%s1 + $0x1580] sm:$0xff]
  %v1411 = vld [vmem:[%s1 + $0x1588] sm:$0xff]
  %v1412 = vld [vmem:[%s1 + $0x1590] sm:$0xff]
  %v1413 = vld [vmem:[%s1 + $0x1598] sm:$0xff]
  %v1414 = vld [vmem:[%s1 + $0x15a0] sm:$0xff]
  %v1415 = vld [vmem:[%s1 + $0x15a8] sm:$0xff]
  %v1416 = vld [vmem:[%s1 + $0x15b0] sm:$0xff]
  %v1417 = vld [vmem:[%s1 + $0x15b8] sm:$0xff]
  %v1418 = vld [vmem:[%s1 + $0x15c0] sm:$0xff]
  %v1419 = vld [vmem:[%s1 + $0x15c8] sm:$0xff]
  %v1420 = vld [vmem:[%s1 + $0x15d0] sm:$0xff]
  %v1421 = vld [vmem:[%s1 + $0x15d8] sm:$0xff]
  %v1422 = vld [vmem:[%s1 + $0x15e0] sm:$0xff]
  %v1423 = vld [vmem:[%s1 + $0x15e8] sm:$0xff]
  %v1424 = vld [vmem:[%s1 + $0x15f0] sm:$0xff]
  %v1425 = vld [vmem:[%s1 + $0x15f8] sm:$0xff]
  %v1426 = vld [vmem:[%s1 + $0x1600] sm:$0xff]
  %v1427 = vld [vmem:[%s1 + $0x1608] sm:$0xff]
  %v1428 = vld [vmem:[%s1 + $0x1610] sm:$0xff]
  %v1429 = vld [vmem:[%s1 + $0x1618] sm:$0xff]
  %v1430 = vld [vmem:[%s1 + $0x1620] sm:$0xff]
  %v1431 = vld [vmem:[%s1 + $0x1628] sm:$0xff]
  %v1432 = vld [vmem:[%s1 + $0x1630] sm:$0xff]
  %v1433 = vld [vmem:[%s1 + $0x1638] sm:$0xff]
  %v1434 = vld [vmem:[%s1 + $0x1640] sm:$0xff]
  %v1435 = vld [vmem:[%s1 + $0x1648] sm:$0xff]
  %v1436 = vld [vmem:[%s1 + $0x1650] sm:$0xff]
  %v1437 = vld [vmem:[%s1 + $0x1658] sm:$0xff]
  %v1438 = vld [vmem:[%s1 + $0x1660] sm:$0xff]
  %v1439 = vld [vmem:[%s1 + $0x1668] sm:$0xff]
  %v1440 = vld [vmem:[%s1 + $0x1670] sm:$0xff]
  %v1441 = vld [vmem:[%s1 + $0x1678] sm:$0xff]
  %v1442 = vld [vmem:[%s1 + $0x1680] sm:$0xff]
  %v1443 = vld [vmem:[%s1 + $0x1688] sm:$0xff]
  %v1444 = vld [vmem:[%s1 + $0x1690] sm:$0xff]
  %v1445 = vld [vmem:[%s1 + $0x1698] sm:$0xff]
  %v1446 = vld [vmem:[%s1 + $0x16a0] sm:$0xff]
  %v1447 = vld [vmem:[%s1 + $0x16a8] sm:$0xff]
  %v1448 = vld [vmem:[%s1 + $0x16b0] sm:$0xff]
  %v1449 = vld [vmem:[%s1 + $0x16b8] sm:$0xff]
  %v1450 = vld [vmem:[%s1 + $0x16c0] sm:$0xff]
  %v1451 = vld [vmem:[%s1 + $0x16c8] sm:$0xff]
  %v1452 = vld [vmem:[%s1 + $0x16d0] sm:$0xff]
  %v1453 = vld [vmem:[%s1 + $0x16d8] sm:$0xff]
  %v1454 = vld [vmem:[%s1 + $0x16e0] sm:$0xff]
  %v1455 = vld [vmem:[%s1 + $0x16e8] sm:$0xff]
  %v1456 = vld [vmem:[%s1 + $0x16f0] sm:$0xff]
  %v1457 = vld [vmem:[%s1 + $0x16f8] sm:$0xff]
  %v1458 = vld [vmem:[%s1 + $0x1700] sm:$0xff]
  %v1459 = vld [vmem:[%s1 + $0x1708] sm:$0xff]
  %v1460 = vld [vmem:[%s1 + $0x1710] sm:$0xff]
  %v1461 = vld [vmem:[%s1 + $0x1718] sm:$0xff]
  %v1462 = vld [vmem:[%s1 + $0x1720] sm:$0xff]
  %v1463 = vld [vmem:[%s1 + $0x1728] sm:$0xff]
  %v1464 = vld [vmem:[%s1 + $0x1730] sm:$0xff]
  %v1465 = vld [vmem:[%s1 + $0x1738] sm:$0xff]
  %v1466 = vld [vmem:[%s1 + $0x1740] sm:$0xff]
  %v1467 = vld [vmem:[%s1 + $0x1748] sm:$0xff]
  %v1468 = vld [vmem:[%s1 + $0x1750] sm:$0xff]
  %v1469 = vld [vmem:[%s1 + $0x1758] sm:$0xff]
  %v1470 = vld [vmem:[%s1 + $0x1760] sm:$0xff]
  %v1471 = vld [vmem:[%s1 + $0x1768] sm:$0xff]
  %v1472 = vld [vmem:[%s1 + $0x1770] sm:$0xff]
  %v1473 = vld [vmem:[%s1 + $0x1778] sm:$0xff]
  %v1474 = vld [vmem:[%s1 + $0x1780] sm:$0xff]
  %v1475 = vld [vmem:[%s1 + $0x1788] sm:$0xff]
  %v1476 = vld [vmem:[%s1 + $0x1790] sm:$0xff]
  %v1477 = vld [vmem:[%s1 + $0x1798] sm:$0xff]
  %v1478 = vld [vmem:[%s1 + $0x17a0] sm:$0xff]
  %v1479 = vld [vmem:[%s1 + $0x17a8] sm:$0xff]
  %v1480 = vld [vmem:[%s1 + $0x17b0] sm:$0xff]
  %v1481 = vld [vmem:[%s1 + $0x17b8] sm:$0xff]
  %v1482 = vld [vmem:[%s1 + $0x17c0] sm:$0xff]
  %v1483 = vld [vmem:[%s1 + $0x17c8] sm:$0xff]
  %v1484 = vld [vmem:[%s1 + $0x17d0] sm:$0xff]
  %v1485 = vld [vmem:[%s1 + $0x17d8] sm:$0xff]
  %v1486 = vld [vmem:[%s1 + $0x17e0] sm:$0xff]
  %v1487 = vld [vmem:[%s1 + $0x17e8] sm:$0xff]
  %v1488 = vld [vmem:[%s1 + $0x17f0] sm:$0xff]
  %v1489 = vld [vmem:[%s1 + $0x17f8] sm:$0xff]
  %v1490 = vld [vmem:[%s1 + $0x1800] sm:$0xff]
  %v1491 = vld [vmem:[%s1 + $0x1808] sm:$0xff]
  %v1492 = vld [vmem:[%s1 + $0x1810] sm:$0xff]
  %v1493 = vld [vmem:[%s1 + $0x1818] sm:$0xff]
  %v1494 = vld [vmem:[%s1 + $0x1820] sm:$0xff]
  %v1495 = vld [vmem:[%s1 + $0x1828] sm:$0xff]
  %v1496 = vld [vmem:[%s1 + $0x1830] sm:$0xff]
  %v1497 = vld [vmem:[%s1 + $0x1838] sm:$0xff]
  %v1498 = vld [vmem:[%s1 + $0x1840] sm:$0xff]
  %v1499 = vld [vmem:[%s1 + $0x1848] sm:$0xff]
  %v1500 = vld [vmem:[%s1 + $0x1850] sm:$0xff]
  %v1501 = vld [vmem:[%s1 + $0x1858] sm:$0xff]
  %v1502 = vld [vmem:[%s1 + $0x1860] sm:$0xff]
  %v1503 = vld [vmem:[%s1 + $0x1868] sm:$0xff]
  %v1504 = vld [vmem:[%s1 + $0x1870] sm:$0xff]
  %v1505 = vld [vmem:[%s1 + $0x1878] sm:$0xff]
  %v1506 = vld [vmem:[%s1 + $0x1880] sm:$0xff]
  %v1507 = vld [vmem:[%s1 + $0x1888] sm:$0xff]
  %v1508 = vld [vmem:[%s1 + $0x1890] sm:$0xff]
  %v1509 = vld [vmem:[%s1 + $0x1898] sm:$0xff]
  %v1510 = vld [vmem:[%s1 + $0x18a0] sm:$0xff]
  %v1511 = vld [vmem:[%s1 + $0x18a8] sm:$0xff]
  %v1512 = vld [vmem:[%s1 + $0x18b0] sm:$0xff]
  %v1513 = vld [vmem:[%s1 + $0x18b8] sm:$0xff]
  %v1514 = vld [vmem:[%s1 + $0x18c0] sm:$0xff]
  %v1515 = vld [vmem:[%s1 + $0x18c8] sm:$0xff]
  %v1516 = vld [vmem:[%s1 + $0x18d0] sm:$0xff]
  %v1517 = vld [vmem:[%s1 + $0x18d8] sm:$0xff]
  %v1518 = vld [vmem:[%s1 + $0x18e0] sm:$0xff]
  %v1519 = vld [vmem:[%s1 + $0x18e8] sm:$0xff]
  %v1520 = vld [vmem:[%s1 + $0x18f0] sm:$0xff]
  %v1521 = vld [vmem:[%s1 + $0x18f8] sm:$0xff]
  %v1522 = vld [vmem:[%s1 + $0x1900] sm:$0xff]
  %v1523 = vld [vmem:[%s1 + $0x1908] sm:$0xff]
  %v1524 = vld [vmem:[%s1 + $0x1910] sm:$0xff]
  %v1525 = vld [vmem:[%s1 + $0x1918] sm:$0xff]
  %v1526 = vld [vmem:[%s1 + $0x1920] sm:$0xff]
  %v1527 = vld [vmem:[%s1 + $0x1928] sm:$0xff]
  %v1528 = vld [vmem:[%s1 + $0x1930] sm:$0xff]
  %v1529 = vld [vmem:[%s1 + $0x1938] sm:$0xff]
  %v1530 = vld [vmem:[%s1 + $0x1940] sm:$0xff]
  %v1531 = vld [vmem:[%s1 + $0x1948] sm:$0xff]
  %v1532 = vld [vmem:[%s1 + $0x1950] sm:$0xff]
  %v1533 = vld [vmem:[%s1 + $0x1958] sm:$0xff]
  %v1534 = vld [vmem:[%s1 + $0x1960] sm:$0xff]
  %v1535 = vld [vmem:[%s1 + $0x1968] sm:$0xff]
  %v1536 = vld [vmem:[%s1 + $0x1970] sm:$0xff]
  %v1537 = vld [vmem:[%s1 + $0x1978] sm:$0xff]
  %v1538 = vld [vmem:[%s1 + $0x1980] sm:$0xff]
  %v1539 = vld [vmem:[%s1 + $0x1988] sm:$0xff]
  %v1540 = vld [vmem:[%s1 + $0x1990] sm:$0xff]
  %v1541 = vld [vmem:[%s1 + $0x1998] sm:$0xff]
  %v1542 = vld [vmem:[%s1 + $0x19a0] sm:$0xff]
  %v1543 = vld [vmem:[%s1 + $0x19a8] sm:$0xff]
  %v1544 = vld [vmem:[%s1 + $0x19b0] sm:$0xff]
  %v1545 = vld [vmem:[%s1 + $0x19b8] sm:$0xff]
  %v1546 = vld [vmem:[%s1 + $0x19c0] sm:$0xff]
  %v1547 = vld [vmem:[%s1 + $0x19c8] sm:$0xff]
  %v1548 = vld [vmem:[%s1 + $0x19d0] sm:$0xff]
  %v1549 = vld [vmem:[%s1 + $0x19d8] sm:$0xff]
  %v1550 = vld [vmem:[%s1 + $0x19e0] sm:$0xff]
  %v1551 = vld [vmem:[%s1 + $0x19e8] sm:$0xff]
  %v1552 = vld [vmem:[%s1 + $0x19f0] sm:$0xff]
  %v1553 = vld [vmem:[%s1 + $0x19f8] sm:$0xff]
  %v1554 = vld [vmem:[%s1 + $0x1a00] sm:$0xff]
  %v1555 = vld [vmem:[%s1 + $0x1a08] sm:$0xff]
  %v1556 = vld [vmem:[%s1 + $0x1a10] sm:$0xff]
  %v1557 = vld [vmem:[%s1 + $0x1a18] sm:$0xff]
  %v1558 = vld [vmem:[%s1 + $0x1a20] sm:$0xff]
  %v1559 = vld [vmem:[%s1 + $0x1a28] sm:$0xff]
  %v1560 = vld [vmem:[%s1 + $0x1a30] sm:$0xff]
  %v1561 = vld [vmem:[%s1 + $0x1a38] sm:$0xff]
  %v1562 = vld [vmem:[%s1 + $0x1a40] sm:$0xff]
  %v1563 = vld [vmem:[%s1 + $0x1a48] sm:$0xff]
  %v1564 = vld [vmem:[%s1 + $0x1a50] sm:$0xff]
  %v1565 = vld [vmem:[%s1 + $0x1a58] sm:$0xff]
  %v1566 = vld [vmem:[%s1 + $0x1a60] sm:$0xff]
  %v1567 = vld [vmem:[%s1 + $0x1a68] sm:$0xff]
  %v1568 = vld [vmem:[%s1 + $0x1a70] sm:$0xff]
  %v1569 = vld [vmem:[%s1 + $0x1a78] sm:$0xff]
  %v1570 = vld [vmem:[%s1 + $0x1a80] sm:$0xff]
  %v1571 = vld [vmem:[%s1 + $0x1a88] sm:$0xff]
  %v1572 = vld [vmem:[%s1 + $0x1a90] sm:$0xff]
  %v1573 = vld [vmem:[%s1 + $0x1a98] sm:$0xff]
  %v1574 = vld [vmem:[%s1 + $0x1aa0] sm:$0xff]
  %v1575 = vld [vmem:[%s1 + $0x1aa8] sm:$0xff]
  %v1576 = vld [vmem:[%s1 + $0x1ab0] sm:$0xff]
  %v1577 = vld [vmem:[%s1 + $0x1ab8] sm:$0xff]
  %v1578 = vld [vmem:[%s1 + $0x1ac0] sm:$0xff]
  %v1579 = vld [vmem:[%s1 + $0x1ac8] sm:$0xff]
  %v1580 = vld [vmem:[%s1 + $0x1ad0] sm:$0xff]
  %v1581 = vld [vmem:[%s1 + $0x1ad8] sm:$0xff]
  %v1582 = vld [vmem:[%s1 + $0x1ae0] sm:$0xff]
  %v1583 = vld [vmem:[%s1 + $0x1ae8] sm:$0xff]
  %v1584 = vld [vmem:[%s1 + $0x1af0] sm:$0xff]
  %v1585 = vld [vmem:[%s1 + $0x1af8] sm:$0xff]
  %v1586 = vld [vmem:[%s1 + $0x1b00] sm:$0xff]
  %v1587 = vld [vmem:[%s1 + $0x1b08] sm:$0xff]
  %v1588 = vld [vmem:[%s1 + $0x1b10] sm:$0xff]
  %v1589 = vld [vmem:[%s1 + $0x1b18] sm:$0xff]
  %v1590 = vld [vmem:[%s1 + $0x1b20] sm:$0xff]
  %v1591 = vld [vmem:[%s1 + $0x1b28] sm:$0xff]
  %v1592 = vld [vmem:[%s1 + $0x1b30] sm:$0xff]
  %v1593 = vld [vmem:[%s1 + $0x1b38] sm:$0xff]
  %v1594 = vld [vmem:[%s1 + $0x1b40] sm:$0xff]
  %v1595 = vld [vmem:[%s1 + $0x1b48] sm:$0xff]
  %v1596 = vld [vmem:[%s1 + $0x1b50] sm:$0xff]
  %v1597 = vld [vmem:[%s1 + $0x1b58] sm:$0xff]
  %v1598 = vld [vmem:[%s1 + $0x1b60] sm:$0xff]
  %v1599 = vld [vmem:[%s1 + $0x1b68] sm:$0xff]
  %v1600 = vld [vmem:[%s1 + $0x1b70] sm:$0xff]
  %v1601 = vld [vmem:[%s1 + $0x1b78] sm:$0xff]
  %v1602 = vld [vmem:[%s1 + $0x1b80] sm:$0xff]
  %v1603 = vld [vmem:[%s1 + $0x1b88] sm:$0xff]
  %v1604 = vld [vmem:[%s1 + $0x1b90] sm:$0xff]
  %v1605 = vld [vmem:[%s1 + $0x1b98] sm:$0xff]
  %v1606 = vld [vmem:[%s1 + $0x1ba0] sm:$0xff]
  %v1607 = vld [vmem:[%s1 + $0x1ba8] sm:$0xff]
  %v1608 = vld [vmem:[%s1 + $0x1bb0] sm:$0xff]
  %v1609 = vld [vmem:[%s1 + $0x1bb8] sm:$0xff]
  %v1610 = vld [vmem:[%s1 + $0x1bc0] sm:$0xff]
  %v1611 = vld [vmem:[%s1 + $0x1bc8] sm:$0xff]
  %v1612 = vld [vmem:[%s1 + $0x1bd0] sm:$0xff]
  %v1613 = vld [vmem:[%s1 + $0x1bd8] sm:$0xff]
  %v1614 = vld [vmem:[%s1 + $0x1be0] sm:$0xff]
  %v1615 = vld [vmem:[%s1 + $0x1be8] sm:$0xff]
  %v1616 = vld [vmem:[%s1 + $0x1bf0] sm:$0xff]
  %v1617 = vld [vmem:[%s1 + $0x1bf8] sm:$0xff]
  %v1618 = vld [vmem:[%s1 + $0x1c00] sm:$0xff]
  %v1619 = vld [vmem:[%s1 + $0x1c08] sm:$0xff]
  %v1620 = vld [vmem:[%s1 + $0x1c10] sm:$0xff]
  %v1621 = vld [vmem:[%s1 + $0x1c18] sm:$0xff]
  %v1622 = vld [vmem:[%s1 + $0x1c20] sm:$0xff]
  %v1623 = vld [vmem:[%s1 + $0x1c28] sm:$0xff]
  %v1624 = vld [vmem:[%s1 + $0x1c30] sm:$0xff]
  %v1625 = vld [vmem:[%s1 + $0x1c38] sm:$0xff]
  %v1626 = vld [vmem:[%s1 + $0x1c40] sm:$0xff]
  %v1627 = vld [vmem:[%s1 + $0x1c48] sm:$0xff]
  %v1628 = vld [vmem:[%s1 + $0x1c50] sm:$0xff]
  %v1629 = vld [vmem:[%s1 + $0x1c58] sm:$0xff]
  %v1630 = vld [vmem:[%s1 + $0x1c60] sm:$0xff]
  %v1631 = vld [vmem:[%s1 + $0x1c68] sm:$0xff]
  %v1632 = vld [vmem:[%s1 + $0x1c70] sm:$0xff]
  %v1633 = vld [vmem:[%s1 + $0x1c78] sm:$0xff]
  %v1634 = vld [vmem:[%s1 + $0x1c80] sm:$0xff]
  %v1635 = vld [vmem:[%s1 + $0x1c88] sm:$0xff]
  %v1636 = vld [vmem:[%s1 + $0x1c90] sm:$0xff]
  %v1637 = vld [vmem:[%s1 + $0x1c98] sm:$0xff]
  %v1638 = vld [vmem:[%s1 + $0x1ca0] sm:$0xff]
  %v1639 = vld [vmem:[%s1 + $0x1ca8] sm:$0xff]
  %v1640 = vld [vmem:[%s1 + $0x1cb0] sm:$0xff]
  %v1641 = vld [vmem:[%s1 + $0x1cb8] sm:$0xff]
  %v1642 = vld [vmem:[%s1 + $0x1cc0] sm:$0xff]
  %v1643 = vld [vmem:[%s1 + $0x1cc8] sm:$0xff]
  %v1644 = vld [vmem:[%s1 + $0x1cd0] sm:$0xff]
  %v1645 = vld [vmem:[%s1 + $0x1cd8] sm:$0xff]
  %v1646 = vld [vmem:[%s1 + $0x1ce0] sm:$0xff]
  %v1647 = vld [vmem:[%s1 + $0x1ce8] sm:$0xff]
  %v1648 = vld [vmem:[%s1 + $0x1cf0] sm:$0xff]
  %v1649 = vld [vmem:[%s1 + $0x1cf8] sm:$0xff]
  %v1650 = vld [vmem:[%s1 + $0x1d00] sm:$0xff]
  %v1651 = vld [vmem:[%s1 + $0x1d08] sm:$0xff]
  %v1652 = vld [vmem:[%s1 + $0x1d10] sm:$0xff]
  %v1653 = vld [vmem:[%s1 + $0x1d18] sm:$0xff]
  %v1654 = vld [vmem:[%s1 + $0x1d20] sm:$0xff]
  %v1655 = vld [vmem:[%s1 + $0x1d28] sm:$0xff]
  %v1656 = vld [vmem:[%s1 + $0x1d30] sm:$0xff]
  %v1657 = vld [vmem:[%s1 + $0x1d38] sm:$0xff]
  %v1658 = vld [vmem:[%s1 + $0x1d40] sm:$0xff]
  %v1659 = vld [vmem:[%s1 + $0x1d48] sm:$0xff]
  %v1660 = vld [vmem:[%s1 + $0x1d50] sm:$0xff]
  %v1661 = vld [vmem:[%s1 + $0x1d58] sm:$0xff]
  %v1662 = vld [vmem:[%s1 + $0x1d60] sm:$0xff]
  %v1663 = vld [vmem:[%s1 + $0x1d68] sm:$0xff]
  %v1664 = vld [vmem:[%s1 + $0x1d70] sm:$0xff]
  %v1665 = vld [vmem:[%s1 + $0x1d78] sm:$0xff]
  %v1666 = vld [vmem:[%s1 + $0x1d80] sm:$0xff]
  %v1667 = vld [vmem:[%s1 + $0x1d88] sm:$0xff]
  %v1668 = vld [vmem:[%s1 + $0x1d90] sm:$0xff]
  %v1669 = vld [vmem:[%s1 + $0x1d98] sm:$0xff]
  %v1670 = vld [vmem:[%s1 + $0x1da0] sm:$0xff]
  %v1671 = vld [vmem:[%s1 + $0x1da8] sm:$0xff]
  %v1672 = vld [vmem:[%s1 + $0x1db0] sm:$0xff]
  %v1673 = vld [vmem:[%s1 + $0x1db8] sm:$0xff]
  %v1674 = vld [vmem:[%s1 + $0x1dc0] sm:$0xff]
  %v1675 = vld [vmem:[%s1 + $0x1dc8] sm:$0xff]
  %v1676 = vld [vmem:[%s1 + $0x1dd0] sm:$0xff]
  %v1677 = vld [vmem:[%s1 + $0x1dd8] sm:$0xff]
  %v1678 = vld [vmem:[%s1 + $0x1de0] sm:$0xff]
  %v1679 = vld [vmem:[%s1 + $0x1de8] sm:$0xff]
  %v1680 = vld [vmem:[%s1 + $0x1df0] sm:$0xff]
  %v1681 = vld [vmem:[%s1 + $0x1df8] sm:$0xff]
  %v1682 = vld [vmem:[%s1 + $0x1e00] sm:$0xff]
  %v1683 = vld [vmem:[%s1 + $0x1e08] sm:$0xff]
  %v1684 = vld [vmem:[%s1 + $0x1e10] sm:$0xff]
  %v1685 = vld [vmem:[%s1 + $0x1e18] sm:$0xff]
  %v1686 = vld [vmem:[%s1 + $0x1e20] sm:$0xff]
  %v1687 = vld [vmem:[%s1 + $0x1e28] sm:$0xff]
  %v1688 = vld [vmem:[%s1 + $0x1e30] sm:$0xff]
  %v1689 = vld [vmem:[%s1 + $0x1e38] sm:$0xff]
  %v1690 = vld [vmem:[%s1 + $0x1e40] sm:$0xff]
  %v1691 = vld [vmem:[%s1 + $0x1e48] sm:$0xff]
  %v1692 = vld [vmem:[%s1 + $0x1e50] sm:$0xff]
  %v1693 = vld [vmem:[%s1 + $0x1e58] sm:$0xff]
  %v1694 = vld [vmem:[%s1 + $0x1e60] sm:$0xff]
  %v1695 = vld [vmem:[%s1 + $0x1e68] sm:$0xff]
  %v1696 = vld [vmem:[%s1 + $0x1e70] sm:$0xff]
  %v1697 = vld [vmem:[%s1 + $0x1e78] sm:$0xff]
  %v1698 = vld [vmem:[%s1 + $0x1e80] sm:$0xff]
  %v1699 = vld [vmem:[%s1 + $0x1e88] sm:$0xff]
  %v1700 = vld [vmem:[%s1 + $0x1e90] sm:$0xff]
  %v1701 = vld [vmem:[%s1 + $0x1e98] sm:$0xff]
  %v1702 = vld [vmem:[%s1 + $0x1ea0] sm:$0xff]
  %v1703 = vld [vmem:[%s1 + $0x1ea8] sm:$0xff]
  %v1704 = vld [vmem:[%s1 + $0x1eb0] sm:$0xff]
  %v1705 = vld [vmem:[%s1 + $0x1eb8] sm:$0xff]
  %v1706 = vld [vmem:[%s1 + $0x1ec0] sm:$0xff]
  %v1707 = vld [vmem:[%s1 + $0x1ec8] sm:$0xff]
  %v1708 = vld [vmem:[%s1 + $0x1ed0] sm:$0xff]
  %v1709 = vld [vmem:[%s1 + $0x1ed8] sm:$0xff]
  %v1710 = vld [vmem:[%s1 + $0x1ee0] sm:$0xff]
  %v1711 = vld [vmem:[%s1 + $0x1ee8] sm:$0xff]
  %v1712 = vld [vmem:[%s1 + $0x1ef0] sm:$0xff]
  %v1713 = vld [vmem:[%s1 + $0x1ef8] sm:$0xff]
  %v1714 = vld [vmem:[%s1 + $0x1f00] sm:$0xff]
  %v1715 = vld [vmem:[%s1 + $0x1f08] sm:$0xff]
  %v1716 = vld [vmem:[%s1 + $0x1f10] sm:$0xff]
  %v1717 = vld [vmem:[%s1 + $0x1f18] sm:$0xff]
  %v1718 = vld [vmem:[%s1 + $0x1f20] sm:$0xff]
  %v1719 = vld [vmem:[%s1 + $0x1f28] sm:$0xff]
  %v1720 = vld [vmem:[%s1 + $0x1f30] sm:$0xff]
  %v1721 = vld [vmem:[%s1 + $0x1f38] sm:$0xff]
  %v1722 = vld [vmem:[%s1 + $0x1f40] sm:$0xff]
  %v1723 = vld [vmem:[%s1 + $0x1f48] sm:$0xff]
  %v1724 = vld [vmem:[%s1 + $0x1f50] sm:$0xff]
  %v1725 = vld [vmem:[%s1 + $0x1f58] sm:$0xff]
  %v1726 = vld [vmem:[%s1 + $0x1f60] sm:$0xff]
  %v1727 = vld [vmem:[%s1 + $0x1f68] sm:$0xff]
  %v1728 = vld [vmem:[%s1 + $0x1f70] sm:$0xff]
  %v1729 = vld [vmem:[%s1 + $0x1f78] sm:$0xff]
  %v1730 = vld [vmem:[%s1 + $0x1f80] sm:$0xff]
  %v1731 = vld [vmem:[%s1 + $0x1f88] sm:$0xff]
  %v1732 = vld [vmem:[%s1 + $0x1f90] sm:$0xff]
  %v1733 = vld [vmem:[%s1 + $0x1f98] sm:$0xff]
  %v1734 = vld [vmem:[%s1 + $0x1fa0] sm:$0xff]
  %v1735 = vld [vmem:[%s1 + $0x1fa8] sm:$0xff]
  %v1736 = vld [vmem:[%s1 + $0x1fb0] sm:$0xff]
  %v1737 = vld [vmem:[%s1 + $0x1fb8] sm:$0xff]
  %v1738 = vld [vmem:[%s1 + $0x1fc0] sm:$0xff]
  %v1739 = vld [vmem:[%s1 + $0x1fc8] sm:$0xff]
  %v1740 = vld [vmem:[%s1 + $0x1fd0] sm:$0xff]
  %v1741 = vld [vmem:[%s1 + $0x1fd8] sm:$0xff]
  %v1742 = vld [vmem:[%s1 + $0x1fe0] sm:$0xff]
  %v1743 = vld [vmem:[%s1 + $0x1fe8] sm:$0xff]
  %v1744 = vld [vmem:[%s1 + $0x1ff0] sm:$0xff]
  %v1745 = vld [vmem:[%s1 + $0x1ff8] sm:$0xff]
  %v1746 = vld [vmem:[%s1 + $0x2000] sm:$0xff]
  %v1747 = vld [vmem:[%s1 + $0x2008] sm:$0xff]
  %v1748 = vld [vmem:[%s1 + $0x2010] sm:$0xff]
  %v1749 = vld [vmem:[%s1 + $0x2018] sm:$0xff]
  %v1750 = vld [vmem:[%s1 + $0x2020] sm:$0xff]
  %v1751 = vld [vmem:[%s1 + $0x2028] sm:$0xff]
  %v1752 = vld [vmem:[%s1 + $0x2030] sm:$0xff]
  %v1753 = vld [vmem:[%s1 + $0x2038] sm:$0xff]
  %v1754 = vld [vmem:[%s1 + $0x2040] sm:$0xff]
  %v1755 = vld [vmem:[%s1 + $0x2048] sm:$0xff]
  %v1756 = vld [vmem:[%s1 + $0x2050] sm:$0xff]
  %v1757 = vld [vmem:[%s1 + $0x2058] sm:$0xff]
  %v1758 = vld [vmem:[%s1 + $0x2060] sm:$0xff]
  %v1759 = vld [vmem:[%s1 + $0x2068] sm:$0xff]
  %v1760 = vld [vmem:[%s1 + $0x2070] sm:$0xff]
  %v1761 = vld [vmem:[%s1 + $0x2078] sm:$0xff]
  %v1762 = vld [vmem:[%s1 + $0x2080] sm:$0xff]
  %v1763 = vld [vmem:[%s1 + $0x2088] sm:$0xff]
  %v1764 = vld [vmem:[%s1 + $0x2090] sm:$0xff]
  %v1765 = vld [vmem:[%s1 + $0x2098] sm:$0xff]
  %v1766 = vld [vmem:[%s1 + $0x20a0] sm:$0xff]
  %v1767 = vld [vmem:[%s1 + $0x20a8] sm:$0xff]
  %v1768 = vld [vmem:[%s1 + $0x20b0] sm:$0xff]
  %v1769 = vld [vmem:[%s1 + $0x20b8] sm:$0xff]
  %v1770 = vld [vmem:[%s1 + $0x20c0] sm:$0xff]
  %v1771 = vld [vmem:[%s1 + $0x20c8] sm:$0xff]
  %v1772 = vld [vmem:[%s1 + $0x20d0] sm:$0xff]
  %v1773 = vld [vmem:[%s1 + $0x20d8] sm:$0xff]
  %v1774 = vld [vmem:[%s1 + $0x20e0] sm:$0xff]
  %v1775 = vld [vmem:[%s1 + $0x20e8] sm:$0xff]
  %v1776 = vld [vmem:[%s1 + $0x20f0] sm:$0xff]
  %v1777 = vld [vmem:[%s1 + $0x20f8] sm:$0xff]
  %v1778 = vld [vmem:[%s1 + $0x2100] sm:$0xff]
  %v1779 = vld [vmem:[%s1 + $0x2108] sm:$0xff]
  %v1780 = vld [vmem:[%s1 + $0x2110] sm:$0xff]
  %v1781 = vld [vmem:[%s1 + $0x2118] sm:$0xff]
  %v1782 = vld [vmem:[%s1 + $0x2120] sm:$0xff]
  %v1783 = vld [vmem:[%s1 + $0x2128] sm:$0xff]
  %v1784 = vld [vmem:[%s1 + $0x2130] sm:$0xff]
  %v1785 = vld [vmem:[%s1 + $0x2138] sm:$0xff]
  %v1786 = vld [vmem:[%s1 + $0x2140] sm:$0xff]
  %v1787 = vld [vmem:[%s1 + $0x2148] sm:$0xff]
  %v1788 = vld [vmem:[%s1 + $0x2150] sm:$0xff]
  %v1789 = vld [vmem:[%s1 + $0x2158] sm:$0xff]
  %v1790 = vld [vmem:[%s1 + $0x2160] sm:$0xff]
  %v1791 = vld [vmem:[%s1 + $0x2168] sm:$0xff]
  %v1792 = vld [vmem:[%s1 + $0x2170] sm:$0xff]
  %v1793 = vld [vmem:[%s1 + $0x2178] sm:$0xff]
  %v1794 = vld [vmem:[%s1 + $0x2180] sm:$0xff]
  %v1795 = vld [vmem:[%s1 + $0x2188] sm:$0xff]
  %v1796 = vld [vmem:[%s1 + $0x2190] sm:$0xff]
  %v1797 = vld [vmem:[%s1 + $0x2198] sm:$0xff]
  %v1798 = vld [vmem:[%s1 + $0x21a0] sm:$0xff]
  %v1799 = vld [vmem:[%s1 + $0x21a8] sm:$0xff]
  %v1800 = vld [vmem:[%s1 + $0x21b0] sm:$0xff]
  %v1801 = vld [vmem:[%s1 + $0x21b8] sm:$0xff]
  %v1802 = vld [vmem:[%s1 + $0x21c0] sm:$0xff]
  %v1803 = vld [vmem:[%s1 + $0x21c8] sm:$0xff]
  %v1804 = vld [vmem:[%s1 + $0x21d0] sm:$0xff]
  %v1805 = vld [vmem:[%s1 + $0x21d8] sm:$0xff]
  %v1806 = vld [vmem:[%s1 + $0x21e0] sm:$0xff]
  %v1807 = vld [vmem:[%s1 + $0x21e8] sm:$0xff]
  %v1808 = vld [vmem:[%s1 + $0x21f0] sm:$0xff]
  %v1809 = vld [vmem:[%s1 + $0x21f8] sm:$0xff]
  %v1810 = vld [vmem:[%s1 + $0x2200] sm:$0xff]
  %v1811 = vld [vmem:[%s1 + $0x2208] sm:$0xff]
  %v1812 = vld [vmem:[%s1 + $0x2210] sm:$0xff]
  %v1813 = vld [vmem:[%s1 + $0x2218] sm:$0xff]
  %v1814 = vld [vmem:[%s1 + $0x2220] sm:$0xff]
  %v1815 = vld [vmem:[%s1 + $0x2228] sm:$0xff]
  %v1816 = vld [vmem:[%s1 + $0x2230] sm:$0xff]
  %v1817 = vld [vmem:[%s1 + $0x2238] sm:$0xff]
  %v1818 = vld [vmem:[%s1 + $0x2240] sm:$0xff]
  %v1819 = vld [vmem:[%s1 + $0x2248] sm:$0xff]
  %v1820 = vld [vmem:[%s1 + $0x2250] sm:$0xff]
  %v1821 = vld [vmem:[%s1 + $0x2258] sm:$0xff]
  %v1822 = vld [vmem:[%s1 + $0x2260] sm:$0xff]
  %v1823 = vld [vmem:[%s1 + $0x2268] sm:$0xff]
  %v1824 = vld [vmem:[%s1 + $0x2270] sm:$0xff]
  %v1825 = vld [vmem:[%s1 + $0x2278] sm:$0xff]
  %v1826 = vld [vmem:[%s1 + $0x2280] sm:$0xff]
  %v1827 = vld [vmem:[%s1 + $0x2288] sm:$0xff]
  %v1828 = vld [vmem:[%s1 + $0x2290] sm:$0xff]
  %v1829 = vld [vmem:[%s1 + $0x2298] sm:$0xff]
  %v1830 = vld [vmem:[%s1 + $0x22a0] sm:$0xff]
  %v1831 = vld [vmem:[%s1 + $0x22a8] sm:$0xff]
  %v1832 = vld [vmem:[%s1 + $0x22b0] sm:$0xff]
  %v1833 = vld [vmem:[%s1 + $0x22b8] sm:$0xff]
  %v1834 = vld [vmem:[%s1 + $0x22c0] sm:$0xff]
  %v1835 = vld [vmem:[%s1 + $0x22c8] sm:$0xff]
  %v1836 = vld [vmem:[%s1 + $0x22d0] sm:$0xff]
  %v1837 = vld [vmem:[%s1 + $0x22d8] sm:$0xff]
  %v1838 = vld [vmem:[%s1 + $0x22e0] sm:$0xff]
  %v1839 = vld [vmem:[%s1 + $0x22e8] sm:$0xff]
  %v1840 = vld [vmem:[%s1 + $0x22f0] sm:$0xff]
  %v1841 = vld [vmem:[%s1 + $0x22f8] sm:$0xff]
  %v1842 = vld [vmem:[%s1 + $0x2300] sm:$0xff]
  %v1843 = vld [vmem:[%s1 + $0x2308] sm:$0xff]
  %v1844 = vld [vmem:[%s1 + $0x2310] sm:$0xff]
  %v1845 = vld [vmem:[%s1 + $0x2318] sm:$0xff]
  %v1846 = vld [vmem:[%s1 + $0x2320] sm:$0xff]
  %v1847 = vld [vmem:[%s1 + $0x2328] sm:$0xff]
  %v1848 = vld [vmem:[%s1 + $0x2330] sm:$0xff]
  %v1849 = vld [vmem:[%s1 + $0x2338] sm:$0xff]
  %v1850 = vld [vmem:[%s1 + $0x2340] sm:$0xff]
  %v1851 = vld [vmem:[%s1 + $0x2348] sm:$0xff]
  %v1852 = vld [vmem:[%s1 + $0x2350] sm:$0xff]
  %v1853 = vld [vmem:[%s1 + $0x2358] sm:$0xff]
  %v1854 = vld [vmem:[%s1 + $0x2360] sm:$0xff]
  %v1855 = vld [vmem:[%s1 + $0x2368] sm:$0xff]
  %v1856 = vld [vmem:[%s1 + $0x2370] sm:$0xff]
  %v1857 = vld [vmem:[%s1 + $0x2378] sm:$0xff]
  %v1858 = vld [vmem:[%s1 + $0x2380] sm:$0xff]
  %v1859 = vld [vmem:[%s1 + $0x2388] sm:$0xff]
  %v1860 = vld [vmem:[%s1 + $0x2390] sm:$0xff]
  %v1861 = vld [vmem:[%s1 + $0x2398] sm:$0xff]
  %v1862 = vld [vmem:[%s1 + $0x23a0] sm:$0xff]
  %v1863 = vld [vmem:[%s1 + $0x23a8] sm:$0xff]
  %v1864 = vld [vmem:[%s1 + $0x23b0] sm:$0xff]
  %v1865 = vld [vmem:[%s1 + $0x23b8] sm:$0xff]
  %v1866 = vld [vmem:[%s1 + $0x23c0] sm:$0xff]
  %v1867 = vld [vmem:[%s1 + $0x23c8] sm:$0xff]
  %v1868 = vld [vmem:[%s1 + $0x23d0] sm:$0xff]
  %v1869 = vld [vmem:[%s1 + $0x23d8] sm:$0xff]
  %v1870 = vld [vmem:[%s1 + $0x23e0] sm:$0xff]
  %v1871 = vld [vmem:[%s1 + $0x23e8] sm:$0xff]
  %v1872 = vld [vmem:[%s1 + $0x23f0] sm:$0xff]
  %v1873 = vld [vmem:[%s1 + $0x23f8] sm:$0xff]
  %v1874 = vld [vmem:[%s1 + $0x2400] sm:$0xff]
  %v1875 = vld [vmem:[%s1 + $0x2408] sm:$0xff]
  %v1876 = vld [vmem:[%s1 + $0x2410] sm:$0xff]
  %v1877 = vld [vmem:[%s1 + $0x2418] sm:$0xff]
  %v1878 = vld [vmem:[%s1 + $0x2420] sm:$0xff]
  %v1879 = vld [vmem:[%s1 + $0x2428] sm:$0xff]
  %v1880 = vld [vmem:[%s1 + $0x2430] sm:$0xff]
  %v1881 = vld [vmem:[%s1 + $0x2438] sm:$0xff]
  %v1882 = vld [vmem:[%s1 + $0x2440] sm:$0xff]
  %v1883 = vld [vmem:[%s1 + $0x2448] sm:$0xff]
  %v1884 = vld [vmem:[%s1 + $0x2450] sm:$0xff]
  %v1885 = vld [vmem:[%s1 + $0x2458] sm:$0xff]
  %v1886 = vld [vmem:[%s1 + $0x2460] sm:$0xff]
  %v1887 = vld [vmem:[%s1 + $0x2468] sm:$0xff]
  %v1888 = vld [vmem:[%s1 + $0x2470] sm:$0xff]
  %v1889 = vld [vmem:[%s1 + $0x2478] sm:$0xff]
  %v1890 = vld [vmem:[%s1 + $0x2480] sm:$0xff]
  %v1891 = vld [vmem:[%s1 + $0x2488] sm:$0xff]
  %v1892 = vld [vmem:[%s1 + $0x2490] sm:$0xff]
  %v1893 = vld [vmem:[%s1 + $0x2498] sm:$0xff]
  %v1894 = vld [vmem:[%s1 + $0x24a0] sm:$0xff]
  %v1895 = vld [vmem:[%s1 + $0x24a8] sm:$0xff]
  %v1896 = vld [vmem:[%s1 + $0x24b0] sm:$0xff]
  %v1897 = vld [vmem:[%s1 + $0x24b8] sm:$0xff]
  %v1898 = vld [vmem:[%s1 + $0x24c0] sm:$0xff]
  %v1899 = vld [vmem:[%s1 + $0x24c8] sm:$0xff]
  %v1900 = vld [vmem:[%s1 + $0x24d0] sm:$0xff]
  %v1901 = vld [vmem:[%s1 + $0x24d8] sm:$0xff]
  %v1902 = vld [vmem:[%s1 + $0x24e0] sm:$0xff]
  %v1903 = vld [vmem:[%s1 + $0x24e8] sm:$0xff]
  %v1904 = vld [vmem:[%s1 + $0x24f0] sm:$0xff]
  %v1905 = vld [vmem:[%s1 + $0x24f8] sm:$0xff]
  %v1906 = vld [vmem:[%s1 + $0x2500] sm:$0xff]
  %v1907 = vld [vmem:[%s1 + $0x2508] sm:$0xff]
  %v1908 = vld [vmem:[%s1 + $0x2510] sm:$0xff]
  %v1909 = vld [vmem:[%s1 + $0x2518] sm:$0xff]
  %v1910 = vld [vmem:[%s1 + $0x2520] sm:$0xff]
  %v1911 = vld [vmem:[%s1 + $0x2528] sm:$0xff]
  %v1912 = vld [vmem:[%s1 + $0x2530] sm:$0xff]
  %v1913 = vld [vmem:[%s1 + $0x2538] sm:$0xff]
  %v1914 = vld [vmem:[%s1 + $0x2540] sm:$0xff]
  %v1915 = vld [vmem:[%s1 + $0x2548] sm:$0xff]
  %v1916 = vld [vmem:[%s1 + $0x2550] sm:$0xff]
  %v1917 = vld [vmem:[%s1 + $0x2558] sm:$0xff]
  %v1918 = vld [vmem:[%s1 + $0x2560] sm:$0xff]
  %v1919 = vld [vmem:[%s1 + $0x2568] sm:$0xff]
  %v1920 = vld [vmem:[%s1 + $0x2570] sm:$0xff]
  %v1921 = vld [vmem:[%s1 + $0x2578] sm:$0xff]
  %v1922 = vld [vmem:[%s1 + $0x2580] sm:$0xff]
  %v1923 = vld [vmem:[%s1 + $0x2588] sm:$0xff]
  %v1924 = vld [vmem:[%s1 + $0x2590] sm:$0xff]
  %v1925 = vld [vmem:[%s1 + $0x2598] sm:$0xff]
  %v1926 = vld [vmem:[%s1 + $0x25a0] sm:$0xff]
  %v1927 = vld [vmem:[%s1 + $0x25a8] sm:$0xff]
  %v1928 = vld [vmem:[%s1 + $0x25b0] sm:$0xff]
  %v1929 = vld [vmem:[%s1 + $0x25b8] sm:$0xff]
  %v1930 = vld [vmem:[%s1 + $0x25c0] sm:$0xff]
  %v1931 = vld [vmem:[%s1 + $0x25c8] sm:$0xff]
  %v1932 = vld [vmem:[%s1 + $0x25d0] sm:$0xff]
  %v1933 = vld [vmem:[%s1 + $0x25d8] sm:$0xff]
  %v1934 = vld [vmem:[%s1 + $0x25e0] sm:$0xff]
  %v1935 = vld [vmem:[%s1 + $0x25e8] sm:$0xff]
  %v1936 = vld [vmem:[%s1 + $0x25f0] sm:$0xff]
  %v1937 = vld [vmem:[%s1 + $0x25f8] sm:$0xff]
  %v1938 = vld [vmem:[%s1 + $0x2600] sm:$0xff]
  %v1939 = vld [vmem:[%s1 + $0x2608] sm:$0xff]
  %v1940 = vld [vmem:[%s1 + $0x2610] sm:$0xff]
  %v1941 = vld [vmem:[%s1 + $0x2618] sm:$0xff]
  %v1942 = vld [vmem:[%s1 + $0x2620] sm:$0xff]
  %v1943 = vld [vmem:[%s1 + $0x2628] sm:$0xff]
  %v1944 = vld [vmem:[%s1 + $0x2630] sm:$0xff]
  %v1945 = vld [vmem:[%s1 + $0x2638] sm:$0xff]
  %v1946 = vld [vmem:[%s1 + $0x2640] sm:$0xff]
  %v1947 = vld [vmem:[%s1 + $0x2648] sm:$0xff]
  %v1948 = vld [vmem:[%s1 + $0x2650] sm:$0xff]
  %v1949 = vld [vmem:[%s1 + $0x2658] sm:$0xff]
  %v1950 = vld [vmem:[%s1 + $0x2660] sm:$0xff]
  %v1951 = vld [vmem:[%s1 + $0x2668] sm:$0xff]
  %v1952 = vld [vmem:[%s1 + $0x2670] sm:$0xff]
  %v1953 = vld [vmem:[%s1 + $0x2678] sm:$0xff]
  %v1954 = vld [vmem:[%s1 + $0x2680] sm:$0xff]
  %v1955 = vld [vmem:[%s1 + $0x2688] sm:$0xff]
  %v1956 = vld [vmem:[%s1 + $0x2690] sm:$0xff]
  %v1957 = vld [vmem:[%s1 + $0x2698] sm:$0xff]
  %v1958 = vld [vmem:[%s1 + $0x26a0] sm:$0xff]
  %v1959 = vld [vmem:[%s1 + $0x26a8] sm:$0xff]
  %v1960 = vld [vmem:[%s1 + $0x26b0] sm:$0xff]
  %v1961 = vld [vmem:[%s1 + $0x26b8] sm:$0xff]
  %v1962 = vld [vmem:[%s1 + $0x26c0] sm:$0xff]
  %v1963 = vld [vmem:[%s1 + $0x26c8] sm:$0xff]
  %v1964 = vld [vmem:[%s1 + $0x26d0] sm:$0xff]
  %v1965 = vld [vmem:[%s1 + $0x26d8] sm:$0xff]
  %v1966 = vld [vmem:[%s1 + $0x26e0] sm:$0xff]
  %v1967 = vld [vmem:[%s1 + $0x26e8] sm:$0xff]
  %v1968 = vld [vmem:[%s1 + $0x26f0] sm:$0xff]
  %v1969 = vld [vmem:[%s1 + $0x26f8] sm:$0xff]
  %v1970 = vld [vmem:[%s1 + $0x2700] sm:$0xff]
  %v1971 = vld [vmem:[%s1 + $0x2708] sm:$0xff]
  %v1972 = vld [vmem:[%s1 + $0x2710] sm:$0xff]
  %v1973 = vld [vmem:[%s1 + $0x2718] sm:$0xff]
  %v1974 = vld [vmem:[%s1 + $0x2720] sm:$0xff]
  %v1975 = vld [vmem:[%s1 + $0x2728] sm:$0xff]
  %v1976 = vld [vmem:[%s1 + $0x2730] sm:$0xff]
  %v1977 = vld [vmem:[%s1 + $0x2738] sm:$0xff]
  %v1978 = vld [vmem:[%s1 + $0x2740] sm:$0xff]
  %v1979 = vld [vmem:[%s1 + $0x2748] sm:$0xff]
  %v1980 = vld [vmem:[%s1 + $0x2750] sm:$0xff]
  %v1981 = vld [vmem:[%s1 + $0x2758] sm:$0xff]
  %v1982 = vld [vmem:[%s1 + $0x2760] sm:$0xff]
  %v1983 = vld [vmem:[%s1 + $0x2768] sm:$0xff]
  %v1984 = vld [vmem:[%s1 + $0x2770] sm:$0xff]
  %v1985 = vld [vmem:[%s1 + $0x2778] sm:$0xff]
  %1986 = vmatpush.msra.mxu0 %v737
  %1987 = vmatpush.msra.mxu0 %v736
  %1988 = vmatpush.msra.mxu0 %v735
  %1989 = vmatpush.msra.mxu0 %v734
  %1990 = vmatpush.msra.mxu0 %v733
  %1991 = vmatpush.msra.mxu0 %v732
  %1992 = vmatpush.msra.mxu0 %v731
  %1993 = vmatpush.msra.mxu0 %v730
  %1994 = vmatpush.msra.mxu0 %v729
  %1995 = vmatpush.msra.mxu0 %v728
  %1996 = vmatpush.msra.mxu0 %v727
  %1997 = vmatpush.msra.mxu0 %v726
  %1998 = vmatpush.msra.mxu0 %v725
  %1999 = vmatpush.msra.mxu0 %v724
  %2000 = vmatpush.msra.mxu0 %v723
  %2001 = vmatpush.msra.mxu0 %v722
  %2002 = vmatmul.f32.gmra.mxu0 %v11
  %v2003 = vpop.f32.mrf.mxu0
  %v2004 = vadd.f32 0.0, %v2003
  %2005 = vmatmul.f32.gmra.mxu0 %v90
  %v2006 = vpop.f32.mrf.mxu0
  %v2007 = vadd.f32 0.0, %v2006
  %2008 = vmatmul.f32.gmra.mxu0 %v169
  %v2009 = vpop.f32.mrf.mxu0
  %v2010 = vadd.f32 0.0, %v2009
  %2011 = vmatmul.f32.gmra.mxu0 %v248
  %v2012 = vpop.f32.mrf.mxu0
  %v2013 = vadd.f32 0.0, %v2012
  %2014 = vmatmul.f32.gmra.mxu0 %v327
  %v2015 = vpop.f32.mrf.mxu0
  %v2016 = vadd.f32 0.0, %v2015
  %2017 = vmatmul.f32.gmra.mxu0 %v406
  %v2018 = vpop.f32.mrf.mxu0
  %v2019 = vadd.f32 0.0, %v2018
  %2020 = vmatmul.f32.gmra.mxu0 %v485
  %v2021 = vpop.f32.mrf.mxu0
  %v2022 = vadd.f32 0.0, %v2021
  %2023 = vmatmul.f32.gmra.mxu0 %v564
  %v2024 = vpop.f32.mrf.mxu0
  %v2025 = vadd.f32 0.0, %v2024
  %2026 = vmatmul.f32.gmra.mxu0 %v643
  %v2027 = vpop.f32.mrf.mxu0
  %v2028 = vadd.f32 0.0, %v2027
  %2029 = vdwg.mxu0
  %2030 = vmatpush.msra.mxu0 %v753
  %2031 = vmatpush.msra.mxu0 %v752
  %2032 = vmatpush.msra.mxu0 %v751
  %2033 = vmatpush.msra.mxu0 %v750
  %2034 = vmatpush.msra.mxu0 %v749
  %2035 = vmatpush.msra.mxu0 %v748
  %2036 = vmatpush.msra.mxu0 %v747
  %2037 = vmatpush.msra.mxu0 %v746
  %2038 = vmatpush.msra.mxu0 %v745
  %2039 = vmatpush.msra.mxu0 %v744
  %2040 = vmatpush.msra.mxu0 %v743
  %2041 = vmatpush.msra.mxu0 %v742
  %2042 = vmatpush.msra.mxu0 %v741
  %2043 = vmatpush.msra.mxu0 %v740
  %2044 = vmatpush.msra.mxu0 %v739
  %2045 = vmatpush.msra.mxu0 %v738
  %2046 = vmatmul.f32.gmra.mxu0 %v12
  %v2047 = vpop.f32.mrf.mxu0
  %v2048 = vadd.f32 %v2004, %v2047
  %2049 = vmatmul.f32.gmra.mxu0 %v91
  %v2050 = vpop.f32.mrf.mxu0
  %v2051 = vadd.f32 %v2007, %v2050
  %2052 = vmatmul.f32.gmra.mxu0 %v170
  %v2053 = vpop.f32.mrf.mxu0
  %v2054 = vadd.f32 %v2010, %v2053
  %2055 = vmatmul.f32.gmra.mxu0 %v249
  %v2056 = vpop.f32.mrf.mxu0
  %v2057 = vadd.f32 %v2013, %v2056
  %2058 = vmatmul.f32.gmra.mxu0 %v328
  %v2059 = vpop.f32.mrf.mxu0
  %v2060 = vadd.f32 %v2016, %v2059
  %2061 = vmatmul.f32.gmra.mxu0 %v407
  %v2062 = vpop.f32.mrf.mxu0
  %v2063 = vadd.f32 %v2019, %v2062
  %2064 = vmatmul.f32.gmra.mxu0 %v486
  %v2065 = vpop.f32.mrf.mxu0
  %v2066 = vadd.f32 %v2022, %v2065
  %2067 = vmatmul.f32.gmra.mxu0 %v565
  %v2068 = vpop.f32.mrf.mxu0
  %v2069 = vadd.f32 %v2025, %v2068
  %2070 = vmatmul.f32.gmra.mxu0 %v644
  %v2071 = vpop.f32.mrf.mxu0
  %v2072 = vadd.f32 %v2028, %v2071
  %2073 = vdwg.mxu0
  %2074 = vmatpush.msra.mxu0 %v769
  %2075 = vmatpush.msra.mxu0 %v768
  %2076 = vmatpush.msra.mxu0 %v767
  %2077 = vmatpush.msra.mxu0 %v766
  %2078 = vmatpush.msra.mxu0 %v765
  %2079 = vmatpush.msra.mxu0 %v764
  %2080 = vmatpush.msra.mxu0 %v763
  %2081 = vmatpush.msra.mxu0 %v762
  %2082 = vmatpush.msra.mxu0 %v761
  %2083 = vmatpush.msra.mxu0 %v760
  %2084 = vmatpush.msra.mxu0 %v759
  %2085 = vmatpush.msra.mxu0 %v758
  %2086 = vmatpush.msra.mxu0 %v757
  %2087 = vmatpush.msra.mxu0 %v756
  %2088 = vmatpush.msra.mxu0 %v755
  %2089 = vmatpush.msra.mxu0 %v754
  %2090 = vmatmul.f32.gmra.mxu0 %v13
  %v2091 = vpop.f32.mrf.mxu0
  %v2092 = vadd.f32 %v2048, %v2091
  %2093 = vmatmul.f32.gmra.mxu0 %v92
  %v2094 = vpop.f32.mrf.mxu0
  %v2095 = vadd.f32 %v2051, %v2094
  %2096 = vmatmul.f32.gmra.mxu0 %v171
  %v2097 = vpop.f32.mrf.mxu0
  %v2098 = vadd.f32 %v2054, %v2097
  %2099 = vmatmul.f32.gmra.mxu0 %v250
  %v2100 = vpop.f32.mrf.mxu0
  %v2101 = vadd.f32 %v2057, %v2100
  %2102 = vmatmul.f32.gmra.mxu0 %v329
  %v2103 = vpop.f32.mrf.mxu0
  %v2104 = vadd.f32 %v2060, %v2103
  %2105 = vmatmul.f32.gmra.mxu0 %v408
  %v2106 = vpop.f32.mrf.mxu0
  %v2107 = vadd.f32 %v2063, %v2106
  %2108 = vmatmul.f32.gmra.mxu0 %v487
  %v2109 = vpop.f32.mrf.mxu0
  %v2110 = vadd.f32 %v2066, %v2109
  %2111 = vmatmul.f32.gmra.mxu0 %v566
  %v2112 = vpop.f32.mrf.mxu0
  %v2113 = vadd.f32 %v2069, %v2112
  %2114 = vmatmul.f32.gmra.mxu0 %v645
  %v2115 = vpop.f32.mrf.mxu0
  %v2116 = vadd.f32 %v2072, %v2115
  %2117 = vdwg.mxu0
  %2118 = vmatpush.msra.mxu0 %v785
  %2119 = vmatpush.msra.mxu0 %v784
  %2120 = vmatpush.msra.mxu0 %v783
  %2121 = vmatpush.msra.mxu0 %v782
  %2122 = vmatpush.msra.mxu0 %v781
  %2123 = vmatpush.msra.mxu0 %v780
  %2124 = vmatpush.msra.mxu0 %v779
  %2125 = vmatpush.msra.mxu0 %v778
  %2126 = vmatpush.msra.mxu0 %v777
  %2127 = vmatpush.msra.mxu0 %v776
  %2128 = vmatpush.msra.mxu0 %v775
  %2129 = vmatpush.msra.mxu0 %v774
  %2130 = vmatpush.msra.mxu0 %v773
  %2131 = vmatpush.msra.mxu0 %v772
  %2132 = vmatpush.msra.mxu0 %v771
  %2133 = vmatpush.msra.mxu0 %v770
  %2134 = vmatmul.f32.gmra.mxu0 %v14
  %v2135 = vpop.f32.mrf.mxu0
  %v2136 = vadd.f32 %v2092, %v2135
  %2137 = vmatmul.f32.gmra.mxu0 %v93
  %v2138 = vpop.f32.mrf.mxu0
  %v2139 = vadd.f32 %v2095, %v2138
  %2140 = vmatmul.f32.gmra.mxu0 %v172
  %v2141 = vpop.f32.mrf.mxu0
  %v2142 = vadd.f32 %v2098, %v2141
  %2143 = vmatmul.f32.gmra.mxu0 %v251
  %v2144 = vpop.f32.mrf.mxu0
  %v2145 = vadd.f32 %v2101, %v2144
  %2146 = vmatmul.f32.gmra.mxu0 %v330
  %v2147 = vpop.f32.mrf.mxu0
  %v2148 = vadd.f32 %v2104, %v2147
  %2149 = vmatmul.f32.gmra.mxu0 %v409
  %v2150 = vpop.f32.mrf.mxu0
  %v2151 = vadd.f32 %v2107, %v2150
  %2152 = vmatmul.f32.gmra.mxu0 %v488
  %v2153 = vpop.f32.mrf.mxu0
  %v2154 = vadd.f32 %v2110, %v2153
  %2155 = vmatmul.f32.gmra.mxu0 %v567
  %v2156 = vpop.f32.mrf.mxu0
  %v2157 = vadd.f32 %v2113, %v2156
  %2158 = vmatmul.f32.gmra.mxu0 %v646
  %v2159 = vpop.f32.mrf.mxu0
  %v2160 = vadd.f32 %v2116, %v2159
  %2161 = vdwg.mxu0
  %2162 = vmatpush.msra.mxu0 %v801
  %2163 = vmatpush.msra.mxu0 %v800
  %2164 = vmatpush.msra.mxu0 %v799
  %2165 = vmatpush.msra.mxu0 %v798
  %2166 = vmatpush.msra.mxu0 %v797
  %2167 = vmatpush.msra.mxu0 %v796
  %2168 = vmatpush.msra.mxu0 %v795
  %2169 = vmatpush.msra.mxu0 %v794
  %2170 = vmatpush.msra.mxu0 %v793
  %2171 = vmatpush.msra.mxu0 %v792
  %2172 = vmatpush.msra.mxu0 %v791
  %2173 = vmatpush.msra.mxu0 %v790
  %2174 = vmatpush.msra.mxu0 %v789
  %2175 = vmatpush.msra.mxu0 %v788
  %2176 = vmatpush.msra.mxu0 %v787
  %2177 = vmatpush.msra.mxu0 %v786
  %2178 = vmatmul.f32.gmra.mxu0 %v15
  %v2179 = vpop.f32.mrf.mxu0
  %v2180 = vadd.f32 %v2136, %v2179
  %2181 = vmatmul.f32.gmra.mxu0 %v94
  %v2182 = vpop.f32.mrf.mxu0
  %v2183 = vadd.f32 %v2139, %v2182
  %2184 = vmatmul.f32.gmra.mxu0 %v173
  %v2185 = vpop.f32.mrf.mxu0
  %v2186 = vadd.f32 %v2142, %v2185
  %2187 = vmatmul.f32.gmra.mxu0 %v252
  %v2188 = vpop.f32.mrf.mxu0
  %v2189 = vadd.f32 %v2145, %v2188
  %2190 = vmatmul.f32.gmra.mxu0 %v331
  %v2191 = vpop.f32.mrf.mxu0
  %v2192 = vadd.f32 %v2148, %v2191
  %2193 = vmatmul.f32.gmra.mxu0 %v410
  %v2194 = vpop.f32.mrf.mxu0
  %v2195 = vadd.f32 %v2151, %v2194
  %2196 = vmatmul.f32.gmra.mxu0 %v489
  %v2197 = vpop.f32.mrf.mxu0
  %v2198 = vadd.f32 %v2154, %v2197
  %2199 = vmatmul.f32.gmra.mxu0 %v568
  %v2200 = vpop.f32.mrf.mxu0
  %v2201 = vadd.f32 %v2157, %v2200
  %2202 = vmatmul.f32.gmra.mxu0 %v647
  %v2203 = vpop.f32.mrf.mxu0
  %v2204 = vadd.f32 %v2160, %v2203
  %2205 = vdwg.mxu0
  %2206 = vmatpush.msra.mxu0 %v817
  %2207 = vmatpush.msra.mxu0 %v816
  %2208 = vmatpush.msra.mxu0 %v815
  %2209 = vmatpush.msra.mxu0 %v814
  %2210 = vmatpush.msra.mxu0 %v813
  %2211 = vmatpush.msra.mxu0 %v812
  %2212 = vmatpush.msra.mxu0 %v811
  %2213 = vmatpush.msra.mxu0 %v810
  %2214 = vmatpush.msra.mxu0 %v809
  %2215 = vmatpush.msra.mxu0 %v808
  %2216 = vmatpush.msra.mxu0 %v807
  %2217 = vmatpush.msra.mxu0 %v806
  %2218 = vmatpush.msra.mxu0 %v805
  %2219 = vmatpush.msra.mxu0 %v804
  %2220 = vmatpush.msra.mxu0 %v803
  %2221 = vmatpush.msra.mxu0 %v802
  %2222 = vmatmul.f32.gmra.mxu0 %v16
  %v2223 = vpop.f32.mrf.mxu0
  %v2224 = vadd.f32 %v2180, %v2223
  %2225 = vmatmul.f32.gmra.mxu0 %v95
  %v2226 = vpop.f32.mrf.mxu0
  %v2227 = vadd.f32 %v2183, %v2226
  %2228 = vmatmul.f32.gmra.mxu0 %v174
  %v2229 = vpop.f32.mrf.mxu0
  %v2230 = vadd.f32 %v2186, %v2229
  %2231 = vmatmul.f32.gmra.mxu0 %v253
  %v2232 = vpop.f32.mrf.mxu0
  %v2233 = vadd.f32 %v2189, %v2232
  %2234 = vmatmul.f32.gmra.mxu0 %v332
  %v2235 = vpop.f32.mrf.mxu0
  %v2236 = vadd.f32 %v2192, %v2235
  %2237 = vmatmul.f32.gmra.mxu0 %v411
  %v2238 = vpop.f32.mrf.mxu0
  %v2239 = vadd.f32 %v2195, %v2238
  %2240 = vmatmul.f32.gmra.mxu0 %v490
  %v2241 = vpop.f32.mrf.mxu0
  %v2242 = vadd.f32 %v2198, %v2241
  %2243 = vmatmul.f32.gmra.mxu0 %v569
  %v2244 = vpop.f32.mrf.mxu0
  %v2245 = vadd.f32 %v2201, %v2244
  %2246 = vmatmul.f32.gmra.mxu0 %v648
  %v2247 = vpop.f32.mrf.mxu0
  %v2248 = vadd.f32 %v2204, %v2247
  %2249 = vdwg.mxu0
  %2250 = vmatpush.msra.mxu0 %v833
  %2251 = vmatpush.msra.mxu0 %v832
  %2252 = vmatpush.msra.mxu0 %v831
  %2253 = vmatpush.msra.mxu0 %v830
  %2254 = vmatpush.msra.mxu0 %v829
  %2255 = vmatpush.msra.mxu0 %v828
  %2256 = vmatpush.msra.mxu0 %v827
  %2257 = vmatpush.msra.mxu0 %v826
  %2258 = vmatpush.msra.mxu0 %v825
  %2259 = vmatpush.msra.mxu0 %v824
  %2260 = vmatpush.msra.mxu0 %v823
  %2261 = vmatpush.msra.mxu0 %v822
  %2262 = vmatpush.msra.mxu0 %v821
  %2263 = vmatpush.msra.mxu0 %v820
  %2264 = vmatpush.msra.mxu0 %v819
  %2265 = vmatpush.msra.mxu0 %v818
  %2266 = vmatmul.f32.gmra.mxu0 %v17
  %v2267 = vpop.f32.mrf.mxu0
  %v2268 = vadd.f32 %v2224, %v2267
  %2269 = vmatmul.f32.gmra.mxu0 %v96
  %v2270 = vpop.f32.mrf.mxu0
  %v2271 = vadd.f32 %v2227, %v2270
  %2272 = vmatmul.f32.gmra.mxu0 %v175
  %v2273 = vpop.f32.mrf.mxu0
  %v2274 = vadd.f32 %v2230, %v2273
  %2275 = vmatmul.f32.gmra.mxu0 %v254
  %v2276 = vpop.f32.mrf.mxu0
  %v2277 = vadd.f32 %v2233, %v2276
  %2278 = vmatmul.f32.gmra.mxu0 %v333
  %v2279 = vpop.f32.mrf.mxu0
  %v2280 = vadd.f32 %v2236, %v2279
  %2281 = vmatmul.f32.gmra.mxu0 %v412
  %v2282 = vpop.f32.mrf.mxu0
  %v2283 = vadd.f32 %v2239, %v2282
  %2284 = vmatmul.f32.gmra.mxu0 %v491
  %v2285 = vpop.f32.mrf.mxu0
  %v2286 = vadd.f32 %v2242, %v2285
  %2287 = vmatmul.f32.gmra.mxu0 %v570
  %v2288 = vpop.f32.mrf.mxu0
  %v2289 = vadd.f32 %v2245, %v2288
  %2290 = vmatmul.f32.gmra.mxu0 %v649
  %v2291 = vpop.f32.mrf.mxu0
  %v2292 = vadd.f32 %v2248, %v2291
  %2293 = vdwg.mxu0
  %2294 = vmatpush.msra.mxu0 %v849
  %2295 = vmatpush.msra.mxu0 %v848
  %2296 = vmatpush.msra.mxu0 %v847
  %2297 = vmatpush.msra.mxu0 %v846
  %2298 = vmatpush.msra.mxu0 %v845
  %2299 = vmatpush.msra.mxu0 %v844
  %2300 = vmatpush.msra.mxu0 %v843
  %2301 = vmatpush.msra.mxu0 %v842
  %2302 = vmatpush.msra.mxu0 %v841
  %2303 = vmatpush.msra.mxu0 %v840
  %2304 = vmatpush.msra.mxu0 %v839
  %2305 = vmatpush.msra.mxu0 %v838
  %2306 = vmatpush.msra.mxu0 %v837
  %2307 = vmatpush.msra.mxu0 %v836
  %2308 = vmatpush.msra.mxu0 %v835
  %2309 = vmatpush.msra.mxu0 %v834
  %2310 = vmatmul.f32.gmra.mxu0 %v18
  %v2311 = vpop.f32.mrf.mxu0
  %v2312 = vadd.f32 %v2268, %v2311
  %2313 = vmatmul.f32.gmra.mxu0 %v97
  %v2314 = vpop.f32.mrf.mxu0
  %v2315 = vadd.f32 %v2271, %v2314
  %2316 = vmatmul.f32.gmra.mxu0 %v176
  %v2317 = vpop.f32.mrf.mxu0
  %v2318 = vadd.f32 %v2274, %v2317
  %2319 = vmatmul.f32.gmra.mxu0 %v255
  %v2320 = vpop.f32.mrf.mxu0
  %v2321 = vadd.f32 %v2277, %v2320
  %2322 = vmatmul.f32.gmra.mxu0 %v334
  %v2323 = vpop.f32.mrf.mxu0
  %v2324 = vadd.f32 %v2280, %v2323
  %2325 = vmatmul.f32.gmra.mxu0 %v413
  %v2326 = vpop.f32.mrf.mxu0
  %v2327 = vadd.f32 %v2283, %v2326
  %2328 = vmatmul.f32.gmra.mxu0 %v492
  %v2329 = vpop.f32.mrf.mxu0
  %v2330 = vadd.f32 %v2286, %v2329
  %2331 = vmatmul.f32.gmra.mxu0 %v571
  %v2332 = vpop.f32.mrf.mxu0
  %v2333 = vadd.f32 %v2289, %v2332
  %2334 = vmatmul.f32.gmra.mxu0 %v650
  %v2335 = vpop.f32.mrf.mxu0
  %v2336 = vadd.f32 %v2292, %v2335
  %2337 = vdwg.mxu0
  %2338 = vmatpush.msra.mxu0 %v865
  %2339 = vmatpush.msra.mxu0 %v864
  %2340 = vmatpush.msra.mxu0 %v863
  %2341 = vmatpush.msra.mxu0 %v862
  %2342 = vmatpush.msra.mxu0 %v861
  %2343 = vmatpush.msra.mxu0 %v860
  %2344 = vmatpush.msra.mxu0 %v859
  %2345 = vmatpush.msra.mxu0 %v858
  %2346 = vmatpush.msra.mxu0 %v857
  %2347 = vmatpush.msra.mxu0 %v856
  %2348 = vmatpush.msra.mxu0 %v855
  %2349 = vmatpush.msra.mxu0 %v854
  %2350 = vmatpush.msra.mxu0 %v853
  %2351 = vmatpush.msra.mxu0 %v852
  %2352 = vmatpush.msra.mxu0 %v851
  %2353 = vmatpush.msra.mxu0 %v850
  %2354 = vmatmul.f32.gmra.mxu0 %v19
  %v2355 = vpop.f32.mrf.mxu0
  %v2356 = vadd.f32 %v2312, %v2355
  %2357 = vmatmul.f32.gmra.mxu0 %v98
  %v2358 = vpop.f32.mrf.mxu0
  %v2359 = vadd.f32 %v2315, %v2358
  %2360 = vmatmul.f32.gmra.mxu0 %v177
  %v2361 = vpop.f32.mrf.mxu0
  %v2362 = vadd.f32 %v2318, %v2361
  %2363 = vmatmul.f32.gmra.mxu0 %v256
  %v2364 = vpop.f32.mrf.mxu0
  %v2365 = vadd.f32 %v2321, %v2364
  %2366 = vmatmul.f32.gmra.mxu0 %v335
  %v2367 = vpop.f32.mrf.mxu0
  %v2368 = vadd.f32 %v2324, %v2367
  %2369 = vmatmul.f32.gmra.mxu0 %v414
  %v2370 = vpop.f32.mrf.mxu0
  %v2371 = vadd.f32 %v2327, %v2370
  %2372 = vmatmul.f32.gmra.mxu0 %v493
  %v2373 = vpop.f32.mrf.mxu0
  %v2374 = vadd.f32 %v2330, %v2373
  %2375 = vmatmul.f32.gmra.mxu0 %v572
  %v2376 = vpop.f32.mrf.mxu0
  %v2377 = vadd.f32 %v2333, %v2376
  %2378 = vmatmul.f32.gmra.mxu0 %v651
  %v2379 = vpop.f32.mrf.mxu0
  %v2380 = vadd.f32 %v2336, %v2379
  %2381 = vdwg.mxu0
  %2382 = vmatpush.msra.mxu0 %v881
  %2383 = vmatpush.msra.mxu0 %v880
  %2384 = vmatpush.msra.mxu0 %v879
  %2385 = vmatpush.msra.mxu0 %v878
  %2386 = vmatpush.msra.mxu0 %v877
  %2387 = vmatpush.msra.mxu0 %v876
  %2388 = vmatpush.msra.mxu0 %v875
  %2389 = vmatpush.msra.mxu0 %v874
  %2390 = vmatpush.msra.mxu0 %v873
  %2391 = vmatpush.msra.mxu0 %v872
  %2392 = vmatpush.msra.mxu0 %v871
  %2393 = vmatpush.msra.mxu0 %v870
  %2394 = vmatpush.msra.mxu0 %v869
  %2395 = vmatpush.msra.mxu0 %v868
  %2396 = vmatpush.msra.mxu0 %v867
  %2397 = vmatpush.msra.mxu0 %v866
  %2398 = vmatmul.f32.gmra.mxu0 %v20
  %v2399 = vpop.f32.mrf.mxu0
  %v2400 = vadd.f32 %v2356, %v2399
  %2401 = vmatmul.f32.gmra.mxu0 %v99
  %v2402 = vpop.f32.mrf.mxu0
  %v2403 = vadd.f32 %v2359, %v2402
  %2404 = vmatmul.f32.gmra.mxu0 %v178
  %v2405 = vpop.f32.mrf.mxu0
  %v2406 = vadd.f32 %v2362, %v2405
  %2407 = vmatmul.f32.gmra.mxu0 %v257
  %v2408 = vpop.f32.mrf.mxu0
  %v2409 = vadd.f32 %v2365, %v2408
  %2410 = vmatmul.f32.gmra.mxu0 %v336
  %v2411 = vpop.f32.mrf.mxu0
  %v2412 = vadd.f32 %v2368, %v2411
  %2413 = vmatmul.f32.gmra.mxu0 %v415
  %v2414 = vpop.f32.mrf.mxu0
  %v2415 = vadd.f32 %v2371, %v2414
  %2416 = vmatmul.f32.gmra.mxu0 %v494
  %v2417 = vpop.f32.mrf.mxu0
  %v2418 = vadd.f32 %v2374, %v2417
  %2419 = vmatmul.f32.gmra.mxu0 %v573
  %v2420 = vpop.f32.mrf.mxu0
  %v2421 = vadd.f32 %v2377, %v2420
  %2422 = vmatmul.f32.gmra.mxu0 %v652
  %v2423 = vpop.f32.mrf.mxu0
  %v2424 = vadd.f32 %v2380, %v2423
  %2425 = vdwg.mxu0
  %2426 = vmatpush.msra.mxu0 %v897
  %2427 = vmatpush.msra.mxu0 %v896
  %2428 = vmatpush.msra.mxu0 %v895
  %2429 = vmatpush.msra.mxu0 %v894
  %2430 = vmatpush.msra.mxu0 %v893
  %2431 = vmatpush.msra.mxu0 %v892
  %2432 = vmatpush.msra.mxu0 %v891
  %2433 = vmatpush.msra.mxu0 %v890
  %2434 = vmatpush.msra.mxu0 %v889
  %2435 = vmatpush.msra.mxu0 %v888
  %2436 = vmatpush.msra.mxu0 %v887
  %2437 = vmatpush.msra.mxu0 %v886
  %2438 = vmatpush.msra.mxu0 %v885
  %2439 = vmatpush.msra.mxu0 %v884
  %2440 = vmatpush.msra.mxu0 %v883
  %2441 = vmatpush.msra.mxu0 %v882
  %2442 = vmatmul.f32.gmra.mxu0 %v21
  %v2443 = vpop.f32.mrf.mxu0
  %v2444 = vadd.f32 %v2400, %v2443
  %2445 = vmatmul.f32.gmra.mxu0 %v100
  %v2446 = vpop.f32.mrf.mxu0
  %v2447 = vadd.f32 %v2403, %v2446
  %2448 = vmatmul.f32.gmra.mxu0 %v179
  %v2449 = vpop.f32.mrf.mxu0
  %v2450 = vadd.f32 %v2406, %v2449
  %2451 = vmatmul.f32.gmra.mxu0 %v258
  %v2452 = vpop.f32.mrf.mxu0
  %v2453 = vadd.f32 %v2409, %v2452
  %2454 = vmatmul.f32.gmra.mxu0 %v337
  %v2455 = vpop.f32.mrf.mxu0
  %v2456 = vadd.f32 %v2412, %v2455
  %2457 = vmatmul.f32.gmra.mxu0 %v416
  %v2458 = vpop.f32.mrf.mxu0
  %v2459 = vadd.f32 %v2415, %v2458
  %2460 = vmatmul.f32.gmra.mxu0 %v495
  %v2461 = vpop.f32.mrf.mxu0
  %v2462 = vadd.f32 %v2418, %v2461
  %2463 = vmatmul.f32.gmra.mxu0 %v574
  %v2464 = vpop.f32.mrf.mxu0
  %v2465 = vadd.f32 %v2421, %v2464
  %2466 = vmatmul.f32.gmra.mxu0 %v653
  %v2467 = vpop.f32.mrf.mxu0
  %v2468 = vadd.f32 %v2424, %v2467
  %2469 = vdwg.mxu0
  %2470 = vmatpush.msra.mxu0 %v913
  %2471 = vmatpush.msra.mxu0 %v912
  %2472 = vmatpush.msra.mxu0 %v911
  %2473 = vmatpush.msra.mxu0 %v910
  %2474 = vmatpush.msra.mxu0 %v909
  %2475 = vmatpush.msra.mxu0 %v908
  %2476 = vmatpush.msra.mxu0 %v907
  %2477 = vmatpush.msra.mxu0 %v906
  %2478 = vmatpush.msra.mxu0 %v905
  %2479 = vmatpush.msra.mxu0 %v904
  %2480 = vmatpush.msra.mxu0 %v903
  %2481 = vmatpush.msra.mxu0 %v902
  %2482 = vmatpush.msra.mxu0 %v901
  %2483 = vmatpush.msra.mxu0 %v900
  %2484 = vmatpush.msra.mxu0 %v899
  %2485 = vmatpush.msra.mxu0 %v898
  %2486 = vmatmul.f32.gmra.mxu0 %v22
  %v2487 = vpop.f32.mrf.mxu0
  %v2488 = vadd.f32 %v2444, %v2487
  %2489 = vmatmul.f32.gmra.mxu0 %v101
  %v2490 = vpop.f32.mrf.mxu0
  %v2491 = vadd.f32 %v2447, %v2490
  %2492 = vmatmul.f32.gmra.mxu0 %v180
  %v2493 = vpop.f32.mrf.mxu0
  %v2494 = vadd.f32 %v2450, %v2493
  %2495 = vmatmul.f32.gmra.mxu0 %v259
  %v2496 = vpop.f32.mrf.mxu0
  %v2497 = vadd.f32 %v2453, %v2496
  %2498 = vmatmul.f32.gmra.mxu0 %v338
  %v2499 = vpop.f32.mrf.mxu0
  %v2500 = vadd.f32 %v2456, %v2499
  %2501 = vmatmul.f32.gmra.mxu0 %v417
  %v2502 = vpop.f32.mrf.mxu0
  %v2503 = vadd.f32 %v2459, %v2502
  %2504 = vmatmul.f32.gmra.mxu0 %v496
  %v2505 = vpop.f32.mrf.mxu0
  %v2506 = vadd.f32 %v2462, %v2505
  %2507 = vmatmul.f32.gmra.mxu0 %v575
  %v2508 = vpop.f32.mrf.mxu0
  %v2509 = vadd.f32 %v2465, %v2508
  %2510 = vmatmul.f32.gmra.mxu0 %v654
  %v2511 = vpop.f32.mrf.mxu0
  %v2512 = vadd.f32 %v2468, %v2511
  %2513 = vdwg.mxu0
  %2514 = vmatpush.msra.mxu0 %v929
  %2515 = vmatpush.msra.mxu0 %v928
  %2516 = vmatpush.msra.mxu0 %v927
  %2517 = vmatpush.msra.mxu0 %v926
  %2518 = vmatpush.msra.mxu0 %v925
  %2519 = vmatpush.msra.mxu0 %v924
  %2520 = vmatpush.msra.mxu0 %v923
  %2521 = vmatpush.msra.mxu0 %v922
  %2522 = vmatpush.msra.mxu0 %v921
  %2523 = vmatpush.msra.mxu0 %v920
  %2524 = vmatpush.msra.mxu0 %v919
  %2525 = vmatpush.msra.mxu0 %v918
  %2526 = vmatpush.msra.mxu0 %v917
  %2527 = vmatpush.msra.mxu0 %v916
  %2528 = vmatpush.msra.mxu0 %v915
  %2529 = vmatpush.msra.mxu0 %v914
  %2530 = vmatmul.f32.gmra.mxu0 %v23
  %v2531 = vpop.f32.mrf.mxu0
  %v2532 = vadd.f32 %v2488, %v2531
  %2533 = vmatmul.f32.gmra.mxu0 %v102
  %v2534 = vpop.f32.mrf.mxu0
  %v2535 = vadd.f32 %v2491, %v2534
  %2536 = vmatmul.f32.gmra.mxu0 %v181
  %v2537 = vpop.f32.mrf.mxu0
  %v2538 = vadd.f32 %v2494, %v2537
  %2539 = vmatmul.f32.gmra.mxu0 %v260
  %v2540 = vpop.f32.mrf.mxu0
  %v2541 = vadd.f32 %v2497, %v2540
  %2542 = vmatmul.f32.gmra.mxu0 %v339
  %v2543 = vpop.f32.mrf.mxu0
  %v2544 = vadd.f32 %v2500, %v2543
  %2545 = vmatmul.f32.gmra.mxu0 %v418
  %v2546 = vpop.f32.mrf.mxu0
  %v2547 = vadd.f32 %v2503, %v2546
  %2548 = vmatmul.f32.gmra.mxu0 %v497
  %v2549 = vpop.f32.mrf.mxu0
  %v2550 = vadd.f32 %v2506, %v2549
  %2551 = vmatmul.f32.gmra.mxu0 %v576
  %v2552 = vpop.f32.mrf.mxu0
  %v2553 = vadd.f32 %v2509, %v2552
  %2554 = vmatmul.f32.gmra.mxu0 %v655
  %v2555 = vpop.f32.mrf.mxu0
  %v2556 = vadd.f32 %v2512, %v2555
  %2557 = vdwg.mxu0
  %2558 = vmatpush.msra.mxu0 %v945
  %2559 = vmatpush.msra.mxu0 %v944
  %2560 = vmatpush.msra.mxu0 %v943
  %2561 = vmatpush.msra.mxu0 %v942
  %2562 = vmatpush.msra.mxu0 %v941
  %2563 = vmatpush.msra.mxu0 %v940
  %2564 = vmatpush.msra.mxu0 %v939
  %2565 = vmatpush.msra.mxu0 %v938
  %2566 = vmatpush.msra.mxu0 %v937
  %2567 = vmatpush.msra.mxu0 %v936
  %2568 = vmatpush.msra.mxu0 %v935
  %2569 = vmatpush.msra.mxu0 %v934
  %2570 = vmatpush.msra.mxu0 %v933
  %2571 = vmatpush.msra.mxu0 %v932
  %2572 = vmatpush.msra.mxu0 %v931
  %2573 = vmatpush.msra.mxu0 %v930
  %2574 = vmatmul.f32.gmra.mxu0 %v24
  %v2575 = vpop.f32.mrf.mxu0
  %v2576 = vadd.f32 %v2532, %v2575
  %2577 = vmatmul.f32.gmra.mxu0 %v103
  %v2578 = vpop.f32.mrf.mxu0
  %v2579 = vadd.f32 %v2535, %v2578
  %2580 = vmatmul.f32.gmra.mxu0 %v182
  %v2581 = vpop.f32.mrf.mxu0
  %v2582 = vadd.f32 %v2538, %v2581
  %2583 = vmatmul.f32.gmra.mxu0 %v261
  %v2584 = vpop.f32.mrf.mxu0
  %v2585 = vadd.f32 %v2541, %v2584
  %2586 = vmatmul.f32.gmra.mxu0 %v340
  %v2587 = vpop.f32.mrf.mxu0
  %v2588 = vadd.f32 %v2544, %v2587
  %2589 = vmatmul.f32.gmra.mxu0 %v419
  %v2590 = vpop.f32.mrf.mxu0
  %v2591 = vadd.f32 %v2547, %v2590
  %2592 = vmatmul.f32.gmra.mxu0 %v498
  %v2593 = vpop.f32.mrf.mxu0
  %v2594 = vadd.f32 %v2550, %v2593
  %2595 = vmatmul.f32.gmra.mxu0 %v577
  %v2596 = vpop.f32.mrf.mxu0
  %v2597 = vadd.f32 %v2553, %v2596
  %2598 = vmatmul.f32.gmra.mxu0 %v656
  %v2599 = vpop.f32.mrf.mxu0
  %v2600 = vadd.f32 %v2556, %v2599
  %2601 = vdwg.mxu0
  %2602 = vmatpush.msra.mxu0 %v961
  %2603 = vmatpush.msra.mxu0 %v960
  %2604 = vmatpush.msra.mxu0 %v959
  %2605 = vmatpush.msra.mxu0 %v958
  %2606 = vmatpush.msra.mxu0 %v957
  %2607 = vmatpush.msra.mxu0 %v956
  %2608 = vmatpush.msra.mxu0 %v955
  %2609 = vmatpush.msra.mxu0 %v954
  %2610 = vmatpush.msra.mxu0 %v953
  %2611 = vmatpush.msra.mxu0 %v952
  %2612 = vmatpush.msra.mxu0 %v951
  %2613 = vmatpush.msra.mxu0 %v950
  %2614 = vmatpush.msra.mxu0 %v949
  %2615 = vmatpush.msra.mxu0 %v948
  %2616 = vmatpush.msra.mxu0 %v947
  %2617 = vmatpush.msra.mxu0 %v946
  %2618 = vmatmul.f32.gmra.mxu0 %v25
  %v2619 = vpop.f32.mrf.mxu0
  %v2620 = vadd.f32 %v2576, %v2619
  %2621 = vmatmul.f32.gmra.mxu0 %v104
  %v2622 = vpop.f32.mrf.mxu0
  %v2623 = vadd.f32 %v2579, %v2622
  %2624 = vmatmul.f32.gmra.mxu0 %v183
  %v2625 = vpop.f32.mrf.mxu0
  %v2626 = vadd.f32 %v2582, %v2625
  %2627 = vmatmul.f32.gmra.mxu0 %v262
  %v2628 = vpop.f32.mrf.mxu0
  %v2629 = vadd.f32 %v2585, %v2628
  %2630 = vmatmul.f32.gmra.mxu0 %v341
  %v2631 = vpop.f32.mrf.mxu0
  %v2632 = vadd.f32 %v2588, %v2631
  %2633 = vmatmul.f32.gmra.mxu0 %v420
  %v2634 = vpop.f32.mrf.mxu0
  %v2635 = vadd.f32 %v2591, %v2634
  %2636 = vmatmul.f32.gmra.mxu0 %v499
  %v2637 = vpop.f32.mrf.mxu0
  %v2638 = vadd.f32 %v2594, %v2637
  %2639 = vmatmul.f32.gmra.mxu0 %v578
  %v2640 = vpop.f32.mrf.mxu0
  %v2641 = vadd.f32 %v2597, %v2640
  %2642 = vmatmul.f32.gmra.mxu0 %v657
  %v2643 = vpop.f32.mrf.mxu0
  %v2644 = vadd.f32 %v2600, %v2643
  %2645 = vdwg.mxu0
  %2646 = vmatpush.msra.mxu0 %v977
  %2647 = vmatpush.msra.mxu0 %v976
  %2648 = vmatpush.msra.mxu0 %v975
  %2649 = vmatpush.msra.mxu0 %v974
  %2650 = vmatpush.msra.mxu0 %v973
  %2651 = vmatpush.msra.mxu0 %v972
  %2652 = vmatpush.msra.mxu0 %v971
  %2653 = vmatpush.msra.mxu0 %v970
  %2654 = vmatpush.msra.mxu0 %v969
  %2655 = vmatpush.msra.mxu0 %v968
  %2656 = vmatpush.msra.mxu0 %v967
  %2657 = vmatpush.msra.mxu0 %v966
  %2658 = vmatpush.msra.mxu0 %v965
  %2659 = vmatpush.msra.mxu0 %v964
  %2660 = vmatpush.msra.mxu0 %v963
  %2661 = vmatpush.msra.mxu0 %v962
  %2662 = vmatmul.f32.gmra.mxu0 %v26
  %v2663 = vpop.f32.mrf.mxu0
  %v2664 = vadd.f32 %v2620, %v2663
  %2665 = vmatmul.f32.gmra.mxu0 %v105
  %v2666 = vpop.f32.mrf.mxu0
  %v2667 = vadd.f32 %v2623, %v2666
  %2668 = vmatmul.f32.gmra.mxu0 %v184
  %v2669 = vpop.f32.mrf.mxu0
  %v2670 = vadd.f32 %v2626, %v2669
  %2671 = vmatmul.f32.gmra.mxu0 %v263
  %v2672 = vpop.f32.mrf.mxu0
  %v2673 = vadd.f32 %v2629, %v2672
  %2674 = vmatmul.f32.gmra.mxu0 %v342
  %v2675 = vpop.f32.mrf.mxu0
  %v2676 = vadd.f32 %v2632, %v2675
  %2677 = vmatmul.f32.gmra.mxu0 %v421
  %v2678 = vpop.f32.mrf.mxu0
  %v2679 = vadd.f32 %v2635, %v2678
  %2680 = vmatmul.f32.gmra.mxu0 %v500
  %v2681 = vpop.f32.mrf.mxu0
  %v2682 = vadd.f32 %v2638, %v2681
  %2683 = vmatmul.f32.gmra.mxu0 %v579
  %v2684 = vpop.f32.mrf.mxu0
  %v2685 = vadd.f32 %v2641, %v2684
  %2686 = vmatmul.f32.gmra.mxu0 %v658
  %v2687 = vpop.f32.mrf.mxu0
  %v2688 = vadd.f32 %v2644, %v2687
  %2689 = vdwg.mxu0
  %2690 = vmatpush.msra.mxu0 %v993
  %2691 = vmatpush.msra.mxu0 %v992
  %2692 = vmatpush.msra.mxu0 %v991
  %2693 = vmatpush.msra.mxu0 %v990
  %2694 = vmatpush.msra.mxu0 %v989
  %2695 = vmatpush.msra.mxu0 %v988
  %2696 = vmatpush.msra.mxu0 %v987
  %2697 = vmatpush.msra.mxu0 %v986
  %2698 = vmatpush.msra.mxu0 %v985
  %2699 = vmatpush.msra.mxu0 %v984
  %2700 = vmatpush.msra.mxu0 %v983
  %2701 = vmatpush.msra.mxu0 %v982
  %2702 = vmatpush.msra.mxu0 %v981
  %2703 = vmatpush.msra.mxu0 %v980
  %2704 = vmatpush.msra.mxu0 %v979
  %2705 = vmatpush.msra.mxu0 %v978
  %2706 = vmatmul.f32.gmra.mxu0 %v27
  %v2707 = vpop.f32.mrf.mxu0
  %v2708 = vadd.f32 %v2664, %v2707
  %2709 = vmatmul.f32.gmra.mxu0 %v106
  %v2710 = vpop.f32.mrf.mxu0
  %v2711 = vadd.f32 %v2667, %v2710
  %2712 = vmatmul.f32.gmra.mxu0 %v185
  %v2713 = vpop.f32.mrf.mxu0
  %v2714 = vadd.f32 %v2670, %v2713
  %2715 = vmatmul.f32.gmra.mxu0 %v264
  %v2716 = vpop.f32.mrf.mxu0
  %v2717 = vadd.f32 %v2673, %v2716
  %2718 = vmatmul.f32.gmra.mxu0 %v343
  %v2719 = vpop.f32.mrf.mxu0
  %v2720 = vadd.f32 %v2676, %v2719
  %2721 = vmatmul.f32.gmra.mxu0 %v422
  %v2722 = vpop.f32.mrf.mxu0
  %v2723 = vadd.f32 %v2679, %v2722
  %2724 = vmatmul.f32.gmra.mxu0 %v501
  %v2725 = vpop.f32.mrf.mxu0
  %v2726 = vadd.f32 %v2682, %v2725
  %2727 = vmatmul.f32.gmra.mxu0 %v580
  %v2728 = vpop.f32.mrf.mxu0
  %v2729 = vadd.f32 %v2685, %v2728
  %2730 = vmatmul.f32.gmra.mxu0 %v659
  %v2731 = vpop.f32.mrf.mxu0
  %v2732 = vadd.f32 %v2688, %v2731
  %2733 = vdwg.mxu0
  %2734 = vmatpush.msra.mxu0 %v1009
  %2735 = vmatpush.msra.mxu0 %v1008
  %2736 = vmatpush.msra.mxu0 %v1007
  %2737 = vmatpush.msra.mxu0 %v1006
  %2738 = vmatpush.msra.mxu0 %v1005
  %2739 = vmatpush.msra.mxu0 %v1004
  %2740 = vmatpush.msra.mxu0 %v1003
  %2741 = vmatpush.msra.mxu0 %v1002
  %2742 = vmatpush.msra.mxu0 %v1001
  %2743 = vmatpush.msra.mxu0 %v1000
  %2744 = vmatpush.msra.mxu0 %v999
  %2745 = vmatpush.msra.mxu0 %v998
  %2746 = vmatpush.msra.mxu0 %v997
  %2747 = vmatpush.msra.mxu0 %v996
  %2748 = vmatpush.msra.mxu0 %v995
  %2749 = vmatpush.msra.mxu0 %v994
  %2750 = vmatmul.f32.gmra.mxu0 %v28
  %v2751 = vpop.f32.mrf.mxu0
  %v2752 = vadd.f32 %v2708, %v2751
  %2753 = vmatmul.f32.gmra.mxu0 %v107
  %v2754 = vpop.f32.mrf.mxu0
  %v2755 = vadd.f32 %v2711, %v2754
  %2756 = vmatmul.f32.gmra.mxu0 %v186
  %v2757 = vpop.f32.mrf.mxu0
  %v2758 = vadd.f32 %v2714, %v2757
  %2759 = vmatmul.f32.gmra.mxu0 %v265
  %v2760 = vpop.f32.mrf.mxu0
  %v2761 = vadd.f32 %v2717, %v2760
  %2762 = vmatmul.f32.gmra.mxu0 %v344
  %v2763 = vpop.f32.mrf.mxu0
  %v2764 = vadd.f32 %v2720, %v2763
  %2765 = vmatmul.f32.gmra.mxu0 %v423
  %v2766 = vpop.f32.mrf.mxu0
  %v2767 = vadd.f32 %v2723, %v2766
  %2768 = vmatmul.f32.gmra.mxu0 %v502
  %v2769 = vpop.f32.mrf.mxu0
  %v2770 = vadd.f32 %v2726, %v2769
  %2771 = vmatmul.f32.gmra.mxu0 %v581
  %v2772 = vpop.f32.mrf.mxu0
  %v2773 = vadd.f32 %v2729, %v2772
  %2774 = vmatmul.f32.gmra.mxu0 %v660
  %v2775 = vpop.f32.mrf.mxu0
  %v2776 = vadd.f32 %v2732, %v2775
  %2777 = vdwg.mxu0
  %2778 = vmatpush.msra.mxu0 %v1025
  %2779 = vmatpush.msra.mxu0 %v1024
  %2780 = vmatpush.msra.mxu0 %v1023
  %2781 = vmatpush.msra.mxu0 %v1022
  %2782 = vmatpush.msra.mxu0 %v1021
  %2783 = vmatpush.msra.mxu0 %v1020
  %2784 = vmatpush.msra.mxu0 %v1019
  %2785 = vmatpush.msra.mxu0 %v1018
  %2786 = vmatpush.msra.mxu0 %v1017
  %2787 = vmatpush.msra.mxu0 %v1016
  %2788 = vmatpush.msra.mxu0 %v1015
  %2789 = vmatpush.msra.mxu0 %v1014
  %2790 = vmatpush.msra.mxu0 %v1013
  %2791 = vmatpush.msra.mxu0 %v1012
  %2792 = vmatpush.msra.mxu0 %v1011
  %2793 = vmatpush.msra.mxu0 %v1010
  %2794 = vmatmul.f32.gmra.mxu0 %v29
  %v2795 = vpop.f32.mrf.mxu0
  %v2796 = vadd.f32 %v2752, %v2795
  %2797 = vmatmul.f32.gmra.mxu0 %v108
  %v2798 = vpop.f32.mrf.mxu0
  %v2799 = vadd.f32 %v2755, %v2798
  %2800 = vmatmul.f32.gmra.mxu0 %v187
  %v2801 = vpop.f32.mrf.mxu0
  %v2802 = vadd.f32 %v2758, %v2801
  %2803 = vmatmul.f32.gmra.mxu0 %v266
  %v2804 = vpop.f32.mrf.mxu0
  %v2805 = vadd.f32 %v2761, %v2804
  %2806 = vmatmul.f32.gmra.mxu0 %v345
  %v2807 = vpop.f32.mrf.mxu0
  %v2808 = vadd.f32 %v2764, %v2807
  %2809 = vmatmul.f32.gmra.mxu0 %v424
  %v2810 = vpop.f32.mrf.mxu0
  %v2811 = vadd.f32 %v2767, %v2810
  %2812 = vmatmul.f32.gmra.mxu0 %v503
  %v2813 = vpop.f32.mrf.mxu0
  %v2814 = vadd.f32 %v2770, %v2813
  %2815 = vmatmul.f32.gmra.mxu0 %v582
  %v2816 = vpop.f32.mrf.mxu0
  %v2817 = vadd.f32 %v2773, %v2816
  %2818 = vmatmul.f32.gmra.mxu0 %v661
  %v2819 = vpop.f32.mrf.mxu0
  %v2820 = vadd.f32 %v2776, %v2819
  %2821 = vdwg.mxu0
  %2822 = vmatpush.msra.mxu0 %v1041
  %2823 = vmatpush.msra.mxu0 %v1040
  %2824 = vmatpush.msra.mxu0 %v1039
  %2825 = vmatpush.msra.mxu0 %v1038
  %2826 = vmatpush.msra.mxu0 %v1037
  %2827 = vmatpush.msra.mxu0 %v1036
  %2828 = vmatpush.msra.mxu0 %v1035
  %2829 = vmatpush.msra.mxu0 %v1034
  %2830 = vmatpush.msra.mxu0 %v1033
  %2831 = vmatpush.msra.mxu0 %v1032
  %2832 = vmatpush.msra.mxu0 %v1031
  %2833 = vmatpush.msra.mxu0 %v1030
  %2834 = vmatpush.msra.mxu0 %v1029
  %2835 = vmatpush.msra.mxu0 %v1028
  %2836 = vmatpush.msra.mxu0 %v1027
  %2837 = vmatpush.msra.mxu0 %v1026
  %2838 = vmatmul.f32.gmra.mxu0 %v30
  %v2839 = vpop.f32.mrf.mxu0
  %v2840 = vadd.f32 %v2796, %v2839
  %2841 = vmatmul.f32.gmra.mxu0 %v109
  %v2842 = vpop.f32.mrf.mxu0
  %v2843 = vadd.f32 %v2799, %v2842
  %2844 = vmatmul.f32.gmra.mxu0 %v188
  %v2845 = vpop.f32.mrf.mxu0
  %v2846 = vadd.f32 %v2802, %v2845
  %2847 = vmatmul.f32.gmra.mxu0 %v267
  %v2848 = vpop.f32.mrf.mxu0
  %v2849 = vadd.f32 %v2805, %v2848
  %2850 = vmatmul.f32.gmra.mxu0 %v346
  %v2851 = vpop.f32.mrf.mxu0
  %v2852 = vadd.f32 %v2808, %v2851
  %2853 = vmatmul.f32.gmra.mxu0 %v425
  %v2854 = vpop.f32.mrf.mxu0
  %v2855 = vadd.f32 %v2811, %v2854
  %2856 = vmatmul.f32.gmra.mxu0 %v504
  %v2857 = vpop.f32.mrf.mxu0
  %v2858 = vadd.f32 %v2814, %v2857
  %2859 = vmatmul.f32.gmra.mxu0 %v583
  %v2860 = vpop.f32.mrf.mxu0
  %v2861 = vadd.f32 %v2817, %v2860
  %2862 = vmatmul.f32.gmra.mxu0 %v662
  %v2863 = vpop.f32.mrf.mxu0
  %v2864 = vadd.f32 %v2820, %v2863
  %2865 = vdwg.mxu0
  %2866 = vmatpush.msra.mxu0 %v1057
  %2867 = vmatpush.msra.mxu0 %v1056
  %2868 = vmatpush.msra.mxu0 %v1055
  %2869 = vmatpush.msra.mxu0 %v1054
  %2870 = vmatpush.msra.mxu0 %v1053
  %2871 = vmatpush.msra.mxu0 %v1052
  %2872 = vmatpush.msra.mxu0 %v1051
  %2873 = vmatpush.msra.mxu0 %v1050
  %2874 = vmatpush.msra.mxu0 %v1049
  %2875 = vmatpush.msra.mxu0 %v1048
  %2876 = vmatpush.msra.mxu0 %v1047
  %2877 = vmatpush.msra.mxu0 %v1046
  %2878 = vmatpush.msra.mxu0 %v1045
  %2879 = vmatpush.msra.mxu0 %v1044
  %2880 = vmatpush.msra.mxu0 %v1043
  %2881 = vmatpush.msra.mxu0 %v1042
  %2882 = vmatmul.f32.gmra.mxu0 %v31
  %v2883 = vpop.f32.mrf.mxu0
  %v2884 = vadd.f32 %v2840, %v2883
  %2885 = vmatmul.f32.gmra.mxu0 %v110
  %v2886 = vpop.f32.mrf.mxu0
  %v2887 = vadd.f32 %v2843, %v2886
  %2888 = vmatmul.f32.gmra.mxu0 %v189
  %v2889 = vpop.f32.mrf.mxu0
  %v2890 = vadd.f32 %v2846, %v2889
  %2891 = vmatmul.f32.gmra.mxu0 %v268
  %v2892 = vpop.f32.mrf.mxu0
  %v2893 = vadd.f32 %v2849, %v2892
  %2894 = vmatmul.f32.gmra.mxu0 %v347
  %v2895 = vpop.f32.mrf.mxu0
  %v2896 = vadd.f32 %v2852, %v2895
  %2897 = vmatmul.f32.gmra.mxu0 %v426
  %v2898 = vpop.f32.mrf.mxu0
  %v2899 = vadd.f32 %v2855, %v2898
  %2900 = vmatmul.f32.gmra.mxu0 %v505
  %v2901 = vpop.f32.mrf.mxu0
  %v2902 = vadd.f32 %v2858, %v2901
  %2903 = vmatmul.f32.gmra.mxu0 %v584
  %v2904 = vpop.f32.mrf.mxu0
  %v2905 = vadd.f32 %v2861, %v2904
  %2906 = vmatmul.f32.gmra.mxu0 %v663
  %v2907 = vpop.f32.mrf.mxu0
  %v2908 = vadd.f32 %v2864, %v2907
  %2909 = vdwg.mxu0
  %2910 = vmatpush.msra.mxu0 %v1073
  %2911 = vmatpush.msra.mxu0 %v1072
  %2912 = vmatpush.msra.mxu0 %v1071
  %2913 = vmatpush.msra.mxu0 %v1070
  %2914 = vmatpush.msra.mxu0 %v1069
  %2915 = vmatpush.msra.mxu0 %v1068
  %2916 = vmatpush.msra.mxu0 %v1067
  %2917 = vmatpush.msra.mxu0 %v1066
  %2918 = vmatpush.msra.mxu0 %v1065
  %2919 = vmatpush.msra.mxu0 %v1064
  %2920 = vmatpush.msra.mxu0 %v1063
  %2921 = vmatpush.msra.mxu0 %v1062
  %2922 = vmatpush.msra.mxu0 %v1061
  %2923 = vmatpush.msra.mxu0 %v1060
  %2924 = vmatpush.msra.mxu0 %v1059
  %2925 = vmatpush.msra.mxu0 %v1058
  %2926 = vmatmul.f32.gmra.mxu0 %v32
  %v2927 = vpop.f32.mrf.mxu0
  %v2928 = vadd.f32 %v2884, %v2927
  %2929 = vmatmul.f32.gmra.mxu0 %v111
  %v2930 = vpop.f32.mrf.mxu0
  %v2931 = vadd.f32 %v2887, %v2930
  %2932 = vmatmul.f32.gmra.mxu0 %v190
  %v2933 = vpop.f32.mrf.mxu0
  %v2934 = vadd.f32 %v2890, %v2933
  %2935 = vmatmul.f32.gmra.mxu0 %v269
  %v2936 = vpop.f32.mrf.mxu0
  %v2937 = vadd.f32 %v2893, %v2936
  %2938 = vmatmul.f32.gmra.mxu0 %v348
  %v2939 = vpop.f32.mrf.mxu0
  %v2940 = vadd.f32 %v2896, %v2939
  %2941 = vmatmul.f32.gmra.mxu0 %v427
  %v2942 = vpop.f32.mrf.mxu0
  %v2943 = vadd.f32 %v2899, %v2942
  %2944 = vmatmul.f32.gmra.mxu0 %v506
  %v2945 = vpop.f32.mrf.mxu0
  %v2946 = vadd.f32 %v2902, %v2945
  %2947 = vmatmul.f32.gmra.mxu0 %v585
  %v2948 = vpop.f32.mrf.mxu0
  %v2949 = vadd.f32 %v2905, %v2948
  %2950 = vmatmul.f32.gmra.mxu0 %v664
  %v2951 = vpop.f32.mrf.mxu0
  %v2952 = vadd.f32 %v2908, %v2951
  %2953 = vdwg.mxu0
  %2954 = vmatpush.msra.mxu0 %v1089
  %2955 = vmatpush.msra.mxu0 %v1088
  %2956 = vmatpush.msra.mxu0 %v1087
  %2957 = vmatpush.msra.mxu0 %v1086
  %2958 = vmatpush.msra.mxu0 %v1085
  %2959 = vmatpush.msra.mxu0 %v1084
  %2960 = vmatpush.msra.mxu0 %v1083
  %2961 = vmatpush.msra.mxu0 %v1082
  %2962 = vmatpush.msra.mxu0 %v1081
  %2963 = vmatpush.msra.mxu0 %v1080
  %2964 = vmatpush.msra.mxu0 %v1079
  %2965 = vmatpush.msra.mxu0 %v1078
  %2966 = vmatpush.msra.mxu0 %v1077
  %2967 = vmatpush.msra.mxu0 %v1076
  %2968 = vmatpush.msra.mxu0 %v1075
  %2969 = vmatpush.msra.mxu0 %v1074
  %2970 = vmatmul.f32.gmra.mxu0 %v33
  %v2971 = vpop.f32.mrf.mxu0
  %v2972 = vadd.f32 %v2928, %v2971
  %2973 = vmatmul.f32.gmra.mxu0 %v112
  %v2974 = vpop.f32.mrf.mxu0
  %v2975 = vadd.f32 %v2931, %v2974
  %2976 = vmatmul.f32.gmra.mxu0 %v191
  %v2977 = vpop.f32.mrf.mxu0
  %v2978 = vadd.f32 %v2934, %v2977
  %2979 = vmatmul.f32.gmra.mxu0 %v270
  %v2980 = vpop.f32.mrf.mxu0
  %v2981 = vadd.f32 %v2937, %v2980
  %2982 = vmatmul.f32.gmra.mxu0 %v349
  %v2983 = vpop.f32.mrf.mxu0
  %v2984 = vadd.f32 %v2940, %v2983
  %2985 = vmatmul.f32.gmra.mxu0 %v428
  %v2986 = vpop.f32.mrf.mxu0
  %v2987 = vadd.f32 %v2943, %v2986
  %2988 = vmatmul.f32.gmra.mxu0 %v507
  %v2989 = vpop.f32.mrf.mxu0
  %v2990 = vadd.f32 %v2946, %v2989
  %2991 = vmatmul.f32.gmra.mxu0 %v586
  %v2992 = vpop.f32.mrf.mxu0
  %v2993 = vadd.f32 %v2949, %v2992
  %2994 = vmatmul.f32.gmra.mxu0 %v665
  %v2995 = vpop.f32.mrf.mxu0
  %v2996 = vadd.f32 %v2952, %v2995
  %2997 = vdwg.mxu0
  %2998 = vmatpush.msra.mxu0 %v1105
  %2999 = vmatpush.msra.mxu0 %v1104
  %3000 = vmatpush.msra.mxu0 %v1103
  %3001 = vmatpush.msra.mxu0 %v1102
  %3002 = vmatpush.msra.mxu0 %v1101
  %3003 = vmatpush.msra.mxu0 %v1100
  %3004 = vmatpush.msra.mxu0 %v1099
  %3005 = vmatpush.msra.mxu0 %v1098
  %3006 = vmatpush.msra.mxu0 %v1097
  %3007 = vmatpush.msra.mxu0 %v1096
  %3008 = vmatpush.msra.mxu0 %v1095
  %3009 = vmatpush.msra.mxu0 %v1094
  %3010 = vmatpush.msra.mxu0 %v1093
  %3011 = vmatpush.msra.mxu0 %v1092
  %3012 = vmatpush.msra.mxu0 %v1091
  %3013 = vmatpush.msra.mxu0 %v1090
  %3014 = vmatmul.f32.gmra.mxu0 %v34
  %v3015 = vpop.f32.mrf.mxu0
  %v3016 = vadd.f32 %v2972, %v3015
  %3017 = vmatmul.f32.gmra.mxu0 %v113
  %v3018 = vpop.f32.mrf.mxu0
  %v3019 = vadd.f32 %v2975, %v3018
  %3020 = vmatmul.f32.gmra.mxu0 %v192
  %v3021 = vpop.f32.mrf.mxu0
  %v3022 = vadd.f32 %v2978, %v3021
  %3023 = vmatmul.f32.gmra.mxu0 %v271
  %v3024 = vpop.f32.mrf.mxu0
  %v3025 = vadd.f32 %v2981, %v3024
  %3026 = vmatmul.f32.gmra.mxu0 %v350
  %v3027 = vpop.f32.mrf.mxu0
  %v3028 = vadd.f32 %v2984, %v3027
  %3029 = vmatmul.f32.gmra.mxu0 %v429
  %v3030 = vpop.f32.mrf.mxu0
  %v3031 = vadd.f32 %v2987, %v3030
  %3032 = vmatmul.f32.gmra.mxu0 %v508
  %v3033 = vpop.f32.mrf.mxu0
  %v3034 = vadd.f32 %v2990, %v3033
  %3035 = vmatmul.f32.gmra.mxu0 %v587
  %v3036 = vpop.f32.mrf.mxu0
  %v3037 = vadd.f32 %v2993, %v3036
  %3038 = vmatmul.f32.gmra.mxu0 %v666
  %v3039 = vpop.f32.mrf.mxu0
  %v3040 = vadd.f32 %v2996, %v3039
  %3041 = vdwg.mxu0
  %3042 = vmatpush.msra.mxu0 %v1121
  %3043 = vmatpush.msra.mxu0 %v1120
  %3044 = vmatpush.msra.mxu0 %v1119
  %3045 = vmatpush.msra.mxu0 %v1118
  %3046 = vmatpush.msra.mxu0 %v1117
  %3047 = vmatpush.msra.mxu0 %v1116
  %3048 = vmatpush.msra.mxu0 %v1115
  %3049 = vmatpush.msra.mxu0 %v1114
  %3050 = vmatpush.msra.mxu0 %v1113
  %3051 = vmatpush.msra.mxu0 %v1112
  %3052 = vmatpush.msra.mxu0 %v1111
  %3053 = vmatpush.msra.mxu0 %v1110
  %3054 = vmatpush.msra.mxu0 %v1109
  %3055 = vmatpush.msra.mxu0 %v1108
  %3056 = vmatpush.msra.mxu0 %v1107
  %3057 = vmatpush.msra.mxu0 %v1106
  %3058 = vmatmul.f32.gmra.mxu0 %v35
  %v3059 = vpop.f32.mrf.mxu0
  %v3060 = vadd.f32 %v3016, %v3059
  %3061 = vmatmul.f32.gmra.mxu0 %v114
  %v3062 = vpop.f32.mrf.mxu0
  %v3063 = vadd.f32 %v3019, %v3062
  %3064 = vmatmul.f32.gmra.mxu0 %v193
  %v3065 = vpop.f32.mrf.mxu0
  %v3066 = vadd.f32 %v3022, %v3065
  %3067 = vmatmul.f32.gmra.mxu0 %v272
  %v3068 = vpop.f32.mrf.mxu0
  %v3069 = vadd.f32 %v3025, %v3068
  %3070 = vmatmul.f32.gmra.mxu0 %v351
  %v3071 = vpop.f32.mrf.mxu0
  %v3072 = vadd.f32 %v3028, %v3071
  %3073 = vmatmul.f32.gmra.mxu0 %v430
  %v3074 = vpop.f32.mrf.mxu0
  %v3075 = vadd.f32 %v3031, %v3074
  %3076 = vmatmul.f32.gmra.mxu0 %v509
  %v3077 = vpop.f32.mrf.mxu0
  %v3078 = vadd.f32 %v3034, %v3077
  %3079 = vmatmul.f32.gmra.mxu0 %v588
  %v3080 = vpop.f32.mrf.mxu0
  %v3081 = vadd.f32 %v3037, %v3080
  %3082 = vmatmul.f32.gmra.mxu0 %v667
  %v3083 = vpop.f32.mrf.mxu0
  %v3084 = vadd.f32 %v3040, %v3083
  %3085 = vdwg.mxu0
  %3086 = vmatpush.msra.mxu0 %v1137
  %3087 = vmatpush.msra.mxu0 %v1136
  %3088 = vmatpush.msra.mxu0 %v1135
  %3089 = vmatpush.msra.mxu0 %v1134
  %3090 = vmatpush.msra.mxu0 %v1133
  %3091 = vmatpush.msra.mxu0 %v1132
  %3092 = vmatpush.msra.mxu0 %v1131
  %3093 = vmatpush.msra.mxu0 %v1130
  %3094 = vmatpush.msra.mxu0 %v1129
  %3095 = vmatpush.msra.mxu0 %v1128
  %3096 = vmatpush.msra.mxu0 %v1127
  %3097 = vmatpush.msra.mxu0 %v1126
  %3098 = vmatpush.msra.mxu0 %v1125
  %3099 = vmatpush.msra.mxu0 %v1124
  %3100 = vmatpush.msra.mxu0 %v1123
  %3101 = vmatpush.msra.mxu0 %v1122
  %3102 = vmatmul.f32.gmra.mxu0 %v36
  %v3103 = vpop.f32.mrf.mxu0
  %v3104 = vadd.f32 %v3060, %v3103
  %3105 = vmatmul.f32.gmra.mxu0 %v115
  %v3106 = vpop.f32.mrf.mxu0
  %v3107 = vadd.f32 %v3063, %v3106
  %3108 = vmatmul.f32.gmra.mxu0 %v194
  %v3109 = vpop.f32.mrf.mxu0
  %v3110 = vadd.f32 %v3066, %v3109
  %3111 = vmatmul.f32.gmra.mxu0 %v273
  %v3112 = vpop.f32.mrf.mxu0
  %v3113 = vadd.f32 %v3069, %v3112
  %3114 = vmatmul.f32.gmra.mxu0 %v352
  %v3115 = vpop.f32.mrf.mxu0
  %v3116 = vadd.f32 %v3072, %v3115
  %3117 = vmatmul.f32.gmra.mxu0 %v431
  %v3118 = vpop.f32.mrf.mxu0
  %v3119 = vadd.f32 %v3075, %v3118
  %3120 = vmatmul.f32.gmra.mxu0 %v510
  %v3121 = vpop.f32.mrf.mxu0
  %v3122 = vadd.f32 %v3078, %v3121
  %3123 = vmatmul.f32.gmra.mxu0 %v589
  %v3124 = vpop.f32.mrf.mxu0
  %v3125 = vadd.f32 %v3081, %v3124
  %3126 = vmatmul.f32.gmra.mxu0 %v668
  %v3127 = vpop.f32.mrf.mxu0
  %v3128 = vadd.f32 %v3084, %v3127
  %3129 = vdwg.mxu0
  %3130 = vmatpush.msra.mxu0 %v1153
  %3131 = vmatpush.msra.mxu0 %v1152
  %3132 = vmatpush.msra.mxu0 %v1151
  %3133 = vmatpush.msra.mxu0 %v1150
  %3134 = vmatpush.msra.mxu0 %v1149
  %3135 = vmatpush.msra.mxu0 %v1148
  %3136 = vmatpush.msra.mxu0 %v1147
  %3137 = vmatpush.msra.mxu0 %v1146
  %3138 = vmatpush.msra.mxu0 %v1145
  %3139 = vmatpush.msra.mxu0 %v1144
  %3140 = vmatpush.msra.mxu0 %v1143
  %3141 = vmatpush.msra.mxu0 %v1142
  %3142 = vmatpush.msra.mxu0 %v1141
  %3143 = vmatpush.msra.mxu0 %v1140
  %3144 = vmatpush.msra.mxu0 %v1139
  %3145 = vmatpush.msra.mxu0 %v1138
  %3146 = vmatmul.f32.gmra.mxu0 %v37
  %v3147 = vpop.f32.mrf.mxu0
  %v3148 = vadd.f32 %v3104, %v3147
  %3149 = vmatmul.f32.gmra.mxu0 %v116
  %v3150 = vpop.f32.mrf.mxu0
  %v3151 = vadd.f32 %v3107, %v3150
  %3152 = vmatmul.f32.gmra.mxu0 %v195
  %v3153 = vpop.f32.mrf.mxu0
  %v3154 = vadd.f32 %v3110, %v3153
  %3155 = vmatmul.f32.gmra.mxu0 %v274
  %v3156 = vpop.f32.mrf.mxu0
  %v3157 = vadd.f32 %v3113, %v3156
  %3158 = vmatmul.f32.gmra.mxu0 %v353
  %v3159 = vpop.f32.mrf.mxu0
  %v3160 = vadd.f32 %v3116, %v3159
  %3161 = vmatmul.f32.gmra.mxu0 %v432
  %v3162 = vpop.f32.mrf.mxu0
  %v3163 = vadd.f32 %v3119, %v3162
  %3164 = vmatmul.f32.gmra.mxu0 %v511
  %v3165 = vpop.f32.mrf.mxu0
  %v3166 = vadd.f32 %v3122, %v3165
  %3167 = vmatmul.f32.gmra.mxu0 %v590
  %v3168 = vpop.f32.mrf.mxu0
  %v3169 = vadd.f32 %v3125, %v3168
  %3170 = vmatmul.f32.gmra.mxu0 %v669
  %v3171 = vpop.f32.mrf.mxu0
  %v3172 = vadd.f32 %v3128, %v3171
  %3173 = vdwg.mxu0
  %3174 = vmatpush.msra.mxu0 %v1169
  %3175 = vmatpush.msra.mxu0 %v1168
  %3176 = vmatpush.msra.mxu0 %v1167
  %3177 = vmatpush.msra.mxu0 %v1166
  %3178 = vmatpush.msra.mxu0 %v1165
  %3179 = vmatpush.msra.mxu0 %v1164
  %3180 = vmatpush.msra.mxu0 %v1163
  %3181 = vmatpush.msra.mxu0 %v1162
  %3182 = vmatpush.msra.mxu0 %v1161
  %3183 = vmatpush.msra.mxu0 %v1160
  %3184 = vmatpush.msra.mxu0 %v1159
  %3185 = vmatpush.msra.mxu0 %v1158
  %3186 = vmatpush.msra.mxu0 %v1157
  %3187 = vmatpush.msra.mxu0 %v1156
  %3188 = vmatpush.msra.mxu0 %v1155
  %3189 = vmatpush.msra.mxu0 %v1154
  %3190 = vmatmul.f32.gmra.mxu0 %v38
  %v3191 = vpop.f32.mrf.mxu0
  %v3192 = vadd.f32 %v3148, %v3191
  %3193 = vmatmul.f32.gmra.mxu0 %v117
  %v3194 = vpop.f32.mrf.mxu0
  %v3195 = vadd.f32 %v3151, %v3194
  %3196 = vmatmul.f32.gmra.mxu0 %v196
  %v3197 = vpop.f32.mrf.mxu0
  %v3198 = vadd.f32 %v3154, %v3197
  %3199 = vmatmul.f32.gmra.mxu0 %v275
  %v3200 = vpop.f32.mrf.mxu0
  %v3201 = vadd.f32 %v3157, %v3200
  %3202 = vmatmul.f32.gmra.mxu0 %v354
  %v3203 = vpop.f32.mrf.mxu0
  %v3204 = vadd.f32 %v3160, %v3203
  %3205 = vmatmul.f32.gmra.mxu0 %v433
  %v3206 = vpop.f32.mrf.mxu0
  %v3207 = vadd.f32 %v3163, %v3206
  %3208 = vmatmul.f32.gmra.mxu0 %v512
  %v3209 = vpop.f32.mrf.mxu0
  %v3210 = vadd.f32 %v3166, %v3209
  %3211 = vmatmul.f32.gmra.mxu0 %v591
  %v3212 = vpop.f32.mrf.mxu0
  %v3213 = vadd.f32 %v3169, %v3212
  %3214 = vmatmul.f32.gmra.mxu0 %v670
  %v3215 = vpop.f32.mrf.mxu0
  %v3216 = vadd.f32 %v3172, %v3215
  %3217 = vdwg.mxu0
  %3218 = vmatpush.msra.mxu0 %v1185
  %3219 = vmatpush.msra.mxu0 %v1184
  %3220 = vmatpush.msra.mxu0 %v1183
  %3221 = vmatpush.msra.mxu0 %v1182
  %3222 = vmatpush.msra.mxu0 %v1181
  %3223 = vmatpush.msra.mxu0 %v1180
  %3224 = vmatpush.msra.mxu0 %v1179
  %3225 = vmatpush.msra.mxu0 %v1178
  %3226 = vmatpush.msra.mxu0 %v1177
  %3227 = vmatpush.msra.mxu0 %v1176
  %3228 = vmatpush.msra.mxu0 %v1175
  %3229 = vmatpush.msra.mxu0 %v1174
  %3230 = vmatpush.msra.mxu0 %v1173
  %3231 = vmatpush.msra.mxu0 %v1172
  %3232 = vmatpush.msra.mxu0 %v1171
  %3233 = vmatpush.msra.mxu0 %v1170
  %3234 = vmatmul.f32.gmra.mxu0 %v39
  %v3235 = vpop.f32.mrf.mxu0
  %v3236 = vadd.f32 %v3192, %v3235
  %3237 = vmatmul.f32.gmra.mxu0 %v118
  %v3238 = vpop.f32.mrf.mxu0
  %v3239 = vadd.f32 %v3195, %v3238
  %3240 = vmatmul.f32.gmra.mxu0 %v197
  %v3241 = vpop.f32.mrf.mxu0
  %v3242 = vadd.f32 %v3198, %v3241
  %3243 = vmatmul.f32.gmra.mxu0 %v276
  %v3244 = vpop.f32.mrf.mxu0
  %v3245 = vadd.f32 %v3201, %v3244
  %3246 = vmatmul.f32.gmra.mxu0 %v355
  %v3247 = vpop.f32.mrf.mxu0
  %v3248 = vadd.f32 %v3204, %v3247
  %3249 = vmatmul.f32.gmra.mxu0 %v434
  %v3250 = vpop.f32.mrf.mxu0
  %v3251 = vadd.f32 %v3207, %v3250
  %3252 = vmatmul.f32.gmra.mxu0 %v513
  %v3253 = vpop.f32.mrf.mxu0
  %v3254 = vadd.f32 %v3210, %v3253
  %3255 = vmatmul.f32.gmra.mxu0 %v592
  %v3256 = vpop.f32.mrf.mxu0
  %v3257 = vadd.f32 %v3213, %v3256
  %3258 = vmatmul.f32.gmra.mxu0 %v671
  %v3259 = vpop.f32.mrf.mxu0
  %v3260 = vadd.f32 %v3216, %v3259
  %3261 = vdwg.mxu0
  %3262 = vmatpush.msra.mxu0 %v1201
  %3263 = vmatpush.msra.mxu0 %v1200
  %3264 = vmatpush.msra.mxu0 %v1199
  %3265 = vmatpush.msra.mxu0 %v1198
  %3266 = vmatpush.msra.mxu0 %v1197
  %3267 = vmatpush.msra.mxu0 %v1196
  %3268 = vmatpush.msra.mxu0 %v1195
  %3269 = vmatpush.msra.mxu0 %v1194
  %3270 = vmatpush.msra.mxu0 %v1193
  %3271 = vmatpush.msra.mxu0 %v1192
  %3272 = vmatpush.msra.mxu0 %v1191
  %3273 = vmatpush.msra.mxu0 %v1190
  %3274 = vmatpush.msra.mxu0 %v1189
  %3275 = vmatpush.msra.mxu0 %v1188
  %3276 = vmatpush.msra.mxu0 %v1187
  %3277 = vmatpush.msra.mxu0 %v1186
  %3278 = vmatmul.f32.gmra.mxu0 %v40
  %v3279 = vpop.f32.mrf.mxu0
  %v3280 = vadd.f32 %v3236, %v3279
  %3281 = vmatmul.f32.gmra.mxu0 %v119
  %v3282 = vpop.f32.mrf.mxu0
  %v3283 = vadd.f32 %v3239, %v3282
  %3284 = vmatmul.f32.gmra.mxu0 %v198
  %v3285 = vpop.f32.mrf.mxu0
  %v3286 = vadd.f32 %v3242, %v3285
  %3287 = vmatmul.f32.gmra.mxu0 %v277
  %v3288 = vpop.f32.mrf.mxu0
  %v3289 = vadd.f32 %v3245, %v3288
  %3290 = vmatmul.f32.gmra.mxu0 %v356
  %v3291 = vpop.f32.mrf.mxu0
  %v3292 = vadd.f32 %v3248, %v3291
  %3293 = vmatmul.f32.gmra.mxu0 %v435
  %v3294 = vpop.f32.mrf.mxu0
  %v3295 = vadd.f32 %v3251, %v3294
  %3296 = vmatmul.f32.gmra.mxu0 %v514
  %v3297 = vpop.f32.mrf.mxu0
  %v3298 = vadd.f32 %v3254, %v3297
  %3299 = vmatmul.f32.gmra.mxu0 %v593
  %v3300 = vpop.f32.mrf.mxu0
  %v3301 = vadd.f32 %v3257, %v3300
  %3302 = vmatmul.f32.gmra.mxu0 %v672
  %v3303 = vpop.f32.mrf.mxu0
  %v3304 = vadd.f32 %v3260, %v3303
  %3305 = vdwg.mxu0
  %3306 = vmatpush.msra.mxu0 %v1217
  %3307 = vmatpush.msra.mxu0 %v1216
  %3308 = vmatpush.msra.mxu0 %v1215
  %3309 = vmatpush.msra.mxu0 %v1214
  %3310 = vmatpush.msra.mxu0 %v1213
  %3311 = vmatpush.msra.mxu0 %v1212
  %3312 = vmatpush.msra.mxu0 %v1211
  %3313 = vmatpush.msra.mxu0 %v1210
  %3314 = vmatpush.msra.mxu0 %v1209
  %3315 = vmatpush.msra.mxu0 %v1208
  %3316 = vmatpush.msra.mxu0 %v1207
  %3317 = vmatpush.msra.mxu0 %v1206
  %3318 = vmatpush.msra.mxu0 %v1205
  %3319 = vmatpush.msra.mxu0 %v1204
  %3320 = vmatpush.msra.mxu0 %v1203
  %3321 = vmatpush.msra.mxu0 %v1202
  %3322 = vmatmul.f32.gmra.mxu0 %v41
  %v3323 = vpop.f32.mrf.mxu0
  %v3324 = vadd.f32 %v3280, %v3323
  %3325 = vmatmul.f32.gmra.mxu0 %v120
  %v3326 = vpop.f32.mrf.mxu0
  %v3327 = vadd.f32 %v3283, %v3326
  %3328 = vmatmul.f32.gmra.mxu0 %v199
  %v3329 = vpop.f32.mrf.mxu0
  %v3330 = vadd.f32 %v3286, %v3329
  %3331 = vmatmul.f32.gmra.mxu0 %v278
  %v3332 = vpop.f32.mrf.mxu0
  %v3333 = vadd.f32 %v3289, %v3332
  %3334 = vmatmul.f32.gmra.mxu0 %v357
  %v3335 = vpop.f32.mrf.mxu0
  %v3336 = vadd.f32 %v3292, %v3335
  %3337 = vmatmul.f32.gmra.mxu0 %v436
  %v3338 = vpop.f32.mrf.mxu0
  %v3339 = vadd.f32 %v3295, %v3338
  %3340 = vmatmul.f32.gmra.mxu0 %v515
  %v3341 = vpop.f32.mrf.mxu0
  %v3342 = vadd.f32 %v3298, %v3341
  %3343 = vmatmul.f32.gmra.mxu0 %v594
  %v3344 = vpop.f32.mrf.mxu0
  %v3345 = vadd.f32 %v3301, %v3344
  %3346 = vmatmul.f32.gmra.mxu0 %v673
  %v3347 = vpop.f32.mrf.mxu0
  %v3348 = vadd.f32 %v3304, %v3347
  %3349 = vdwg.mxu0
  %3350 = vmatpush.msra.mxu0 %v1233
  %3351 = vmatpush.msra.mxu0 %v1232
  %3352 = vmatpush.msra.mxu0 %v1231
  %3353 = vmatpush.msra.mxu0 %v1230
  %3354 = vmatpush.msra.mxu0 %v1229
  %3355 = vmatpush.msra.mxu0 %v1228
  %3356 = vmatpush.msra.mxu0 %v1227
  %3357 = vmatpush.msra.mxu0 %v1226
  %3358 = vmatpush.msra.mxu0 %v1225
  %3359 = vmatpush.msra.mxu0 %v1224
  %3360 = vmatpush.msra.mxu0 %v1223
  %3361 = vmatpush.msra.mxu0 %v1222
  %3362 = vmatpush.msra.mxu0 %v1221
  %3363 = vmatpush.msra.mxu0 %v1220
  %3364 = vmatpush.msra.mxu0 %v1219
  %3365 = vmatpush.msra.mxu0 %v1218
  %3366 = vmatmul.f32.gmra.mxu0 %v42
  %v3367 = vpop.f32.mrf.mxu0
  %v3368 = vadd.f32 %v3324, %v3367
  %3369 = vmatmul.f32.gmra.mxu0 %v121
  %v3370 = vpop.f32.mrf.mxu0
  %v3371 = vadd.f32 %v3327, %v3370
  %3372 = vmatmul.f32.gmra.mxu0 %v200
  %v3373 = vpop.f32.mrf.mxu0
  %v3374 = vadd.f32 %v3330, %v3373
  %3375 = vmatmul.f32.gmra.mxu0 %v279
  %v3376 = vpop.f32.mrf.mxu0
  %v3377 = vadd.f32 %v3333, %v3376
  %3378 = vmatmul.f32.gmra.mxu0 %v358
  %v3379 = vpop.f32.mrf.mxu0
  %v3380 = vadd.f32 %v3336, %v3379
  %3381 = vmatmul.f32.gmra.mxu0 %v437
  %v3382 = vpop.f32.mrf.mxu0
  %v3383 = vadd.f32 %v3339, %v3382
  %3384 = vmatmul.f32.gmra.mxu0 %v516
  %v3385 = vpop.f32.mrf.mxu0
  %v3386 = vadd.f32 %v3342, %v3385
  %3387 = vmatmul.f32.gmra.mxu0 %v595
  %v3388 = vpop.f32.mrf.mxu0
  %v3389 = vadd.f32 %v3345, %v3388
  %3390 = vmatmul.f32.gmra.mxu0 %v674
  %v3391 = vpop.f32.mrf.mxu0
  %v3392 = vadd.f32 %v3348, %v3391
  %3393 = vdwg.mxu0
  %3394 = vmatpush.msra.mxu0 %v1249
  %3395 = vmatpush.msra.mxu0 %v1248
  %3396 = vmatpush.msra.mxu0 %v1247
  %3397 = vmatpush.msra.mxu0 %v1246
  %3398 = vmatpush.msra.mxu0 %v1245
  %3399 = vmatpush.msra.mxu0 %v1244
  %3400 = vmatpush.msra.mxu0 %v1243
  %3401 = vmatpush.msra.mxu0 %v1242
  %3402 = vmatpush.msra.mxu0 %v1241
  %3403 = vmatpush.msra.mxu0 %v1240
  %3404 = vmatpush.msra.mxu0 %v1239
  %3405 = vmatpush.msra.mxu0 %v1238
  %3406 = vmatpush.msra.mxu0 %v1237
  %3407 = vmatpush.msra.mxu0 %v1236
  %3408 = vmatpush.msra.mxu0 %v1235
  %3409 = vmatpush.msra.mxu0 %v1234
  %3410 = vmatmul.f32.gmra.mxu0 %v43
  %v3411 = vpop.f32.mrf.mxu0
  %v3412 = vadd.f32 %v3368, %v3411
  %3413 = vmatmul.f32.gmra.mxu0 %v122
  %v3414 = vpop.f32.mrf.mxu0
  %v3415 = vadd.f32 %v3371, %v3414
  %3416 = vmatmul.f32.gmra.mxu0 %v201
  %v3417 = vpop.f32.mrf.mxu0
  %v3418 = vadd.f32 %v3374, %v3417
  %3419 = vmatmul.f32.gmra.mxu0 %v280
  %v3420 = vpop.f32.mrf.mxu0
  %v3421 = vadd.f32 %v3377, %v3420
  %3422 = vmatmul.f32.gmra.mxu0 %v359
  %v3423 = vpop.f32.mrf.mxu0
  %v3424 = vadd.f32 %v3380, %v3423
  %3425 = vmatmul.f32.gmra.mxu0 %v438
  %v3426 = vpop.f32.mrf.mxu0
  %v3427 = vadd.f32 %v3383, %v3426
  %3428 = vmatmul.f32.gmra.mxu0 %v517
  %v3429 = vpop.f32.mrf.mxu0
  %v3430 = vadd.f32 %v3386, %v3429
  %3431 = vmatmul.f32.gmra.mxu0 %v596
  %v3432 = vpop.f32.mrf.mxu0
  %v3433 = vadd.f32 %v3389, %v3432
  %3434 = vmatmul.f32.gmra.mxu0 %v675
  %v3435 = vpop.f32.mrf.mxu0
  %v3436 = vadd.f32 %v3392, %v3435
  %3437 = vdwg.mxu0
  %3438 = vmatpush.msra.mxu0 %v1265
  %3439 = vmatpush.msra.mxu0 %v1264
  %3440 = vmatpush.msra.mxu0 %v1263
  %3441 = vmatpush.msra.mxu0 %v1262
  %3442 = vmatpush.msra.mxu0 %v1261
  %3443 = vmatpush.msra.mxu0 %v1260
  %3444 = vmatpush.msra.mxu0 %v1259
  %3445 = vmatpush.msra.mxu0 %v1258
  %3446 = vmatpush.msra.mxu0 %v1257
  %3447 = vmatpush.msra.mxu0 %v1256
  %3448 = vmatpush.msra.mxu0 %v1255
  %3449 = vmatpush.msra.mxu0 %v1254
  %3450 = vmatpush.msra.mxu0 %v1253
  %3451 = vmatpush.msra.mxu0 %v1252
  %3452 = vmatpush.msra.mxu0 %v1251
  %3453 = vmatpush.msra.mxu0 %v1250
  %3454 = vmatmul.f32.gmra.mxu0 %v44
  %v3455 = vpop.f32.mrf.mxu0
  %v3456 = vadd.f32 %v3412, %v3455
  %3457 = vmatmul.f32.gmra.mxu0 %v123
  %v3458 = vpop.f32.mrf.mxu0
  %v3459 = vadd.f32 %v3415, %v3458
  %3460 = vmatmul.f32.gmra.mxu0 %v202
  %v3461 = vpop.f32.mrf.mxu0
  %v3462 = vadd.f32 %v3418, %v3461
  %3463 = vmatmul.f32.gmra.mxu0 %v281
  %v3464 = vpop.f32.mrf.mxu0
  %v3465 = vadd.f32 %v3421, %v3464
  %3466 = vmatmul.f32.gmra.mxu0 %v360
  %v3467 = vpop.f32.mrf.mxu0
  %v3468 = vadd.f32 %v3424, %v3467
  %3469 = vmatmul.f32.gmra.mxu0 %v439
  %v3470 = vpop.f32.mrf.mxu0
  %v3471 = vadd.f32 %v3427, %v3470
  %3472 = vmatmul.f32.gmra.mxu0 %v518
  %v3473 = vpop.f32.mrf.mxu0
  %v3474 = vadd.f32 %v3430, %v3473
  %3475 = vmatmul.f32.gmra.mxu0 %v597
  %v3476 = vpop.f32.mrf.mxu0
  %v3477 = vadd.f32 %v3433, %v3476
  %3478 = vmatmul.f32.gmra.mxu0 %v676
  %v3479 = vpop.f32.mrf.mxu0
  %v3480 = vadd.f32 %v3436, %v3479
  %3481 = vdwg.mxu0
  %3482 = vmatpush.msra.mxu0 %v1281
  %3483 = vmatpush.msra.mxu0 %v1280
  %3484 = vmatpush.msra.mxu0 %v1279
  %3485 = vmatpush.msra.mxu0 %v1278
  %3486 = vmatpush.msra.mxu0 %v1277
  %3487 = vmatpush.msra.mxu0 %v1276
  %3488 = vmatpush.msra.mxu0 %v1275
  %3489 = vmatpush.msra.mxu0 %v1274
  %3490 = vmatpush.msra.mxu0 %v1273
  %3491 = vmatpush.msra.mxu0 %v1272
  %3492 = vmatpush.msra.mxu0 %v1271
  %3493 = vmatpush.msra.mxu0 %v1270
  %3494 = vmatpush.msra.mxu0 %v1269
  %3495 = vmatpush.msra.mxu0 %v1268
  %3496 = vmatpush.msra.mxu0 %v1267
  %3497 = vmatpush.msra.mxu0 %v1266
  %3498 = vmatmul.f32.gmra.mxu0 %v45
  %v3499 = vpop.f32.mrf.mxu0
  %v3500 = vadd.f32 %v3456, %v3499
  %3501 = vmatmul.f32.gmra.mxu0 %v124
  %v3502 = vpop.f32.mrf.mxu0
  %v3503 = vadd.f32 %v3459, %v3502
  %3504 = vmatmul.f32.gmra.mxu0 %v203
  %v3505 = vpop.f32.mrf.mxu0
  %v3506 = vadd.f32 %v3462, %v3505
  %3507 = vmatmul.f32.gmra.mxu0 %v282
  %v3508 = vpop.f32.mrf.mxu0
  %v3509 = vadd.f32 %v3465, %v3508
  %3510 = vmatmul.f32.gmra.mxu0 %v361
  %v3511 = vpop.f32.mrf.mxu0
  %v3512 = vadd.f32 %v3468, %v3511
  %3513 = vmatmul.f32.gmra.mxu0 %v440
  %v3514 = vpop.f32.mrf.mxu0
  %v3515 = vadd.f32 %v3471, %v3514
  %3516 = vmatmul.f32.gmra.mxu0 %v519
  %v3517 = vpop.f32.mrf.mxu0
  %v3518 = vadd.f32 %v3474, %v3517
  %3519 = vmatmul.f32.gmra.mxu0 %v598
  %v3520 = vpop.f32.mrf.mxu0
  %v3521 = vadd.f32 %v3477, %v3520
  %3522 = vmatmul.f32.gmra.mxu0 %v677
  %v3523 = vpop.f32.mrf.mxu0
  %v3524 = vadd.f32 %v3480, %v3523
  %3525 = vdwg.mxu0
  %3526 = vmatpush.msra.mxu0 %v1297
  %3527 = vmatpush.msra.mxu0 %v1296
  %3528 = vmatpush.msra.mxu0 %v1295
  %3529 = vmatpush.msra.mxu0 %v1294
  %3530 = vmatpush.msra.mxu0 %v1293
  %3531 = vmatpush.msra.mxu0 %v1292
  %3532 = vmatpush.msra.mxu0 %v1291
  %3533 = vmatpush.msra.mxu0 %v1290
  %3534 = vmatpush.msra.mxu0 %v1289
  %3535 = vmatpush.msra.mxu0 %v1288
  %3536 = vmatpush.msra.mxu0 %v1287
  %3537 = vmatpush.msra.mxu0 %v1286
  %3538 = vmatpush.msra.mxu0 %v1285
  %3539 = vmatpush.msra.mxu0 %v1284
  %3540 = vmatpush.msra.mxu0 %v1283
  %3541 = vmatpush.msra.mxu0 %v1282
  %3542 = vmatmul.f32.gmra.mxu0 %v46
  %v3543 = vpop.f32.mrf.mxu0
  %v3544 = vadd.f32 %v3500, %v3543
  %3545 = vmatmul.f32.gmra.mxu0 %v125
  %v3546 = vpop.f32.mrf.mxu0
  %v3547 = vadd.f32 %v3503, %v3546
  %3548 = vmatmul.f32.gmra.mxu0 %v204
  %v3549 = vpop.f32.mrf.mxu0
  %v3550 = vadd.f32 %v3506, %v3549
  %3551 = vmatmul.f32.gmra.mxu0 %v283
  %v3552 = vpop.f32.mrf.mxu0
  %v3553 = vadd.f32 %v3509, %v3552
  %3554 = vmatmul.f32.gmra.mxu0 %v362
  %v3555 = vpop.f32.mrf.mxu0
  %v3556 = vadd.f32 %v3512, %v3555
  %3557 = vmatmul.f32.gmra.mxu0 %v441
  %v3558 = vpop.f32.mrf.mxu0
  %v3559 = vadd.f32 %v3515, %v3558
  %3560 = vmatmul.f32.gmra.mxu0 %v520
  %v3561 = vpop.f32.mrf.mxu0
  %v3562 = vadd.f32 %v3518, %v3561
  %3563 = vmatmul.f32.gmra.mxu0 %v599
  %v3564 = vpop.f32.mrf.mxu0
  %v3565 = vadd.f32 %v3521, %v3564
  %3566 = vmatmul.f32.gmra.mxu0 %v678
  %v3567 = vpop.f32.mrf.mxu0
  %v3568 = vadd.f32 %v3524, %v3567
  %3569 = vdwg.mxu0
  %3570 = vmatpush.msra.mxu0 %v1313
  %3571 = vmatpush.msra.mxu0 %v1312
  %3572 = vmatpush.msra.mxu0 %v1311
  %3573 = vmatpush.msra.mxu0 %v1310
  %3574 = vmatpush.msra.mxu0 %v1309
  %3575 = vmatpush.msra.mxu0 %v1308
  %3576 = vmatpush.msra.mxu0 %v1307
  %3577 = vmatpush.msra.mxu0 %v1306
  %3578 = vmatpush.msra.mxu0 %v1305
  %3579 = vmatpush.msra.mxu0 %v1304
  %3580 = vmatpush.msra.mxu0 %v1303
  %3581 = vmatpush.msra.mxu0 %v1302
  %3582 = vmatpush.msra.mxu0 %v1301
  %3583 = vmatpush.msra.mxu0 %v1300
  %3584 = vmatpush.msra.mxu0 %v1299
  %3585 = vmatpush.msra.mxu0 %v1298
  %3586 = vmatmul.f32.gmra.mxu0 %v47
  %v3587 = vpop.f32.mrf.mxu0
  %v3588 = vadd.f32 %v3544, %v3587
  %3589 = vmatmul.f32.gmra.mxu0 %v126
  %v3590 = vpop.f32.mrf.mxu0
  %v3591 = vadd.f32 %v3547, %v3590
  %3592 = vmatmul.f32.gmra.mxu0 %v205
  %v3593 = vpop.f32.mrf.mxu0
  %v3594 = vadd.f32 %v3550, %v3593
  %3595 = vmatmul.f32.gmra.mxu0 %v284
  %v3596 = vpop.f32.mrf.mxu0
  %v3597 = vadd.f32 %v3553, %v3596
  %3598 = vmatmul.f32.gmra.mxu0 %v363
  %v3599 = vpop.f32.mrf.mxu0
  %v3600 = vadd.f32 %v3556, %v3599
  %3601 = vmatmul.f32.gmra.mxu0 %v442
  %v3602 = vpop.f32.mrf.mxu0
  %v3603 = vadd.f32 %v3559, %v3602
  %3604 = vmatmul.f32.gmra.mxu0 %v521
  %v3605 = vpop.f32.mrf.mxu0
  %v3606 = vadd.f32 %v3562, %v3605
  %3607 = vmatmul.f32.gmra.mxu0 %v600
  %v3608 = vpop.f32.mrf.mxu0
  %v3609 = vadd.f32 %v3565, %v3608
  %3610 = vmatmul.f32.gmra.mxu0 %v679
  %v3611 = vpop.f32.mrf.mxu0
  %v3612 = vadd.f32 %v3568, %v3611
  %3613 = vdwg.mxu0
  %3614 = vmatpush.msra.mxu0 %v1329
  %3615 = vmatpush.msra.mxu0 %v1328
  %3616 = vmatpush.msra.mxu0 %v1327
  %3617 = vmatpush.msra.mxu0 %v1326
  %3618 = vmatpush.msra.mxu0 %v1325
  %3619 = vmatpush.msra.mxu0 %v1324
  %3620 = vmatpush.msra.mxu0 %v1323
  %3621 = vmatpush.msra.mxu0 %v1322
  %3622 = vmatpush.msra.mxu0 %v1321
  %3623 = vmatpush.msra.mxu0 %v1320
  %3624 = vmatpush.msra.mxu0 %v1319
  %3625 = vmatpush.msra.mxu0 %v1318
  %3626 = vmatpush.msra.mxu0 %v1317
  %3627 = vmatpush.msra.mxu0 %v1316
  %3628 = vmatpush.msra.mxu0 %v1315
  %3629 = vmatpush.msra.mxu0 %v1314
  %3630 = vmatmul.f32.gmra.mxu0 %v48
  %v3631 = vpop.f32.mrf.mxu0
  %v3632 = vadd.f32 %v3588, %v3631
  %3633 = vmatmul.f32.gmra.mxu0 %v127
  %v3634 = vpop.f32.mrf.mxu0
  %v3635 = vadd.f32 %v3591, %v3634
  %3636 = vmatmul.f32.gmra.mxu0 %v206
  %v3637 = vpop.f32.mrf.mxu0
  %v3638 = vadd.f32 %v3594, %v3637
  %3639 = vmatmul.f32.gmra.mxu0 %v285
  %v3640 = vpop.f32.mrf.mxu0
  %v3641 = vadd.f32 %v3597, %v3640
  %3642 = vmatmul.f32.gmra.mxu0 %v364
  %v3643 = vpop.f32.mrf.mxu0
  %v3644 = vadd.f32 %v3600, %v3643
  %3645 = vmatmul.f32.gmra.mxu0 %v443
  %v3646 = vpop.f32.mrf.mxu0
  %v3647 = vadd.f32 %v3603, %v3646
  %3648 = vmatmul.f32.gmra.mxu0 %v522
  %v3649 = vpop.f32.mrf.mxu0
  %v3650 = vadd.f32 %v3606, %v3649
  %3651 = vmatmul.f32.gmra.mxu0 %v601
  %v3652 = vpop.f32.mrf.mxu0
  %v3653 = vadd.f32 %v3609, %v3652
  %3654 = vmatmul.f32.gmra.mxu0 %v680
  %v3655 = vpop.f32.mrf.mxu0
  %v3656 = vadd.f32 %v3612, %v3655
  %3657 = vdwg.mxu0
  %3658 = vmatpush.msra.mxu0 %v1345
  %3659 = vmatpush.msra.mxu0 %v1344
  %3660 = vmatpush.msra.mxu0 %v1343
  %3661 = vmatpush.msra.mxu0 %v1342
  %3662 = vmatpush.msra.mxu0 %v1341
  %3663 = vmatpush.msra.mxu0 %v1340
  %3664 = vmatpush.msra.mxu0 %v1339
  %3665 = vmatpush.msra.mxu0 %v1338
  %3666 = vmatpush.msra.mxu0 %v1337
  %3667 = vmatpush.msra.mxu0 %v1336
  %3668 = vmatpush.msra.mxu0 %v1335
  %3669 = vmatpush.msra.mxu0 %v1334
  %3670 = vmatpush.msra.mxu0 %v1333
  %3671 = vmatpush.msra.mxu0 %v1332
  %3672 = vmatpush.msra.mxu0 %v1331
  %3673 = vmatpush.msra.mxu0 %v1330
  %3674 = vmatmul.f32.gmra.mxu0 %v49
  %v3675 = vpop.f32.mrf.mxu0
  %v3676 = vadd.f32 %v3632, %v3675
  %3677 = vmatmul.f32.gmra.mxu0 %v128
  %v3678 = vpop.f32.mrf.mxu0
  %v3679 = vadd.f32 %v3635, %v3678
  %3680 = vmatmul.f32.gmra.mxu0 %v207
  %v3681 = vpop.f32.mrf.mxu0
  %v3682 = vadd.f32 %v3638, %v3681
  %3683 = vmatmul.f32.gmra.mxu0 %v286
  %v3684 = vpop.f32.mrf.mxu0
  %v3685 = vadd.f32 %v3641, %v3684
  %3686 = vmatmul.f32.gmra.mxu0 %v365
  %v3687 = vpop.f32.mrf.mxu0
  %v3688 = vadd.f32 %v3644, %v3687
  %3689 = vmatmul.f32.gmra.mxu0 %v444
  %v3690 = vpop.f32.mrf.mxu0
  %v3691 = vadd.f32 %v3647, %v3690
  %3692 = vmatmul.f32.gmra.mxu0 %v523
  %v3693 = vpop.f32.mrf.mxu0
  %v3694 = vadd.f32 %v3650, %v3693
  %3695 = vmatmul.f32.gmra.mxu0 %v602
  %v3696 = vpop.f32.mrf.mxu0
  %v3697 = vadd.f32 %v3653, %v3696
  %3698 = vmatmul.f32.gmra.mxu0 %v681
  %v3699 = vpop.f32.mrf.mxu0
  %v3700 = vadd.f32 %v3656, %v3699
  %3701 = vdwg.mxu0
  %3702 = vmatpush.msra.mxu0 %v1361
  %3703 = vmatpush.msra.mxu0 %v1360
  %3704 = vmatpush.msra.mxu0 %v1359
  %3705 = vmatpush.msra.mxu0 %v1358
  %3706 = vmatpush.msra.mxu0 %v1357
  %3707 = vmatpush.msra.mxu0 %v1356
  %3708 = vmatpush.msra.mxu0 %v1355
  %3709 = vmatpush.msra.mxu0 %v1354
  %3710 = vmatpush.msra.mxu0 %v1353
  %3711 = vmatpush.msra.mxu0 %v1352
  %3712 = vmatpush.msra.mxu0 %v1351
  %3713 = vmatpush.msra.mxu0 %v1350
  %3714 = vmatpush.msra.mxu0 %v1349
  %3715 = vmatpush.msra.mxu0 %v1348
  %3716 = vmatpush.msra.mxu0 %v1347
  %3717 = vmatpush.msra.mxu0 %v1346
  %3718 = vmatmul.f32.gmra.mxu0 %v50
  %v3719 = vpop.f32.mrf.mxu0
  %v3720 = vadd.f32 %v3676, %v3719
  %3721 = vmatmul.f32.gmra.mxu0 %v129
  %v3722 = vpop.f32.mrf.mxu0
  %v3723 = vadd.f32 %v3679, %v3722
  %3724 = vmatmul.f32.gmra.mxu0 %v208
  %v3725 = vpop.f32.mrf.mxu0
  %v3726 = vadd.f32 %v3682, %v3725
  %3727 = vmatmul.f32.gmra.mxu0 %v287
  %v3728 = vpop.f32.mrf.mxu0
  %v3729 = vadd.f32 %v3685, %v3728
  %3730 = vmatmul.f32.gmra.mxu0 %v366
  %v3731 = vpop.f32.mrf.mxu0
  %v3732 = vadd.f32 %v3688, %v3731
  %3733 = vmatmul.f32.gmra.mxu0 %v445
  %v3734 = vpop.f32.mrf.mxu0
  %v3735 = vadd.f32 %v3691, %v3734
  %3736 = vmatmul.f32.gmra.mxu0 %v524
  %v3737 = vpop.f32.mrf.mxu0
  %v3738 = vadd.f32 %v3694, %v3737
  %3739 = vmatmul.f32.gmra.mxu0 %v603
  %v3740 = vpop.f32.mrf.mxu0
  %v3741 = vadd.f32 %v3697, %v3740
  %3742 = vmatmul.f32.gmra.mxu0 %v682
  %v3743 = vpop.f32.mrf.mxu0
  %v3744 = vadd.f32 %v3700, %v3743
  %3745 = vdwg.mxu0
  %3746 = vmatpush.msra.mxu0 %v1377
  %3747 = vmatpush.msra.mxu0 %v1376
  %3748 = vmatpush.msra.mxu0 %v1375
  %3749 = vmatpush.msra.mxu0 %v1374
  %3750 = vmatpush.msra.mxu0 %v1373
  %3751 = vmatpush.msra.mxu0 %v1372
  %3752 = vmatpush.msra.mxu0 %v1371
  %3753 = vmatpush.msra.mxu0 %v1370
  %3754 = vmatpush.msra.mxu0 %v1369
  %3755 = vmatpush.msra.mxu0 %v1368
  %3756 = vmatpush.msra.mxu0 %v1367
  %3757 = vmatpush.msra.mxu0 %v1366
  %3758 = vmatpush.msra.mxu0 %v1365
  %3759 = vmatpush.msra.mxu0 %v1364
  %3760 = vmatpush.msra.mxu0 %v1363
  %3761 = vmatpush.msra.mxu0 %v1362
  %3762 = vmatmul.f32.gmra.mxu0 %v51
  %v3763 = vpop.f32.mrf.mxu0
  %v3764 = vadd.f32 %v3720, %v3763
  %3765 = vmatmul.f32.gmra.mxu0 %v130
  %v3766 = vpop.f32.mrf.mxu0
  %v3767 = vadd.f32 %v3723, %v3766
  %3768 = vmatmul.f32.gmra.mxu0 %v209
  %v3769 = vpop.f32.mrf.mxu0
  %v3770 = vadd.f32 %v3726, %v3769
  %3771 = vmatmul.f32.gmra.mxu0 %v288
  %v3772 = vpop.f32.mrf.mxu0
  %v3773 = vadd.f32 %v3729, %v3772
  %3774 = vmatmul.f32.gmra.mxu0 %v367
  %v3775 = vpop.f32.mrf.mxu0
  %v3776 = vadd.f32 %v3732, %v3775
  %3777 = vmatmul.f32.gmra.mxu0 %v446
  %v3778 = vpop.f32.mrf.mxu0
  %v3779 = vadd.f32 %v3735, %v3778
  %3780 = vmatmul.f32.gmra.mxu0 %v525
  %v3781 = vpop.f32.mrf.mxu0
  %v3782 = vadd.f32 %v3738, %v3781
  %3783 = vmatmul.f32.gmra.mxu0 %v604
  %v3784 = vpop.f32.mrf.mxu0
  %v3785 = vadd.f32 %v3741, %v3784
  %3786 = vmatmul.f32.gmra.mxu0 %v683
  %v3787 = vpop.f32.mrf.mxu0
  %v3788 = vadd.f32 %v3744, %v3787
  %3789 = vdwg.mxu0
  %3790 = vmatpush.msra.mxu0 %v1393
  %3791 = vmatpush.msra.mxu0 %v1392
  %3792 = vmatpush.msra.mxu0 %v1391
  %3793 = vmatpush.msra.mxu0 %v1390
  %3794 = vmatpush.msra.mxu0 %v1389
  %3795 = vmatpush.msra.mxu0 %v1388
  %3796 = vmatpush.msra.mxu0 %v1387
  %3797 = vmatpush.msra.mxu0 %v1386
  %3798 = vmatpush.msra.mxu0 %v1385
  %3799 = vmatpush.msra.mxu0 %v1384
  %3800 = vmatpush.msra.mxu0 %v1383
  %3801 = vmatpush.msra.mxu0 %v1382
  %3802 = vmatpush.msra.mxu0 %v1381
  %3803 = vmatpush.msra.mxu0 %v1380
  %3804 = vmatpush.msra.mxu0 %v1379
  %3805 = vmatpush.msra.mxu0 %v1378
  %3806 = vmatmul.f32.gmra.mxu0 %v52
  %v3807 = vpop.f32.mrf.mxu0
  %v3808 = vadd.f32 %v3764, %v3807
  %3809 = vmatmul.f32.gmra.mxu0 %v131
  %v3810 = vpop.f32.mrf.mxu0
  %v3811 = vadd.f32 %v3767, %v3810
  %3812 = vmatmul.f32.gmra.mxu0 %v210
  %v3813 = vpop.f32.mrf.mxu0
  %v3814 = vadd.f32 %v3770, %v3813
  %3815 = vmatmul.f32.gmra.mxu0 %v289
  %v3816 = vpop.f32.mrf.mxu0
  %v3817 = vadd.f32 %v3773, %v3816
  %3818 = vmatmul.f32.gmra.mxu0 %v368
  %v3819 = vpop.f32.mrf.mxu0
  %v3820 = vadd.f32 %v3776, %v3819
  %3821 = vmatmul.f32.gmra.mxu0 %v447
  %v3822 = vpop.f32.mrf.mxu0
  %v3823 = vadd.f32 %v3779, %v3822
  %3824 = vmatmul.f32.gmra.mxu0 %v526
  %v3825 = vpop.f32.mrf.mxu0
  %v3826 = vadd.f32 %v3782, %v3825
  %3827 = vmatmul.f32.gmra.mxu0 %v605
  %v3828 = vpop.f32.mrf.mxu0
  %v3829 = vadd.f32 %v3785, %v3828
  %3830 = vmatmul.f32.gmra.mxu0 %v684
  %v3831 = vpop.f32.mrf.mxu0
  %v3832 = vadd.f32 %v3788, %v3831
  %3833 = vdwg.mxu0
  %3834 = vmatpush.msra.mxu0 %v1409
  %3835 = vmatpush.msra.mxu0 %v1408
  %3836 = vmatpush.msra.mxu0 %v1407
  %3837 = vmatpush.msra.mxu0 %v1406
  %3838 = vmatpush.msra.mxu0 %v1405
  %3839 = vmatpush.msra.mxu0 %v1404
  %3840 = vmatpush.msra.mxu0 %v1403
  %3841 = vmatpush.msra.mxu0 %v1402
  %3842 = vmatpush.msra.mxu0 %v1401
  %3843 = vmatpush.msra.mxu0 %v1400
  %3844 = vmatpush.msra.mxu0 %v1399
  %3845 = vmatpush.msra.mxu0 %v1398
  %3846 = vmatpush.msra.mxu0 %v1397
  %3847 = vmatpush.msra.mxu0 %v1396
  %3848 = vmatpush.msra.mxu0 %v1395
  %3849 = vmatpush.msra.mxu0 %v1394
  %3850 = vmatmul.f32.gmra.mxu0 %v53
  %v3851 = vpop.f32.mrf.mxu0
  %v3852 = vadd.f32 %v3808, %v3851
  %3853 = vmatmul.f32.gmra.mxu0 %v132
  %v3854 = vpop.f32.mrf.mxu0
  %v3855 = vadd.f32 %v3811, %v3854
  %3856 = vmatmul.f32.gmra.mxu0 %v211
  %v3857 = vpop.f32.mrf.mxu0
  %v3858 = vadd.f32 %v3814, %v3857
  %3859 = vmatmul.f32.gmra.mxu0 %v290
  %v3860 = vpop.f32.mrf.mxu0
  %v3861 = vadd.f32 %v3817, %v3860
  %3862 = vmatmul.f32.gmra.mxu0 %v369
  %v3863 = vpop.f32.mrf.mxu0
  %v3864 = vadd.f32 %v3820, %v3863
  %3865 = vmatmul.f32.gmra.mxu0 %v448
  %v3866 = vpop.f32.mrf.mxu0
  %v3867 = vadd.f32 %v3823, %v3866
  %3868 = vmatmul.f32.gmra.mxu0 %v527
  %v3869 = vpop.f32.mrf.mxu0
  %v3870 = vadd.f32 %v3826, %v3869
  %3871 = vmatmul.f32.gmra.mxu0 %v606
  %v3872 = vpop.f32.mrf.mxu0
  %v3873 = vadd.f32 %v3829, %v3872
  %3874 = vmatmul.f32.gmra.mxu0 %v685
  %v3875 = vpop.f32.mrf.mxu0
  %v3876 = vadd.f32 %v3832, %v3875
  %3877 = vdwg.mxu0
  %3878 = vmatpush.msra.mxu0 %v1425
  %3879 = vmatpush.msra.mxu0 %v1424
  %3880 = vmatpush.msra.mxu0 %v1423
  %3881 = vmatpush.msra.mxu0 %v1422
  %3882 = vmatpush.msra.mxu0 %v1421
  %3883 = vmatpush.msra.mxu0 %v1420
  %3884 = vmatpush.msra.mxu0 %v1419
  %3885 = vmatpush.msra.mxu0 %v1418
  %3886 = vmatpush.msra.mxu0 %v1417
  %3887 = vmatpush.msra.mxu0 %v1416
  %3888 = vmatpush.msra.mxu0 %v1415
  %3889 = vmatpush.msra.mxu0 %v1414
  %3890 = vmatpush.msra.mxu0 %v1413
  %3891 = vmatpush.msra.mxu0 %v1412
  %3892 = vmatpush.msra.mxu0 %v1411
  %3893 = vmatpush.msra.mxu0 %v1410
  %3894 = vmatmul.f32.gmra.mxu0 %v54
  %v3895 = vpop.f32.mrf.mxu0
  %v3896 = vadd.f32 %v3852, %v3895
  %3897 = vmatmul.f32.gmra.mxu0 %v133
  %v3898 = vpop.f32.mrf.mxu0
  %v3899 = vadd.f32 %v3855, %v3898
  %3900 = vmatmul.f32.gmra.mxu0 %v212
  %v3901 = vpop.f32.mrf.mxu0
  %v3902 = vadd.f32 %v3858, %v3901
  %3903 = vmatmul.f32.gmra.mxu0 %v291
  %v3904 = vpop.f32.mrf.mxu0
  %v3905 = vadd.f32 %v3861, %v3904
  %3906 = vmatmul.f32.gmra.mxu0 %v370
  %v3907 = vpop.f32.mrf.mxu0
  %v3908 = vadd.f32 %v3864, %v3907
  %3909 = vmatmul.f32.gmra.mxu0 %v449
  %v3910 = vpop.f32.mrf.mxu0
  %v3911 = vadd.f32 %v3867, %v3910
  %3912 = vmatmul.f32.gmra.mxu0 %v528
  %v3913 = vpop.f32.mrf.mxu0
  %v3914 = vadd.f32 %v3870, %v3913
  %3915 = vmatmul.f32.gmra.mxu0 %v607
  %v3916 = vpop.f32.mrf.mxu0
  %v3917 = vadd.f32 %v3873, %v3916
  %3918 = vmatmul.f32.gmra.mxu0 %v686
  %v3919 = vpop.f32.mrf.mxu0
  %v3920 = vadd.f32 %v3876, %v3919
  %3921 = vdwg.mxu0
  %3922 = vmatpush.msra.mxu0 %v1441
  %3923 = vmatpush.msra.mxu0 %v1440
  %3924 = vmatpush.msra.mxu0 %v1439
  %3925 = vmatpush.msra.mxu0 %v1438
  %3926 = vmatpush.msra.mxu0 %v1437
  %3927 = vmatpush.msra.mxu0 %v1436
  %3928 = vmatpush.msra.mxu0 %v1435
  %3929 = vmatpush.msra.mxu0 %v1434
  %3930 = vmatpush.msra.mxu0 %v1433
  %3931 = vmatpush.msra.mxu0 %v1432
  %3932 = vmatpush.msra.mxu0 %v1431
  %3933 = vmatpush.msra.mxu0 %v1430
  %3934 = vmatpush.msra.mxu0 %v1429
  %3935 = vmatpush.msra.mxu0 %v1428
  %3936 = vmatpush.msra.mxu0 %v1427
  %3937 = vmatpush.msra.mxu0 %v1426
  %3938 = vmatmul.f32.gmra.mxu0 %v55
  %v3939 = vpop.f32.mrf.mxu0
  %v3940 = vadd.f32 %v3896, %v3939
  %3941 = vmatmul.f32.gmra.mxu0 %v134
  %v3942 = vpop.f32.mrf.mxu0
  %v3943 = vadd.f32 %v3899, %v3942
  %3944 = vmatmul.f32.gmra.mxu0 %v213
  %v3945 = vpop.f32.mrf.mxu0
  %v3946 = vadd.f32 %v3902, %v3945
  %3947 = vmatmul.f32.gmra.mxu0 %v292
  %v3948 = vpop.f32.mrf.mxu0
  %v3949 = vadd.f32 %v3905, %v3948
  %3950 = vmatmul.f32.gmra.mxu0 %v371
  %v3951 = vpop.f32.mrf.mxu0
  %v3952 = vadd.f32 %v3908, %v3951
  %3953 = vmatmul.f32.gmra.mxu0 %v450
  %v3954 = vpop.f32.mrf.mxu0
  %v3955 = vadd.f32 %v3911, %v3954
  %3956 = vmatmul.f32.gmra.mxu0 %v529
  %v3957 = vpop.f32.mrf.mxu0
  %v3958 = vadd.f32 %v3914, %v3957
  %3959 = vmatmul.f32.gmra.mxu0 %v608
  %v3960 = vpop.f32.mrf.mxu0
  %v3961 = vadd.f32 %v3917, %v3960
  %3962 = vmatmul.f32.gmra.mxu0 %v687
  %v3963 = vpop.f32.mrf.mxu0
  %v3964 = vadd.f32 %v3920, %v3963
  %3965 = vdwg.mxu0
  %3966 = vmatpush.msra.mxu0 %v1457
  %3967 = vmatpush.msra.mxu0 %v1456
  %3968 = vmatpush.msra.mxu0 %v1455
  %3969 = vmatpush.msra.mxu0 %v1454
  %3970 = vmatpush.msra.mxu0 %v1453
  %3971 = vmatpush.msra.mxu0 %v1452
  %3972 = vmatpush.msra.mxu0 %v1451
  %3973 = vmatpush.msra.mxu0 %v1450
  %3974 = vmatpush.msra.mxu0 %v1449
  %3975 = vmatpush.msra.mxu0 %v1448
  %3976 = vmatpush.msra.mxu0 %v1447
  %3977 = vmatpush.msra.mxu0 %v1446
  %3978 = vmatpush.msra.mxu0 %v1445
  %3979 = vmatpush.msra.mxu0 %v1444
  %3980 = vmatpush.msra.mxu0 %v1443
  %3981 = vmatpush.msra.mxu0 %v1442
  %3982 = vmatmul.f32.gmra.mxu0 %v56
  %v3983 = vpop.f32.mrf.mxu0
  %v3984 = vadd.f32 %v3940, %v3983
  %3985 = vmatmul.f32.gmra.mxu0 %v135
  %v3986 = vpop.f32.mrf.mxu0
  %v3987 = vadd.f32 %v3943, %v3986
  %3988 = vmatmul.f32.gmra.mxu0 %v214
  %v3989 = vpop.f32.mrf.mxu0
  %v3990 = vadd.f32 %v3946, %v3989
  %3991 = vmatmul.f32.gmra.mxu0 %v293
  %v3992 = vpop.f32.mrf.mxu0
  %v3993 = vadd.f32 %v3949, %v3992
  %3994 = vmatmul.f32.gmra.mxu0 %v372
  %v3995 = vpop.f32.mrf.mxu0
  %v3996 = vadd.f32 %v3952, %v3995
  %3997 = vmatmul.f32.gmra.mxu0 %v451
  %v3998 = vpop.f32.mrf.mxu0
  %v3999 = vadd.f32 %v3955, %v3998
  %4000 = vmatmul.f32.gmra.mxu0 %v530
  %v4001 = vpop.f32.mrf.mxu0
  %v4002 = vadd.f32 %v3958, %v4001
  %4003 = vmatmul.f32.gmra.mxu0 %v609
  %v4004 = vpop.f32.mrf.mxu0
  %v4005 = vadd.f32 %v3961, %v4004
  %4006 = vmatmul.f32.gmra.mxu0 %v688
  %v4007 = vpop.f32.mrf.mxu0
  %v4008 = vadd.f32 %v3964, %v4007
  %4009 = vdwg.mxu0
  %4010 = vmatpush.msra.mxu0 %v1473
  %4011 = vmatpush.msra.mxu0 %v1472
  %4012 = vmatpush.msra.mxu0 %v1471
  %4013 = vmatpush.msra.mxu0 %v1470
  %4014 = vmatpush.msra.mxu0 %v1469
  %4015 = vmatpush.msra.mxu0 %v1468
  %4016 = vmatpush.msra.mxu0 %v1467
  %4017 = vmatpush.msra.mxu0 %v1466
  %4018 = vmatpush.msra.mxu0 %v1465
  %4019 = vmatpush.msra.mxu0 %v1464
  %4020 = vmatpush.msra.mxu0 %v1463
  %4021 = vmatpush.msra.mxu0 %v1462
  %4022 = vmatpush.msra.mxu0 %v1461
  %4023 = vmatpush.msra.mxu0 %v1460
  %4024 = vmatpush.msra.mxu0 %v1459
  %4025 = vmatpush.msra.mxu0 %v1458
  %4026 = vmatmul.f32.gmra.mxu0 %v57
  %v4027 = vpop.f32.mrf.mxu0
  %v4028 = vadd.f32 %v3984, %v4027
  %4029 = vmatmul.f32.gmra.mxu0 %v136
  %v4030 = vpop.f32.mrf.mxu0
  %v4031 = vadd.f32 %v3987, %v4030
  %4032 = vmatmul.f32.gmra.mxu0 %v215
  %v4033 = vpop.f32.mrf.mxu0
  %v4034 = vadd.f32 %v3990, %v4033
  %4035 = vmatmul.f32.gmra.mxu0 %v294
  %v4036 = vpop.f32.mrf.mxu0
  %v4037 = vadd.f32 %v3993, %v4036
  %4038 = vmatmul.f32.gmra.mxu0 %v373
  %v4039 = vpop.f32.mrf.mxu0
  %v4040 = vadd.f32 %v3996, %v4039
  %4041 = vmatmul.f32.gmra.mxu0 %v452
  %v4042 = vpop.f32.mrf.mxu0
  %v4043 = vadd.f32 %v3999, %v4042
  %4044 = vmatmul.f32.gmra.mxu0 %v531
  %v4045 = vpop.f32.mrf.mxu0
  %v4046 = vadd.f32 %v4002, %v4045
  %4047 = vmatmul.f32.gmra.mxu0 %v610
  %v4048 = vpop.f32.mrf.mxu0
  %v4049 = vadd.f32 %v4005, %v4048
  %4050 = vmatmul.f32.gmra.mxu0 %v689
  %v4051 = vpop.f32.mrf.mxu0
  %v4052 = vadd.f32 %v4008, %v4051
  %4053 = vdwg.mxu0
  %4054 = vmatpush.msra.mxu0 %v1489
  %4055 = vmatpush.msra.mxu0 %v1488
  %4056 = vmatpush.msra.mxu0 %v1487
  %4057 = vmatpush.msra.mxu0 %v1486
  %4058 = vmatpush.msra.mxu0 %v1485
  %4059 = vmatpush.msra.mxu0 %v1484
  %4060 = vmatpush.msra.mxu0 %v1483
  %4061 = vmatpush.msra.mxu0 %v1482
  %4062 = vmatpush.msra.mxu0 %v1481
  %4063 = vmatpush.msra.mxu0 %v1480
  %4064 = vmatpush.msra.mxu0 %v1479
  %4065 = vmatpush.msra.mxu0 %v1478
  %4066 = vmatpush.msra.mxu0 %v1477
  %4067 = vmatpush.msra.mxu0 %v1476
  %4068 = vmatpush.msra.mxu0 %v1475
  %4069 = vmatpush.msra.mxu0 %v1474
  %4070 = vmatmul.f32.gmra.mxu0 %v58
  %v4071 = vpop.f32.mrf.mxu0
  %v4072 = vadd.f32 %v4028, %v4071
  %4073 = vmatmul.f32.gmra.mxu0 %v137
  %v4074 = vpop.f32.mrf.mxu0
  %v4075 = vadd.f32 %v4031, %v4074
  %4076 = vmatmul.f32.gmra.mxu0 %v216
  %v4077 = vpop.f32.mrf.mxu0
  %v4078 = vadd.f32 %v4034, %v4077
  %4079 = vmatmul.f32.gmra.mxu0 %v295
  %v4080 = vpop.f32.mrf.mxu0
  %v4081 = vadd.f32 %v4037, %v4080
  %4082 = vmatmul.f32.gmra.mxu0 %v374
  %v4083 = vpop.f32.mrf.mxu0
  %v4084 = vadd.f32 %v4040, %v4083
  %4085 = vmatmul.f32.gmra.mxu0 %v453
  %v4086 = vpop.f32.mrf.mxu0
  %v4087 = vadd.f32 %v4043, %v4086
  %4088 = vmatmul.f32.gmra.mxu0 %v532
  %v4089 = vpop.f32.mrf.mxu0
  %v4090 = vadd.f32 %v4046, %v4089
  %4091 = vmatmul.f32.gmra.mxu0 %v611
  %v4092 = vpop.f32.mrf.mxu0
  %v4093 = vadd.f32 %v4049, %v4092
  %4094 = vmatmul.f32.gmra.mxu0 %v690
  %v4095 = vpop.f32.mrf.mxu0
  %v4096 = vadd.f32 %v4052, %v4095
  %4097 = vdwg.mxu0
  %4098 = vmatpush.msra.mxu0 %v1505
  %4099 = vmatpush.msra.mxu0 %v1504
  %4100 = vmatpush.msra.mxu0 %v1503
  %4101 = vmatpush.msra.mxu0 %v1502
  %4102 = vmatpush.msra.mxu0 %v1501
  %4103 = vmatpush.msra.mxu0 %v1500
  %4104 = vmatpush.msra.mxu0 %v1499
  %4105 = vmatpush.msra.mxu0 %v1498
  %4106 = vmatpush.msra.mxu0 %v1497
  %4107 = vmatpush.msra.mxu0 %v1496
  %4108 = vmatpush.msra.mxu0 %v1495
  %4109 = vmatpush.msra.mxu0 %v1494
  %4110 = vmatpush.msra.mxu0 %v1493
  %4111 = vmatpush.msra.mxu0 %v1492
  %4112 = vmatpush.msra.mxu0 %v1491
  %4113 = vmatpush.msra.mxu0 %v1490
  %4114 = vmatmul.f32.gmra.mxu0 %v59
  %v4115 = vpop.f32.mrf.mxu0
  %v4116 = vadd.f32 %v4072, %v4115
  %4117 = vmatmul.f32.gmra.mxu0 %v138
  %v4118 = vpop.f32.mrf.mxu0
  %v4119 = vadd.f32 %v4075, %v4118
  %4120 = vmatmul.f32.gmra.mxu0 %v217
  %v4121 = vpop.f32.mrf.mxu0
  %v4122 = vadd.f32 %v4078, %v4121
  %4123 = vmatmul.f32.gmra.mxu0 %v296
  %v4124 = vpop.f32.mrf.mxu0
  %v4125 = vadd.f32 %v4081, %v4124
  %4126 = vmatmul.f32.gmra.mxu0 %v375
  %v4127 = vpop.f32.mrf.mxu0
  %v4128 = vadd.f32 %v4084, %v4127
  %4129 = vmatmul.f32.gmra.mxu0 %v454
  %v4130 = vpop.f32.mrf.mxu0
  %v4131 = vadd.f32 %v4087, %v4130
  %4132 = vmatmul.f32.gmra.mxu0 %v533
  %v4133 = vpop.f32.mrf.mxu0
  %v4134 = vadd.f32 %v4090, %v4133
  %4135 = vmatmul.f32.gmra.mxu0 %v612
  %v4136 = vpop.f32.mrf.mxu0
  %v4137 = vadd.f32 %v4093, %v4136
  %4138 = vmatmul.f32.gmra.mxu0 %v691
  %v4139 = vpop.f32.mrf.mxu0
  %v4140 = vadd.f32 %v4096, %v4139
  %4141 = vdwg.mxu0
  %4142 = vmatpush.msra.mxu0 %v1521
  %4143 = vmatpush.msra.mxu0 %v1520
  %4144 = vmatpush.msra.mxu0 %v1519
  %4145 = vmatpush.msra.mxu0 %v1518
  %4146 = vmatpush.msra.mxu0 %v1517
  %4147 = vmatpush.msra.mxu0 %v1516
  %4148 = vmatpush.msra.mxu0 %v1515
  %4149 = vmatpush.msra.mxu0 %v1514
  %4150 = vmatpush.msra.mxu0 %v1513
  %4151 = vmatpush.msra.mxu0 %v1512
  %4152 = vmatpush.msra.mxu0 %v1511
  %4153 = vmatpush.msra.mxu0 %v1510
  %4154 = vmatpush.msra.mxu0 %v1509
  %4155 = vmatpush.msra.mxu0 %v1508
  %4156 = vmatpush.msra.mxu0 %v1507
  %4157 = vmatpush.msra.mxu0 %v1506
  %4158 = vmatmul.f32.gmra.mxu0 %v60
  %v4159 = vpop.f32.mrf.mxu0
  %v4160 = vadd.f32 %v4116, %v4159
  %4161 = vmatmul.f32.gmra.mxu0 %v139
  %v4162 = vpop.f32.mrf.mxu0
  %v4163 = vadd.f32 %v4119, %v4162
  %4164 = vmatmul.f32.gmra.mxu0 %v218
  %v4165 = vpop.f32.mrf.mxu0
  %v4166 = vadd.f32 %v4122, %v4165
  %4167 = vmatmul.f32.gmra.mxu0 %v297
  %v4168 = vpop.f32.mrf.mxu0
  %v4169 = vadd.f32 %v4125, %v4168
  %4170 = vmatmul.f32.gmra.mxu0 %v376
  %v4171 = vpop.f32.mrf.mxu0
  %v4172 = vadd.f32 %v4128, %v4171
  %4173 = vmatmul.f32.gmra.mxu0 %v455
  %v4174 = vpop.f32.mrf.mxu0
  %v4175 = vadd.f32 %v4131, %v4174
  %4176 = vmatmul.f32.gmra.mxu0 %v534
  %v4177 = vpop.f32.mrf.mxu0
  %v4178 = vadd.f32 %v4134, %v4177
  %4179 = vmatmul.f32.gmra.mxu0 %v613
  %v4180 = vpop.f32.mrf.mxu0
  %v4181 = vadd.f32 %v4137, %v4180
  %4182 = vmatmul.f32.gmra.mxu0 %v692
  %v4183 = vpop.f32.mrf.mxu0
  %v4184 = vadd.f32 %v4140, %v4183
  %4185 = vdwg.mxu0
  %4186 = vmatpush.msra.mxu0 %v1537
  %4187 = vmatpush.msra.mxu0 %v1536
  %4188 = vmatpush.msra.mxu0 %v1535
  %4189 = vmatpush.msra.mxu0 %v1534
  %4190 = vmatpush.msra.mxu0 %v1533
  %4191 = vmatpush.msra.mxu0 %v1532
  %4192 = vmatpush.msra.mxu0 %v1531
  %4193 = vmatpush.msra.mxu0 %v1530
  %4194 = vmatpush.msra.mxu0 %v1529
  %4195 = vmatpush.msra.mxu0 %v1528
  %4196 = vmatpush.msra.mxu0 %v1527
  %4197 = vmatpush.msra.mxu0 %v1526
  %4198 = vmatpush.msra.mxu0 %v1525
  %4199 = vmatpush.msra.mxu0 %v1524
  %4200 = vmatpush.msra.mxu0 %v1523
  %4201 = vmatpush.msra.mxu0 %v1522
  %4202 = vmatmul.f32.gmra.mxu0 %v61
  %v4203 = vpop.f32.mrf.mxu0
  %v4204 = vadd.f32 %v4160, %v4203
  %4205 = vmatmul.f32.gmra.mxu0 %v140
  %v4206 = vpop.f32.mrf.mxu0
  %v4207 = vadd.f32 %v4163, %v4206
  %4208 = vmatmul.f32.gmra.mxu0 %v219
  %v4209 = vpop.f32.mrf.mxu0
  %v4210 = vadd.f32 %v4166, %v4209
  %4211 = vmatmul.f32.gmra.mxu0 %v298
  %v4212 = vpop.f32.mrf.mxu0
  %v4213 = vadd.f32 %v4169, %v4212
  %4214 = vmatmul.f32.gmra.mxu0 %v377
  %v4215 = vpop.f32.mrf.mxu0
  %v4216 = vadd.f32 %v4172, %v4215
  %4217 = vmatmul.f32.gmra.mxu0 %v456
  %v4218 = vpop.f32.mrf.mxu0
  %v4219 = vadd.f32 %v4175, %v4218
  %4220 = vmatmul.f32.gmra.mxu0 %v535
  %v4221 = vpop.f32.mrf.mxu0
  %v4222 = vadd.f32 %v4178, %v4221
  %4223 = vmatmul.f32.gmra.mxu0 %v614
  %v4224 = vpop.f32.mrf.mxu0
  %v4225 = vadd.f32 %v4181, %v4224
  %4226 = vmatmul.f32.gmra.mxu0 %v693
  %v4227 = vpop.f32.mrf.mxu0
  %v4228 = vadd.f32 %v4184, %v4227
  %4229 = vdwg.mxu0
  %4230 = vmatpush.msra.mxu0 %v1553
  %4231 = vmatpush.msra.mxu0 %v1552
  %4232 = vmatpush.msra.mxu0 %v1551
  %4233 = vmatpush.msra.mxu0 %v1550
  %4234 = vmatpush.msra.mxu0 %v1549
  %4235 = vmatpush.msra.mxu0 %v1548
  %4236 = vmatpush.msra.mxu0 %v1547
  %4237 = vmatpush.msra.mxu0 %v1546
  %4238 = vmatpush.msra.mxu0 %v1545
  %4239 = vmatpush.msra.mxu0 %v1544
  %4240 = vmatpush.msra.mxu0 %v1543
  %4241 = vmatpush.msra.mxu0 %v1542
  %4242 = vmatpush.msra.mxu0 %v1541
  %4243 = vmatpush.msra.mxu0 %v1540
  %4244 = vmatpush.msra.mxu0 %v1539
  %4245 = vmatpush.msra.mxu0 %v1538
  %4246 = vmatmul.f32.gmra.mxu0 %v62
  %v4247 = vpop.f32.mrf.mxu0
  %v4248 = vadd.f32 %v4204, %v4247
  %4249 = vmatmul.f32.gmra.mxu0 %v141
  %v4250 = vpop.f32.mrf.mxu0
  %v4251 = vadd.f32 %v4207, %v4250
  %4252 = vmatmul.f32.gmra.mxu0 %v220
  %v4253 = vpop.f32.mrf.mxu0
  %v4254 = vadd.f32 %v4210, %v4253
  %4255 = vmatmul.f32.gmra.mxu0 %v299
  %v4256 = vpop.f32.mrf.mxu0
  %v4257 = vadd.f32 %v4213, %v4256
  %4258 = vmatmul.f32.gmra.mxu0 %v378
  %v4259 = vpop.f32.mrf.mxu0
  %v4260 = vadd.f32 %v4216, %v4259
  %4261 = vmatmul.f32.gmra.mxu0 %v457
  %v4262 = vpop.f32.mrf.mxu0
  %v4263 = vadd.f32 %v4219, %v4262
  %4264 = vmatmul.f32.gmra.mxu0 %v536
  %v4265 = vpop.f32.mrf.mxu0
  %v4266 = vadd.f32 %v4222, %v4265
  %4267 = vmatmul.f32.gmra.mxu0 %v615
  %v4268 = vpop.f32.mrf.mxu0
  %v4269 = vadd.f32 %v4225, %v4268
  %4270 = vmatmul.f32.gmra.mxu0 %v694
  %v4271 = vpop.f32.mrf.mxu0
  %v4272 = vadd.f32 %v4228, %v4271
  %4273 = vdwg.mxu0
  %4274 = vmatpush.msra.mxu0 %v1569
  %4275 = vmatpush.msra.mxu0 %v1568
  %4276 = vmatpush.msra.mxu0 %v1567
  %4277 = vmatpush.msra.mxu0 %v1566
  %4278 = vmatpush.msra.mxu0 %v1565
  %4279 = vmatpush.msra.mxu0 %v1564
  %4280 = vmatpush.msra.mxu0 %v1563
  %4281 = vmatpush.msra.mxu0 %v1562
  %4282 = vmatpush.msra.mxu0 %v1561
  %4283 = vmatpush.msra.mxu0 %v1560
  %4284 = vmatpush.msra.mxu0 %v1559
  %4285 = vmatpush.msra.mxu0 %v1558
  %4286 = vmatpush.msra.mxu0 %v1557
  %4287 = vmatpush.msra.mxu0 %v1556
  %4288 = vmatpush.msra.mxu0 %v1555
  %4289 = vmatpush.msra.mxu0 %v1554
  %4290 = vmatmul.f32.gmra.mxu0 %v63
  %v4291 = vpop.f32.mrf.mxu0
  %v4292 = vadd.f32 %v4248, %v4291
  %4293 = vmatmul.f32.gmra.mxu0 %v142
  %v4294 = vpop.f32.mrf.mxu0
  %v4295 = vadd.f32 %v4251, %v4294
  %4296 = vmatmul.f32.gmra.mxu0 %v221
  %v4297 = vpop.f32.mrf.mxu0
  %v4298 = vadd.f32 %v4254, %v4297
  %4299 = vmatmul.f32.gmra.mxu0 %v300
  %v4300 = vpop.f32.mrf.mxu0
  %v4301 = vadd.f32 %v4257, %v4300
  %4302 = vmatmul.f32.gmra.mxu0 %v379
  %v4303 = vpop.f32.mrf.mxu0
  %v4304 = vadd.f32 %v4260, %v4303
  %4305 = vmatmul.f32.gmra.mxu0 %v458
  %v4306 = vpop.f32.mrf.mxu0
  %v4307 = vadd.f32 %v4263, %v4306
  %4308 = vmatmul.f32.gmra.mxu0 %v537
  %v4309 = vpop.f32.mrf.mxu0
  %v4310 = vadd.f32 %v4266, %v4309
  %4311 = vmatmul.f32.gmra.mxu0 %v616
  %v4312 = vpop.f32.mrf.mxu0
  %v4313 = vadd.f32 %v4269, %v4312
  %4314 = vmatmul.f32.gmra.mxu0 %v695
  %v4315 = vpop.f32.mrf.mxu0
  %v4316 = vadd.f32 %v4272, %v4315
  %4317 = vdwg.mxu0
  %4318 = vmatpush.msra.mxu0 %v1585
  %4319 = vmatpush.msra.mxu0 %v1584
  %4320 = vmatpush.msra.mxu0 %v1583
  %4321 = vmatpush.msra.mxu0 %v1582
  %4322 = vmatpush.msra.mxu0 %v1581
  %4323 = vmatpush.msra.mxu0 %v1580
  %4324 = vmatpush.msra.mxu0 %v1579
  %4325 = vmatpush.msra.mxu0 %v1578
  %4326 = vmatpush.msra.mxu0 %v1577
  %4327 = vmatpush.msra.mxu0 %v1576
  %4328 = vmatpush.msra.mxu0 %v1575
  %4329 = vmatpush.msra.mxu0 %v1574
  %4330 = vmatpush.msra.mxu0 %v1573
  %4331 = vmatpush.msra.mxu0 %v1572
  %4332 = vmatpush.msra.mxu0 %v1571
  %4333 = vmatpush.msra.mxu0 %v1570
  %4334 = vmatmul.f32.gmra.mxu0 %v64
  %v4335 = vpop.f32.mrf.mxu0
  %v4336 = vadd.f32 %v4292, %v4335
  %4337 = vmatmul.f32.gmra.mxu0 %v143
  %v4338 = vpop.f32.mrf.mxu0
  %v4339 = vadd.f32 %v4295, %v4338
  %4340 = vmatmul.f32.gmra.mxu0 %v222
  %v4341 = vpop.f32.mrf.mxu0
  %v4342 = vadd.f32 %v4298, %v4341
  %4343 = vmatmul.f32.gmra.mxu0 %v301
  %v4344 = vpop.f32.mrf.mxu0
  %v4345 = vadd.f32 %v4301, %v4344
  %4346 = vmatmul.f32.gmra.mxu0 %v380
  %v4347 = vpop.f32.mrf.mxu0
  %v4348 = vadd.f32 %v4304, %v4347
  %4349 = vmatmul.f32.gmra.mxu0 %v459
  %v4350 = vpop.f32.mrf.mxu0
  %v4351 = vadd.f32 %v4307, %v4350
  %4352 = vmatmul.f32.gmra.mxu0 %v538
  %v4353 = vpop.f32.mrf.mxu0
  %v4354 = vadd.f32 %v4310, %v4353
  %4355 = vmatmul.f32.gmra.mxu0 %v617
  %v4356 = vpop.f32.mrf.mxu0
  %v4357 = vadd.f32 %v4313, %v4356
  %4358 = vmatmul.f32.gmra.mxu0 %v696
  %v4359 = vpop.f32.mrf.mxu0
  %v4360 = vadd.f32 %v4316, %v4359
  %4361 = vdwg.mxu0
  %4362 = vmatpush.msra.mxu0 %v1601
  %4363 = vmatpush.msra.mxu0 %v1600
  %4364 = vmatpush.msra.mxu0 %v1599
  %4365 = vmatpush.msra.mxu0 %v1598
  %4366 = vmatpush.msra.mxu0 %v1597
  %4367 = vmatpush.msra.mxu0 %v1596
  %4368 = vmatpush.msra.mxu0 %v1595
  %4369 = vmatpush.msra.mxu0 %v1594
  %4370 = vmatpush.msra.mxu0 %v1593
  %4371 = vmatpush.msra.mxu0 %v1592
  %4372 = vmatpush.msra.mxu0 %v1591
  %4373 = vmatpush.msra.mxu0 %v1590
  %4374 = vmatpush.msra.mxu0 %v1589
  %4375 = vmatpush.msra.mxu0 %v1588
  %4376 = vmatpush.msra.mxu0 %v1587
  %4377 = vmatpush.msra.mxu0 %v1586
  %4378 = vmatmul.f32.gmra.mxu0 %v65
  %v4379 = vpop.f32.mrf.mxu0
  %v4380 = vadd.f32 %v4336, %v4379
  %4381 = vmatmul.f32.gmra.mxu0 %v144
  %v4382 = vpop.f32.mrf.mxu0
  %v4383 = vadd.f32 %v4339, %v4382
  %4384 = vmatmul.f32.gmra.mxu0 %v223
  %v4385 = vpop.f32.mrf.mxu0
  %v4386 = vadd.f32 %v4342, %v4385
  %4387 = vmatmul.f32.gmra.mxu0 %v302
  %v4388 = vpop.f32.mrf.mxu0
  %v4389 = vadd.f32 %v4345, %v4388
  %4390 = vmatmul.f32.gmra.mxu0 %v381
  %v4391 = vpop.f32.mrf.mxu0
  %v4392 = vadd.f32 %v4348, %v4391
  %4393 = vmatmul.f32.gmra.mxu0 %v460
  %v4394 = vpop.f32.mrf.mxu0
  %v4395 = vadd.f32 %v4351, %v4394
  %4396 = vmatmul.f32.gmra.mxu0 %v539
  %v4397 = vpop.f32.mrf.mxu0
  %v4398 = vadd.f32 %v4354, %v4397
  %4399 = vmatmul.f32.gmra.mxu0 %v618
  %v4400 = vpop.f32.mrf.mxu0
  %v4401 = vadd.f32 %v4357, %v4400
  %4402 = vmatmul.f32.gmra.mxu0 %v697
  %v4403 = vpop.f32.mrf.mxu0
  %v4404 = vadd.f32 %v4360, %v4403
  %4405 = vdwg.mxu0
  %4406 = vmatpush.msra.mxu0 %v1617
  %4407 = vmatpush.msra.mxu0 %v1616
  %4408 = vmatpush.msra.mxu0 %v1615
  %4409 = vmatpush.msra.mxu0 %v1614
  %4410 = vmatpush.msra.mxu0 %v1613
  %4411 = vmatpush.msra.mxu0 %v1612
  %4412 = vmatpush.msra.mxu0 %v1611
  %4413 = vmatpush.msra.mxu0 %v1610
  %4414 = vmatpush.msra.mxu0 %v1609
  %4415 = vmatpush.msra.mxu0 %v1608
  %4416 = vmatpush.msra.mxu0 %v1607
  %4417 = vmatpush.msra.mxu0 %v1606
  %4418 = vmatpush.msra.mxu0 %v1605
  %4419 = vmatpush.msra.mxu0 %v1604
  %4420 = vmatpush.msra.mxu0 %v1603
  %4421 = vmatpush.msra.mxu0 %v1602
  %4422 = vmatmul.f32.gmra.mxu0 %v66
  %v4423 = vpop.f32.mrf.mxu0
  %v4424 = vadd.f32 %v4380, %v4423
  %4425 = vmatmul.f32.gmra.mxu0 %v145
  %v4426 = vpop.f32.mrf.mxu0
  %v4427 = vadd.f32 %v4383, %v4426
  %4428 = vmatmul.f32.gmra.mxu0 %v224
  %v4429 = vpop.f32.mrf.mxu0
  %v4430 = vadd.f32 %v4386, %v4429
  %4431 = vmatmul.f32.gmra.mxu0 %v303
  %v4432 = vpop.f32.mrf.mxu0
  %v4433 = vadd.f32 %v4389, %v4432
  %4434 = vmatmul.f32.gmra.mxu0 %v382
  %v4435 = vpop.f32.mrf.mxu0
  %v4436 = vadd.f32 %v4392, %v4435
  %4437 = vmatmul.f32.gmra.mxu0 %v461
  %v4438 = vpop.f32.mrf.mxu0
  %v4439 = vadd.f32 %v4395, %v4438
  %4440 = vmatmul.f32.gmra.mxu0 %v540
  %v4441 = vpop.f32.mrf.mxu0
  %v4442 = vadd.f32 %v4398, %v4441
  %4443 = vmatmul.f32.gmra.mxu0 %v619
  %v4444 = vpop.f32.mrf.mxu0
  %v4445 = vadd.f32 %v4401, %v4444
  %4446 = vmatmul.f32.gmra.mxu0 %v698
  %v4447 = vpop.f32.mrf.mxu0
  %v4448 = vadd.f32 %v4404, %v4447
  %4449 = vdwg.mxu0
  %4450 = vmatpush.msra.mxu0 %v1633
  %4451 = vmatpush.msra.mxu0 %v1632
  %4452 = vmatpush.msra.mxu0 %v1631
  %4453 = vmatpush.msra.mxu0 %v1630
  %4454 = vmatpush.msra.mxu0 %v1629
  %4455 = vmatpush.msra.mxu0 %v1628
  %4456 = vmatpush.msra.mxu0 %v1627
  %4457 = vmatpush.msra.mxu0 %v1626
  %4458 = vmatpush.msra.mxu0 %v1625
  %4459 = vmatpush.msra.mxu0 %v1624
  %4460 = vmatpush.msra.mxu0 %v1623
  %4461 = vmatpush.msra.mxu0 %v1622
  %4462 = vmatpush.msra.mxu0 %v1621
  %4463 = vmatpush.msra.mxu0 %v1620
  %4464 = vmatpush.msra.mxu0 %v1619
  %4465 = vmatpush.msra.mxu0 %v1618
  %4466 = vmatmul.f32.gmra.mxu0 %v67
  %v4467 = vpop.f32.mrf.mxu0
  %v4468 = vadd.f32 %v4424, %v4467
  %4469 = vmatmul.f32.gmra.mxu0 %v146
  %v4470 = vpop.f32.mrf.mxu0
  %v4471 = vadd.f32 %v4427, %v4470
  %4472 = vmatmul.f32.gmra.mxu0 %v225
  %v4473 = vpop.f32.mrf.mxu0
  %v4474 = vadd.f32 %v4430, %v4473
  %4475 = vmatmul.f32.gmra.mxu0 %v304
  %v4476 = vpop.f32.mrf.mxu0
  %v4477 = vadd.f32 %v4433, %v4476
  %4478 = vmatmul.f32.gmra.mxu0 %v383
  %v4479 = vpop.f32.mrf.mxu0
  %v4480 = vadd.f32 %v4436, %v4479
  %4481 = vmatmul.f32.gmra.mxu0 %v462
  %v4482 = vpop.f32.mrf.mxu0
  %v4483 = vadd.f32 %v4439, %v4482
  %4484 = vmatmul.f32.gmra.mxu0 %v541
  %v4485 = vpop.f32.mrf.mxu0
  %v4486 = vadd.f32 %v4442, %v4485
  %4487 = vmatmul.f32.gmra.mxu0 %v620
  %v4488 = vpop.f32.mrf.mxu0
  %v4489 = vadd.f32 %v4445, %v4488
  %4490 = vmatmul.f32.gmra.mxu0 %v699
  %v4491 = vpop.f32.mrf.mxu0
  %v4492 = vadd.f32 %v4448, %v4491
  %4493 = vdwg.mxu0
  %4494 = vmatpush.msra.mxu0 %v1649
  %4495 = vmatpush.msra.mxu0 %v1648
  %4496 = vmatpush.msra.mxu0 %v1647
  %4497 = vmatpush.msra.mxu0 %v1646
  %4498 = vmatpush.msra.mxu0 %v1645
  %4499 = vmatpush.msra.mxu0 %v1644
  %4500 = vmatpush.msra.mxu0 %v1643
  %4501 = vmatpush.msra.mxu0 %v1642
  %4502 = vmatpush.msra.mxu0 %v1641
  %4503 = vmatpush.msra.mxu0 %v1640
  %4504 = vmatpush.msra.mxu0 %v1639
  %4505 = vmatpush.msra.mxu0 %v1638
  %4506 = vmatpush.msra.mxu0 %v1637
  %4507 = vmatpush.msra.mxu0 %v1636
  %4508 = vmatpush.msra.mxu0 %v1635
  %4509 = vmatpush.msra.mxu0 %v1634
  %4510 = vmatmul.f32.gmra.mxu0 %v68
  %v4511 = vpop.f32.mrf.mxu0
  %v4512 = vadd.f32 %v4468, %v4511
  %4513 = vmatmul.f32.gmra.mxu0 %v147
  %v4514 = vpop.f32.mrf.mxu0
  %v4515 = vadd.f32 %v4471, %v4514
  %4516 = vmatmul.f32.gmra.mxu0 %v226
  %v4517 = vpop.f32.mrf.mxu0
  %v4518 = vadd.f32 %v4474, %v4517
  %4519 = vmatmul.f32.gmra.mxu0 %v305
  %v4520 = vpop.f32.mrf.mxu0
  %v4521 = vadd.f32 %v4477, %v4520
  %4522 = vmatmul.f32.gmra.mxu0 %v384
  %v4523 = vpop.f32.mrf.mxu0
  %v4524 = vadd.f32 %v4480, %v4523
  %4525 = vmatmul.f32.gmra.mxu0 %v463
  %v4526 = vpop.f32.mrf.mxu0
  %v4527 = vadd.f32 %v4483, %v4526
  %4528 = vmatmul.f32.gmra.mxu0 %v542
  %v4529 = vpop.f32.mrf.mxu0
  %v4530 = vadd.f32 %v4486, %v4529
  %4531 = vmatmul.f32.gmra.mxu0 %v621
  %v4532 = vpop.f32.mrf.mxu0
  %v4533 = vadd.f32 %v4489, %v4532
  %4534 = vmatmul.f32.gmra.mxu0 %v700
  %v4535 = vpop.f32.mrf.mxu0
  %v4536 = vadd.f32 %v4492, %v4535
  %4537 = vdwg.mxu0
  %4538 = vmatpush.msra.mxu0 %v1665
  %4539 = vmatpush.msra.mxu0 %v1664
  %4540 = vmatpush.msra.mxu0 %v1663
  %4541 = vmatpush.msra.mxu0 %v1662
  %4542 = vmatpush.msra.mxu0 %v1661
  %4543 = vmatpush.msra.mxu0 %v1660
  %4544 = vmatpush.msra.mxu0 %v1659
  %4545 = vmatpush.msra.mxu0 %v1658
  %4546 = vmatpush.msra.mxu0 %v1657
  %4547 = vmatpush.msra.mxu0 %v1656
  %4548 = vmatpush.msra.mxu0 %v1655
  %4549 = vmatpush.msra.mxu0 %v1654
  %4550 = vmatpush.msra.mxu0 %v1653
  %4551 = vmatpush.msra.mxu0 %v1652
  %4552 = vmatpush.msra.mxu0 %v1651
  %4553 = vmatpush.msra.mxu0 %v1650
  %4554 = vmatmul.f32.gmra.mxu0 %v69
  %v4555 = vpop.f32.mrf.mxu0
  %v4556 = vadd.f32 %v4512, %v4555
  %4557 = vmatmul.f32.gmra.mxu0 %v148
  %v4558 = vpop.f32.mrf.mxu0
  %v4559 = vadd.f32 %v4515, %v4558
  %4560 = vmatmul.f32.gmra.mxu0 %v227
  %v4561 = vpop.f32.mrf.mxu0
  %v4562 = vadd.f32 %v4518, %v4561
  %4563 = vmatmul.f32.gmra.mxu0 %v306
  %v4564 = vpop.f32.mrf.mxu0
  %v4565 = vadd.f32 %v4521, %v4564
  %4566 = vmatmul.f32.gmra.mxu0 %v385
  %v4567 = vpop.f32.mrf.mxu0
  %v4568 = vadd.f32 %v4524, %v4567
  %4569 = vmatmul.f32.gmra.mxu0 %v464
  %v4570 = vpop.f32.mrf.mxu0
  %v4571 = vadd.f32 %v4527, %v4570
  %4572 = vmatmul.f32.gmra.mxu0 %v543
  %v4573 = vpop.f32.mrf.mxu0
  %v4574 = vadd.f32 %v4530, %v4573
  %4575 = vmatmul.f32.gmra.mxu0 %v622
  %v4576 = vpop.f32.mrf.mxu0
  %v4577 = vadd.f32 %v4533, %v4576
  %4578 = vmatmul.f32.gmra.mxu0 %v701
  %v4579 = vpop.f32.mrf.mxu0
  %v4580 = vadd.f32 %v4536, %v4579
  %4581 = vdwg.mxu0
  %4582 = vmatpush.msra.mxu0 %v1681
  %4583 = vmatpush.msra.mxu0 %v1680
  %4584 = vmatpush.msra.mxu0 %v1679
  %4585 = vmatpush.msra.mxu0 %v1678
  %4586 = vmatpush.msra.mxu0 %v1677
  %4587 = vmatpush.msra.mxu0 %v1676
  %4588 = vmatpush.msra.mxu0 %v1675
  %4589 = vmatpush.msra.mxu0 %v1674
  %4590 = vmatpush.msra.mxu0 %v1673
  %4591 = vmatpush.msra.mxu0 %v1672
  %4592 = vmatpush.msra.mxu0 %v1671
  %4593 = vmatpush.msra.mxu0 %v1670
  %4594 = vmatpush.msra.mxu0 %v1669
  %4595 = vmatpush.msra.mxu0 %v1668
  %4596 = vmatpush.msra.mxu0 %v1667
  %4597 = vmatpush.msra.mxu0 %v1666
  %4598 = vmatmul.f32.gmra.mxu0 %v70
  %v4599 = vpop.f32.mrf.mxu0
  %v4600 = vadd.f32 %v4556, %v4599
  %4601 = vmatmul.f32.gmra.mxu0 %v149
  %v4602 = vpop.f32.mrf.mxu0
  %v4603 = vadd.f32 %v4559, %v4602
  %4604 = vmatmul.f32.gmra.mxu0 %v228
  %v4605 = vpop.f32.mrf.mxu0
  %v4606 = vadd.f32 %v4562, %v4605
  %4607 = vmatmul.f32.gmra.mxu0 %v307
  %v4608 = vpop.f32.mrf.mxu0
  %v4609 = vadd.f32 %v4565, %v4608
  %4610 = vmatmul.f32.gmra.mxu0 %v386
  %v4611 = vpop.f32.mrf.mxu0
  %v4612 = vadd.f32 %v4568, %v4611
  %4613 = vmatmul.f32.gmra.mxu0 %v465
  %v4614 = vpop.f32.mrf.mxu0
  %v4615 = vadd.f32 %v4571, %v4614
  %4616 = vmatmul.f32.gmra.mxu0 %v544
  %v4617 = vpop.f32.mrf.mxu0
  %v4618 = vadd.f32 %v4574, %v4617
  %4619 = vmatmul.f32.gmra.mxu0 %v623
  %v4620 = vpop.f32.mrf.mxu0
  %v4621 = vadd.f32 %v4577, %v4620
  %4622 = vmatmul.f32.gmra.mxu0 %v702
  %v4623 = vpop.f32.mrf.mxu0
  %v4624 = vadd.f32 %v4580, %v4623
  %4625 = vdwg.mxu0
  %4626 = vmatpush.msra.mxu0 %v1697
  %4627 = vmatpush.msra.mxu0 %v1696
  %4628 = vmatpush.msra.mxu0 %v1695
  %4629 = vmatpush.msra.mxu0 %v1694
  %4630 = vmatpush.msra.mxu0 %v1693
  %4631 = vmatpush.msra.mxu0 %v1692
  %4632 = vmatpush.msra.mxu0 %v1691
  %4633 = vmatpush.msra.mxu0 %v1690
  %4634 = vmatpush.msra.mxu0 %v1689
  %4635 = vmatpush.msra.mxu0 %v1688
  %4636 = vmatpush.msra.mxu0 %v1687
  %4637 = vmatpush.msra.mxu0 %v1686
  %4638 = vmatpush.msra.mxu0 %v1685
  %4639 = vmatpush.msra.mxu0 %v1684
  %4640 = vmatpush.msra.mxu0 %v1683
  %4641 = vmatpush.msra.mxu0 %v1682
  %4642 = vmatmul.f32.gmra.mxu0 %v71
  %v4643 = vpop.f32.mrf.mxu0
  %v4644 = vadd.f32 %v4600, %v4643
  %4645 = vmatmul.f32.gmra.mxu0 %v150
  %v4646 = vpop.f32.mrf.mxu0
  %v4647 = vadd.f32 %v4603, %v4646
  %4648 = vmatmul.f32.gmra.mxu0 %v229
  %v4649 = vpop.f32.mrf.mxu0
  %v4650 = vadd.f32 %v4606, %v4649
  %4651 = vmatmul.f32.gmra.mxu0 %v308
  %v4652 = vpop.f32.mrf.mxu0
  %v4653 = vadd.f32 %v4609, %v4652
  %4654 = vmatmul.f32.gmra.mxu0 %v387
  %v4655 = vpop.f32.mrf.mxu0
  %v4656 = vadd.f32 %v4612, %v4655
  %4657 = vmatmul.f32.gmra.mxu0 %v466
  %v4658 = vpop.f32.mrf.mxu0
  %v4659 = vadd.f32 %v4615, %v4658
  %4660 = vmatmul.f32.gmra.mxu0 %v545
  %v4661 = vpop.f32.mrf.mxu0
  %v4662 = vadd.f32 %v4618, %v4661
  %4663 = vmatmul.f32.gmra.mxu0 %v624
  %v4664 = vpop.f32.mrf.mxu0
  %v4665 = vadd.f32 %v4621, %v4664
  %4666 = vmatmul.f32.gmra.mxu0 %v703
  %v4667 = vpop.f32.mrf.mxu0
  %v4668 = vadd.f32 %v4624, %v4667
  %4669 = vdwg.mxu0
  %4670 = vmatpush.msra.mxu0 %v1713
  %4671 = vmatpush.msra.mxu0 %v1712
  %4672 = vmatpush.msra.mxu0 %v1711
  %4673 = vmatpush.msra.mxu0 %v1710
  %4674 = vmatpush.msra.mxu0 %v1709
  %4675 = vmatpush.msra.mxu0 %v1708
  %4676 = vmatpush.msra.mxu0 %v1707
  %4677 = vmatpush.msra.mxu0 %v1706
  %4678 = vmatpush.msra.mxu0 %v1705
  %4679 = vmatpush.msra.mxu0 %v1704
  %4680 = vmatpush.msra.mxu0 %v1703
  %4681 = vmatpush.msra.mxu0 %v1702
  %4682 = vmatpush.msra.mxu0 %v1701
  %4683 = vmatpush.msra.mxu0 %v1700
  %4684 = vmatpush.msra.mxu0 %v1699
  %4685 = vmatpush.msra.mxu0 %v1698
  %4686 = vmatmul.f32.gmra.mxu0 %v72
  %v4687 = vpop.f32.mrf.mxu0
  %v4688 = vadd.f32 %v4644, %v4687
  %4689 = vmatmul.f32.gmra.mxu0 %v151
  %v4690 = vpop.f32.mrf.mxu0
  %v4691 = vadd.f32 %v4647, %v4690
  %4692 = vmatmul.f32.gmra.mxu0 %v230
  %v4693 = vpop.f32.mrf.mxu0
  %v4694 = vadd.f32 %v4650, %v4693
  %4695 = vmatmul.f32.gmra.mxu0 %v309
  %v4696 = vpop.f32.mrf.mxu0
  %v4697 = vadd.f32 %v4653, %v4696
  %4698 = vmatmul.f32.gmra.mxu0 %v388
  %v4699 = vpop.f32.mrf.mxu0
  %v4700 = vadd.f32 %v4656, %v4699
  %4701 = vmatmul.f32.gmra.mxu0 %v467
  %v4702 = vpop.f32.mrf.mxu0
  %v4703 = vadd.f32 %v4659, %v4702
  %4704 = vmatmul.f32.gmra.mxu0 %v546
  %v4705 = vpop.f32.mrf.mxu0
  %v4706 = vadd.f32 %v4662, %v4705
  %4707 = vmatmul.f32.gmra.mxu0 %v625
  %v4708 = vpop.f32.mrf.mxu0
  %v4709 = vadd.f32 %v4665, %v4708
  %4710 = vmatmul.f32.gmra.mxu0 %v704
  %v4711 = vpop.f32.mrf.mxu0
  %v4712 = vadd.f32 %v4668, %v4711
  %4713 = vdwg.mxu0
  %4714 = vmatpush.msra.mxu0 %v1729
  %4715 = vmatpush.msra.mxu0 %v1728
  %4716 = vmatpush.msra.mxu0 %v1727
  %4717 = vmatpush.msra.mxu0 %v1726
  %4718 = vmatpush.msra.mxu0 %v1725
  %4719 = vmatpush.msra.mxu0 %v1724
  %4720 = vmatpush.msra.mxu0 %v1723
  %4721 = vmatpush.msra.mxu0 %v1722
  %4722 = vmatpush.msra.mxu0 %v1721
  %4723 = vmatpush.msra.mxu0 %v1720
  %4724 = vmatpush.msra.mxu0 %v1719
  %4725 = vmatpush.msra.mxu0 %v1718
  %4726 = vmatpush.msra.mxu0 %v1717
  %4727 = vmatpush.msra.mxu0 %v1716
  %4728 = vmatpush.msra.mxu0 %v1715
  %4729 = vmatpush.msra.mxu0 %v1714
  %4730 = vmatmul.f32.gmra.mxu0 %v73
  %v4731 = vpop.f32.mrf.mxu0
  %v4732 = vadd.f32 %v4688, %v4731
  %4733 = vmatmul.f32.gmra.mxu0 %v152
  %v4734 = vpop.f32.mrf.mxu0
  %v4735 = vadd.f32 %v4691, %v4734
  %4736 = vmatmul.f32.gmra.mxu0 %v231
  %v4737 = vpop.f32.mrf.mxu0
  %v4738 = vadd.f32 %v4694, %v4737
  %4739 = vmatmul.f32.gmra.mxu0 %v310
  %v4740 = vpop.f32.mrf.mxu0
  %v4741 = vadd.f32 %v4697, %v4740
  %4742 = vmatmul.f32.gmra.mxu0 %v389
  %v4743 = vpop.f32.mrf.mxu0
  %v4744 = vadd.f32 %v4700, %v4743
  %4745 = vmatmul.f32.gmra.mxu0 %v468
  %v4746 = vpop.f32.mrf.mxu0
  %v4747 = vadd.f32 %v4703, %v4746
  %4748 = vmatmul.f32.gmra.mxu0 %v547
  %v4749 = vpop.f32.mrf.mxu0
  %v4750 = vadd.f32 %v4706, %v4749
  %4751 = vmatmul.f32.gmra.mxu0 %v626
  %v4752 = vpop.f32.mrf.mxu0
  %v4753 = vadd.f32 %v4709, %v4752
  %4754 = vmatmul.f32.gmra.mxu0 %v705
  %v4755 = vpop.f32.mrf.mxu0
  %v4756 = vadd.f32 %v4712, %v4755
  %4757 = vdwg.mxu0
  %4758 = vmatpush.msra.mxu0 %v1745
  %4759 = vmatpush.msra.mxu0 %v1744
  %4760 = vmatpush.msra.mxu0 %v1743
  %4761 = vmatpush.msra.mxu0 %v1742
  %4762 = vmatpush.msra.mxu0 %v1741
  %4763 = vmatpush.msra.mxu0 %v1740
  %4764 = vmatpush.msra.mxu0 %v1739
  %4765 = vmatpush.msra.mxu0 %v1738
  %4766 = vmatpush.msra.mxu0 %v1737
  %4767 = vmatpush.msra.mxu0 %v1736
  %4768 = vmatpush.msra.mxu0 %v1735
  %4769 = vmatpush.msra.mxu0 %v1734
  %4770 = vmatpush.msra.mxu0 %v1733
  %4771 = vmatpush.msra.mxu0 %v1732
  %4772 = vmatpush.msra.mxu0 %v1731
  %4773 = vmatpush.msra.mxu0 %v1730
  %4774 = vmatmul.f32.gmra.mxu0 %v74
  %v4775 = vpop.f32.mrf.mxu0
  %v4776 = vadd.f32 %v4732, %v4775
  %4777 = vmatmul.f32.gmra.mxu0 %v153
  %v4778 = vpop.f32.mrf.mxu0
  %v4779 = vadd.f32 %v4735, %v4778
  %4780 = vmatmul.f32.gmra.mxu0 %v232
  %v4781 = vpop.f32.mrf.mxu0
  %v4782 = vadd.f32 %v4738, %v4781
  %4783 = vmatmul.f32.gmra.mxu0 %v311
  %v4784 = vpop.f32.mrf.mxu0
  %v4785 = vadd.f32 %v4741, %v4784
  %4786 = vmatmul.f32.gmra.mxu0 %v390
  %v4787 = vpop.f32.mrf.mxu0
  %v4788 = vadd.f32 %v4744, %v4787
  %4789 = vmatmul.f32.gmra.mxu0 %v469
  %v4790 = vpop.f32.mrf.mxu0
  %v4791 = vadd.f32 %v4747, %v4790
  %4792 = vmatmul.f32.gmra.mxu0 %v548
  %v4793 = vpop.f32.mrf.mxu0
  %v4794 = vadd.f32 %v4750, %v4793
  %4795 = vmatmul.f32.gmra.mxu0 %v627
  %v4796 = vpop.f32.mrf.mxu0
  %v4797 = vadd.f32 %v4753, %v4796
  %4798 = vmatmul.f32.gmra.mxu0 %v706
  %v4799 = vpop.f32.mrf.mxu0
  %v4800 = vadd.f32 %v4756, %v4799
  %4801 = vdwg.mxu0
  %4802 = vmatpush.msra.mxu0 %v1761
  %4803 = vmatpush.msra.mxu0 %v1760
  %4804 = vmatpush.msra.mxu0 %v1759
  %4805 = vmatpush.msra.mxu0 %v1758
  %4806 = vmatpush.msra.mxu0 %v1757
  %4807 = vmatpush.msra.mxu0 %v1756
  %4808 = vmatpush.msra.mxu0 %v1755
  %4809 = vmatpush.msra.mxu0 %v1754
  %4810 = vmatpush.msra.mxu0 %v1753
  %4811 = vmatpush.msra.mxu0 %v1752
  %4812 = vmatpush.msra.mxu0 %v1751
  %4813 = vmatpush.msra.mxu0 %v1750
  %4814 = vmatpush.msra.mxu0 %v1749
  %4815 = vmatpush.msra.mxu0 %v1748
  %4816 = vmatpush.msra.mxu0 %v1747
  %4817 = vmatpush.msra.mxu0 %v1746
  %4818 = vmatmul.f32.gmra.mxu0 %v75
  %v4819 = vpop.f32.mrf.mxu0
  %v4820 = vadd.f32 %v4776, %v4819
  %4821 = vmatmul.f32.gmra.mxu0 %v154
  %v4822 = vpop.f32.mrf.mxu0
  %v4823 = vadd.f32 %v4779, %v4822
  %4824 = vmatmul.f32.gmra.mxu0 %v233
  %v4825 = vpop.f32.mrf.mxu0
  %v4826 = vadd.f32 %v4782, %v4825
  %4827 = vmatmul.f32.gmra.mxu0 %v312
  %v4828 = vpop.f32.mrf.mxu0
  %v4829 = vadd.f32 %v4785, %v4828
  %4830 = vmatmul.f32.gmra.mxu0 %v391
  %v4831 = vpop.f32.mrf.mxu0
  %v4832 = vadd.f32 %v4788, %v4831
  %4833 = vmatmul.f32.gmra.mxu0 %v470
  %v4834 = vpop.f32.mrf.mxu0
  %v4835 = vadd.f32 %v4791, %v4834
  %4836 = vmatmul.f32.gmra.mxu0 %v549
  %v4837 = vpop.f32.mrf.mxu0
  %v4838 = vadd.f32 %v4794, %v4837
  %4839 = vmatmul.f32.gmra.mxu0 %v628
  %v4840 = vpop.f32.mrf.mxu0
  %v4841 = vadd.f32 %v4797, %v4840
  %4842 = vmatmul.f32.gmra.mxu0 %v707
  %v4843 = vpop.f32.mrf.mxu0
  %v4844 = vadd.f32 %v4800, %v4843
  %4845 = vdwg.mxu0
  %4846 = vmatpush.msra.mxu0 %v1777
  %4847 = vmatpush.msra.mxu0 %v1776
  %4848 = vmatpush.msra.mxu0 %v1775
  %4849 = vmatpush.msra.mxu0 %v1774
  %4850 = vmatpush.msra.mxu0 %v1773
  %4851 = vmatpush.msra.mxu0 %v1772
  %4852 = vmatpush.msra.mxu0 %v1771
  %4853 = vmatpush.msra.mxu0 %v1770
  %4854 = vmatpush.msra.mxu0 %v1769
  %4855 = vmatpush.msra.mxu0 %v1768
  %4856 = vmatpush.msra.mxu0 %v1767
  %4857 = vmatpush.msra.mxu0 %v1766
  %4858 = vmatpush.msra.mxu0 %v1765
  %4859 = vmatpush.msra.mxu0 %v1764
  %4860 = vmatpush.msra.mxu0 %v1763
  %4861 = vmatpush.msra.mxu0 %v1762
  %4862 = vmatmul.f32.gmra.mxu0 %v76
  %v4863 = vpop.f32.mrf.mxu0
  %v4864 = vadd.f32 %v4820, %v4863
  %4865 = vmatmul.f32.gmra.mxu0 %v155
  %v4866 = vpop.f32.mrf.mxu0
  %v4867 = vadd.f32 %v4823, %v4866
  %4868 = vmatmul.f32.gmra.mxu0 %v234
  %v4869 = vpop.f32.mrf.mxu0
  %v4870 = vadd.f32 %v4826, %v4869
  %4871 = vmatmul.f32.gmra.mxu0 %v313
  %v4872 = vpop.f32.mrf.mxu0
  %v4873 = vadd.f32 %v4829, %v4872
  %4874 = vmatmul.f32.gmra.mxu0 %v392
  %v4875 = vpop.f32.mrf.mxu0
  %v4876 = vadd.f32 %v4832, %v4875
  %4877 = vmatmul.f32.gmra.mxu0 %v471
  %v4878 = vpop.f32.mrf.mxu0
  %v4879 = vadd.f32 %v4835, %v4878
  %4880 = vmatmul.f32.gmra.mxu0 %v550
  %v4881 = vpop.f32.mrf.mxu0
  %v4882 = vadd.f32 %v4838, %v4881
  %4883 = vmatmul.f32.gmra.mxu0 %v629
  %v4884 = vpop.f32.mrf.mxu0
  %v4885 = vadd.f32 %v4841, %v4884
  %4886 = vmatmul.f32.gmra.mxu0 %v708
  %v4887 = vpop.f32.mrf.mxu0
  %v4888 = vadd.f32 %v4844, %v4887
  %4889 = vdwg.mxu0
  %4890 = vmatpush.msra.mxu0 %v1793
  %4891 = vmatpush.msra.mxu0 %v1792
  %4892 = vmatpush.msra.mxu0 %v1791
  %4893 = vmatpush.msra.mxu0 %v1790
  %4894 = vmatpush.msra.mxu0 %v1789
  %4895 = vmatpush.msra.mxu0 %v1788
  %4896 = vmatpush.msra.mxu0 %v1787
  %4897 = vmatpush.msra.mxu0 %v1786
  %4898 = vmatpush.msra.mxu0 %v1785
  %4899 = vmatpush.msra.mxu0 %v1784
  %4900 = vmatpush.msra.mxu0 %v1783
  %4901 = vmatpush.msra.mxu0 %v1782
  %4902 = vmatpush.msra.mxu0 %v1781
  %4903 = vmatpush.msra.mxu0 %v1780
  %4904 = vmatpush.msra.mxu0 %v1779
  %4905 = vmatpush.msra.mxu0 %v1778
  %4906 = vmatmul.f32.gmra.mxu0 %v77
  %v4907 = vpop.f32.mrf.mxu0
  %v4908 = vadd.f32 %v4864, %v4907
  %4909 = vmatmul.f32.gmra.mxu0 %v156
  %v4910 = vpop.f32.mrf.mxu0
  %v4911 = vadd.f32 %v4867, %v4910
  %4912 = vmatmul.f32.gmra.mxu0 %v235
  %v4913 = vpop.f32.mrf.mxu0
  %v4914 = vadd.f32 %v4870, %v4913
  %4915 = vmatmul.f32.gmra.mxu0 %v314
  %v4916 = vpop.f32.mrf.mxu0
  %v4917 = vadd.f32 %v4873, %v4916
  %4918 = vmatmul.f32.gmra.mxu0 %v393
  %v4919 = vpop.f32.mrf.mxu0
  %v4920 = vadd.f32 %v4876, %v4919
  %4921 = vmatmul.f32.gmra.mxu0 %v472
  %v4922 = vpop.f32.mrf.mxu0
  %v4923 = vadd.f32 %v4879, %v4922
  %4924 = vmatmul.f32.gmra.mxu0 %v551
  %v4925 = vpop.f32.mrf.mxu0
  %v4926 = vadd.f32 %v4882, %v4925
  %4927 = vmatmul.f32.gmra.mxu0 %v630
  %v4928 = vpop.f32.mrf.mxu0
  %v4929 = vadd.f32 %v4885, %v4928
  %4930 = vmatmul.f32.gmra.mxu0 %v709
  %v4931 = vpop.f32.mrf.mxu0
  %v4932 = vadd.f32 %v4888, %v4931
  %4933 = vdwg.mxu0
  %4934 = vmatpush.msra.mxu0 %v1809
  %4935 = vmatpush.msra.mxu0 %v1808
  %4936 = vmatpush.msra.mxu0 %v1807
  %4937 = vmatpush.msra.mxu0 %v1806
  %4938 = vmatpush.msra.mxu0 %v1805
  %4939 = vmatpush.msra.mxu0 %v1804
  %4940 = vmatpush.msra.mxu0 %v1803
  %4941 = vmatpush.msra.mxu0 %v1802
  %4942 = vmatpush.msra.mxu0 %v1801
  %4943 = vmatpush.msra.mxu0 %v1800
  %4944 = vmatpush.msra.mxu0 %v1799
  %4945 = vmatpush.msra.mxu0 %v1798
  %4946 = vmatpush.msra.mxu0 %v1797
  %4947 = vmatpush.msra.mxu0 %v1796
  %4948 = vmatpush.msra.mxu0 %v1795
  %4949 = vmatpush.msra.mxu0 %v1794
  %4950 = vmatmul.f32.gmra.mxu0 %v78
  %v4951 = vpop.f32.mrf.mxu0
  %v4952 = vadd.f32 %v4908, %v4951
  %4953 = vmatmul.f32.gmra.mxu0 %v157
  %v4954 = vpop.f32.mrf.mxu0
  %v4955 = vadd.f32 %v4911, %v4954
  %4956 = vmatmul.f32.gmra.mxu0 %v236
  %v4957 = vpop.f32.mrf.mxu0
  %v4958 = vadd.f32 %v4914, %v4957
  %4959 = vmatmul.f32.gmra.mxu0 %v315
  %v4960 = vpop.f32.mrf.mxu0
  %v4961 = vadd.f32 %v4917, %v4960
  %4962 = vmatmul.f32.gmra.mxu0 %v394
  %v4963 = vpop.f32.mrf.mxu0
  %v4964 = vadd.f32 %v4920, %v4963
  %4965 = vmatmul.f32.gmra.mxu0 %v473
  %v4966 = vpop.f32.mrf.mxu0
  %v4967 = vadd.f32 %v4923, %v4966
  %4968 = vmatmul.f32.gmra.mxu0 %v552
  %v4969 = vpop.f32.mrf.mxu0
  %v4970 = vadd.f32 %v4926, %v4969
  %4971 = vmatmul.f32.gmra.mxu0 %v631
  %v4972 = vpop.f32.mrf.mxu0
  %v4973 = vadd.f32 %v4929, %v4972
  %4974 = vmatmul.f32.gmra.mxu0 %v710
  %v4975 = vpop.f32.mrf.mxu0
  %v4976 = vadd.f32 %v4932, %v4975
  %4977 = vdwg.mxu0
  %4978 = vmatpush.msra.mxu0 %v1825
  %4979 = vmatpush.msra.mxu0 %v1824
  %4980 = vmatpush.msra.mxu0 %v1823
  %4981 = vmatpush.msra.mxu0 %v1822
  %4982 = vmatpush.msra.mxu0 %v1821
  %4983 = vmatpush.msra.mxu0 %v1820
  %4984 = vmatpush.msra.mxu0 %v1819
  %4985 = vmatpush.msra.mxu0 %v1818
  %4986 = vmatpush.msra.mxu0 %v1817
  %4987 = vmatpush.msra.mxu0 %v1816
  %4988 = vmatpush.msra.mxu0 %v1815
  %4989 = vmatpush.msra.mxu0 %v1814
  %4990 = vmatpush.msra.mxu0 %v1813
  %4991 = vmatpush.msra.mxu0 %v1812
  %4992 = vmatpush.msra.mxu0 %v1811
  %4993 = vmatpush.msra.mxu0 %v1810
  %4994 = vmatmul.f32.gmra.mxu0 %v79
  %v4995 = vpop.f32.mrf.mxu0
  %v4996 = vadd.f32 %v4952, %v4995
  %4997 = vmatmul.f32.gmra.mxu0 %v158
  %v4998 = vpop.f32.mrf.mxu0
  %v4999 = vadd.f32 %v4955, %v4998
  %5000 = vmatmul.f32.gmra.mxu0 %v237
  %v5001 = vpop.f32.mrf.mxu0
  %v5002 = vadd.f32 %v4958, %v5001
  %5003 = vmatmul.f32.gmra.mxu0 %v316
  %v5004 = vpop.f32.mrf.mxu0
  %v5005 = vadd.f32 %v4961, %v5004
  %5006 = vmatmul.f32.gmra.mxu0 %v395
  %v5007 = vpop.f32.mrf.mxu0
  %v5008 = vadd.f32 %v4964, %v5007
  %5009 = vmatmul.f32.gmra.mxu0 %v474
  %v5010 = vpop.f32.mrf.mxu0
  %v5011 = vadd.f32 %v4967, %v5010
  %5012 = vmatmul.f32.gmra.mxu0 %v553
  %v5013 = vpop.f32.mrf.mxu0
  %v5014 = vadd.f32 %v4970, %v5013
  %5015 = vmatmul.f32.gmra.mxu0 %v632
  %v5016 = vpop.f32.mrf.mxu0
  %v5017 = vadd.f32 %v4973, %v5016
  %5018 = vmatmul.f32.gmra.mxu0 %v711
  %v5019 = vpop.f32.mrf.mxu0
  %v5020 = vadd.f32 %v4976, %v5019
  %5021 = vdwg.mxu0
  %5022 = vmatpush.msra.mxu0 %v1841
  %5023 = vmatpush.msra.mxu0 %v1840
  %5024 = vmatpush.msra.mxu0 %v1839
  %5025 = vmatpush.msra.mxu0 %v1838
  %5026 = vmatpush.msra.mxu0 %v1837
  %5027 = vmatpush.msra.mxu0 %v1836
  %5028 = vmatpush.msra.mxu0 %v1835
  %5029 = vmatpush.msra.mxu0 %v1834
  %5030 = vmatpush.msra.mxu0 %v1833
  %5031 = vmatpush.msra.mxu0 %v1832
  %5032 = vmatpush.msra.mxu0 %v1831
  %5033 = vmatpush.msra.mxu0 %v1830
  %5034 = vmatpush.msra.mxu0 %v1829
  %5035 = vmatpush.msra.mxu0 %v1828
  %5036 = vmatpush.msra.mxu0 %v1827
  %5037 = vmatpush.msra.mxu0 %v1826
  %5038 = vmatmul.f32.gmra.mxu0 %v80
  %v5039 = vpop.f32.mrf.mxu0
  %v5040 = vadd.f32 %v4996, %v5039
  %5041 = vmatmul.f32.gmra.mxu0 %v159
  %v5042 = vpop.f32.mrf.mxu0
  %v5043 = vadd.f32 %v4999, %v5042
  %5044 = vmatmul.f32.gmra.mxu0 %v238
  %v5045 = vpop.f32.mrf.mxu0
  %v5046 = vadd.f32 %v5002, %v5045
  %5047 = vmatmul.f32.gmra.mxu0 %v317
  %v5048 = vpop.f32.mrf.mxu0
  %v5049 = vadd.f32 %v5005, %v5048
  %5050 = vmatmul.f32.gmra.mxu0 %v396
  %v5051 = vpop.f32.mrf.mxu0
  %v5052 = vadd.f32 %v5008, %v5051
  %5053 = vmatmul.f32.gmra.mxu0 %v475
  %v5054 = vpop.f32.mrf.mxu0
  %v5055 = vadd.f32 %v5011, %v5054
  %5056 = vmatmul.f32.gmra.mxu0 %v554
  %v5057 = vpop.f32.mrf.mxu0
  %v5058 = vadd.f32 %v5014, %v5057
  %5059 = vmatmul.f32.gmra.mxu0 %v633
  %v5060 = vpop.f32.mrf.mxu0
  %v5061 = vadd.f32 %v5017, %v5060
  %5062 = vmatmul.f32.gmra.mxu0 %v712
  %v5063 = vpop.f32.mrf.mxu0
  %v5064 = vadd.f32 %v5020, %v5063
  %5065 = vdwg.mxu0
  %5066 = vmatpush.msra.mxu0 %v1857
  %5067 = vmatpush.msra.mxu0 %v1856
  %5068 = vmatpush.msra.mxu0 %v1855
  %5069 = vmatpush.msra.mxu0 %v1854
  %5070 = vmatpush.msra.mxu0 %v1853
  %5071 = vmatpush.msra.mxu0 %v1852
  %5072 = vmatpush.msra.mxu0 %v1851
  %5073 = vmatpush.msra.mxu0 %v1850
  %5074 = vmatpush.msra.mxu0 %v1849
  %5075 = vmatpush.msra.mxu0 %v1848
  %5076 = vmatpush.msra.mxu0 %v1847
  %5077 = vmatpush.msra.mxu0 %v1846
  %5078 = vmatpush.msra.mxu0 %v1845
  %5079 = vmatpush.msra.mxu0 %v1844
  %5080 = vmatpush.msra.mxu0 %v1843
  %5081 = vmatpush.msra.mxu0 %v1842
  %5082 = vmatmul.f32.gmra.mxu0 %v81
  %v5083 = vpop.f32.mrf.mxu0
  %v5084 = vadd.f32 %v5040, %v5083
  %5085 = vmatmul.f32.gmra.mxu0 %v160
  %v5086 = vpop.f32.mrf.mxu0
  %v5087 = vadd.f32 %v5043, %v5086
  %5088 = vmatmul.f32.gmra.mxu0 %v239
  %v5089 = vpop.f32.mrf.mxu0
  %v5090 = vadd.f32 %v5046, %v5089
  %5091 = vmatmul.f32.gmra.mxu0 %v318
  %v5092 = vpop.f32.mrf.mxu0
  %v5093 = vadd.f32 %v5049, %v5092
  %5094 = vmatmul.f32.gmra.mxu0 %v397
  %v5095 = vpop.f32.mrf.mxu0
  %v5096 = vadd.f32 %v5052, %v5095
  %5097 = vmatmul.f32.gmra.mxu0 %v476
  %v5098 = vpop.f32.mrf.mxu0
  %v5099 = vadd.f32 %v5055, %v5098
  %5100 = vmatmul.f32.gmra.mxu0 %v555
  %v5101 = vpop.f32.mrf.mxu0
  %v5102 = vadd.f32 %v5058, %v5101
  %5103 = vmatmul.f32.gmra.mxu0 %v634
  %v5104 = vpop.f32.mrf.mxu0
  %v5105 = vadd.f32 %v5061, %v5104
  %5106 = vmatmul.f32.gmra.mxu0 %v713
  %v5107 = vpop.f32.mrf.mxu0
  %v5108 = vadd.f32 %v5064, %v5107
  %5109 = vdwg.mxu0
  %5110 = vmatpush.msra.mxu0 %v1873
  %5111 = vmatpush.msra.mxu0 %v1872
  %5112 = vmatpush.msra.mxu0 %v1871
  %5113 = vmatpush.msra.mxu0 %v1870
  %5114 = vmatpush.msra.mxu0 %v1869
  %5115 = vmatpush.msra.mxu0 %v1868
  %5116 = vmatpush.msra.mxu0 %v1867
  %5117 = vmatpush.msra.mxu0 %v1866
  %5118 = vmatpush.msra.mxu0 %v1865
  %5119 = vmatpush.msra.mxu0 %v1864
  %5120 = vmatpush.msra.mxu0 %v1863
  %5121 = vmatpush.msra.mxu0 %v1862
  %5122 = vmatpush.msra.mxu0 %v1861
  %5123 = vmatpush.msra.mxu0 %v1860
  %5124 = vmatpush.msra.mxu0 %v1859
  %5125 = vmatpush.msra.mxu0 %v1858
  %5126 = vmatmul.f32.gmra.mxu0 %v82
  %v5127 = vpop.f32.mrf.mxu0
  %v5128 = vadd.f32 %v5084, %v5127
  %5129 = vmatmul.f32.gmra.mxu0 %v161
  %v5130 = vpop.f32.mrf.mxu0
  %v5131 = vadd.f32 %v5087, %v5130
  %5132 = vmatmul.f32.gmra.mxu0 %v240
  %v5133 = vpop.f32.mrf.mxu0
  %v5134 = vadd.f32 %v5090, %v5133
  %5135 = vmatmul.f32.gmra.mxu0 %v319
  %v5136 = vpop.f32.mrf.mxu0
  %v5137 = vadd.f32 %v5093, %v5136
  %5138 = vmatmul.f32.gmra.mxu0 %v398
  %v5139 = vpop.f32.mrf.mxu0
  %v5140 = vadd.f32 %v5096, %v5139
  %5141 = vmatmul.f32.gmra.mxu0 %v477
  %v5142 = vpop.f32.mrf.mxu0
  %v5143 = vadd.f32 %v5099, %v5142
  %5144 = vmatmul.f32.gmra.mxu0 %v556
  %v5145 = vpop.f32.mrf.mxu0
  %v5146 = vadd.f32 %v5102, %v5145
  %5147 = vmatmul.f32.gmra.mxu0 %v635
  %v5148 = vpop.f32.mrf.mxu0
  %v5149 = vadd.f32 %v5105, %v5148
  %5150 = vmatmul.f32.gmra.mxu0 %v714
  %v5151 = vpop.f32.mrf.mxu0
  %v5152 = vadd.f32 %v5108, %v5151
  %5153 = vdwg.mxu0
  %5154 = vmatpush.msra.mxu0 %v1889
  %5155 = vmatpush.msra.mxu0 %v1888
  %5156 = vmatpush.msra.mxu0 %v1887
  %5157 = vmatpush.msra.mxu0 %v1886
  %5158 = vmatpush.msra.mxu0 %v1885
  %5159 = vmatpush.msra.mxu0 %v1884
  %5160 = vmatpush.msra.mxu0 %v1883
  %5161 = vmatpush.msra.mxu0 %v1882
  %5162 = vmatpush.msra.mxu0 %v1881
  %5163 = vmatpush.msra.mxu0 %v1880
  %5164 = vmatpush.msra.mxu0 %v1879
  %5165 = vmatpush.msra.mxu0 %v1878
  %5166 = vmatpush.msra.mxu0 %v1877
  %5167 = vmatpush.msra.mxu0 %v1876
  %5168 = vmatpush.msra.mxu0 %v1875
  %5169 = vmatpush.msra.mxu0 %v1874
  %5170 = vmatmul.f32.gmra.mxu0 %v83
  %v5171 = vpop.f32.mrf.mxu0
  %v5172 = vadd.f32 %v5128, %v5171
  %5173 = vmatmul.f32.gmra.mxu0 %v162
  %v5174 = vpop.f32.mrf.mxu0
  %v5175 = vadd.f32 %v5131, %v5174
  %5176 = vmatmul.f32.gmra.mxu0 %v241
  %v5177 = vpop.f32.mrf.mxu0
  %v5178 = vadd.f32 %v5134, %v5177
  %5179 = vmatmul.f32.gmra.mxu0 %v320
  %v5180 = vpop.f32.mrf.mxu0
  %v5181 = vadd.f32 %v5137, %v5180
  %5182 = vmatmul.f32.gmra.mxu0 %v399
  %v5183 = vpop.f32.mrf.mxu0
  %v5184 = vadd.f32 %v5140, %v5183
  %5185 = vmatmul.f32.gmra.mxu0 %v478
  %v5186 = vpop.f32.mrf.mxu0
  %v5187 = vadd.f32 %v5143, %v5186
  %5188 = vmatmul.f32.gmra.mxu0 %v557
  %v5189 = vpop.f32.mrf.mxu0
  %v5190 = vadd.f32 %v5146, %v5189
  %5191 = vmatmul.f32.gmra.mxu0 %v636
  %v5192 = vpop.f32.mrf.mxu0
  %v5193 = vadd.f32 %v5149, %v5192
  %5194 = vmatmul.f32.gmra.mxu0 %v715
  %v5195 = vpop.f32.mrf.mxu0
  %v5196 = vadd.f32 %v5152, %v5195
  %5197 = vdwg.mxu0
  %5198 = vmatpush.msra.mxu0 %v1905
  %5199 = vmatpush.msra.mxu0 %v1904
  %5200 = vmatpush.msra.mxu0 %v1903
  %5201 = vmatpush.msra.mxu0 %v1902
  %5202 = vmatpush.msra.mxu0 %v1901
  %5203 = vmatpush.msra.mxu0 %v1900
  %5204 = vmatpush.msra.mxu0 %v1899
  %5205 = vmatpush.msra.mxu0 %v1898
  %5206 = vmatpush.msra.mxu0 %v1897
  %5207 = vmatpush.msra.mxu0 %v1896
  %5208 = vmatpush.msra.mxu0 %v1895
  %5209 = vmatpush.msra.mxu0 %v1894
  %5210 = vmatpush.msra.mxu0 %v1893
  %5211 = vmatpush.msra.mxu0 %v1892
  %5212 = vmatpush.msra.mxu0 %v1891
  %5213 = vmatpush.msra.mxu0 %v1890
  %5214 = vmatmul.f32.gmra.mxu0 %v84
  %v5215 = vpop.f32.mrf.mxu0
  %v5216 = vadd.f32 %v5172, %v5215
  %5217 = vmatmul.f32.gmra.mxu0 %v163
  %v5218 = vpop.f32.mrf.mxu0
  %v5219 = vadd.f32 %v5175, %v5218
  %5220 = vmatmul.f32.gmra.mxu0 %v242
  %v5221 = vpop.f32.mrf.mxu0
  %v5222 = vadd.f32 %v5178, %v5221
  %5223 = vmatmul.f32.gmra.mxu0 %v321
  %v5224 = vpop.f32.mrf.mxu0
  %v5225 = vadd.f32 %v5181, %v5224
  %5226 = vmatmul.f32.gmra.mxu0 %v400
  %v5227 = vpop.f32.mrf.mxu0
  %v5228 = vadd.f32 %v5184, %v5227
  %5229 = vmatmul.f32.gmra.mxu0 %v479
  %v5230 = vpop.f32.mrf.mxu0
  %v5231 = vadd.f32 %v5187, %v5230
  %5232 = vmatmul.f32.gmra.mxu0 %v558
  %v5233 = vpop.f32.mrf.mxu0
  %v5234 = vadd.f32 %v5190, %v5233
  %5235 = vmatmul.f32.gmra.mxu0 %v637
  %v5236 = vpop.f32.mrf.mxu0
  %v5237 = vadd.f32 %v5193, %v5236
  %5238 = vmatmul.f32.gmra.mxu0 %v716
  %v5239 = vpop.f32.mrf.mxu0
  %v5240 = vadd.f32 %v5196, %v5239
  %5241 = vdwg.mxu0
  %5242 = vmatpush.msra.mxu0 %v1921
  %5243 = vmatpush.msra.mxu0 %v1920
  %5244 = vmatpush.msra.mxu0 %v1919
  %5245 = vmatpush.msra.mxu0 %v1918
  %5246 = vmatpush.msra.mxu0 %v1917
  %5247 = vmatpush.msra.mxu0 %v1916
  %5248 = vmatpush.msra.mxu0 %v1915
  %5249 = vmatpush.msra.mxu0 %v1914
  %5250 = vmatpush.msra.mxu0 %v1913
  %5251 = vmatpush.msra.mxu0 %v1912
  %5252 = vmatpush.msra.mxu0 %v1911
  %5253 = vmatpush.msra.mxu0 %v1910
  %5254 = vmatpush.msra.mxu0 %v1909
  %5255 = vmatpush.msra.mxu0 %v1908
  %5256 = vmatpush.msra.mxu0 %v1907
  %5257 = vmatpush.msra.mxu0 %v1906
  %5258 = vmatmul.f32.gmra.mxu0 %v85
  %v5259 = vpop.f32.mrf.mxu0
  %v5260 = vadd.f32 %v5216, %v5259
  %5261 = vmatmul.f32.gmra.mxu0 %v164
  %v5262 = vpop.f32.mrf.mxu0
  %v5263 = vadd.f32 %v5219, %v5262
  %5264 = vmatmul.f32.gmra.mxu0 %v243
  %v5265 = vpop.f32.mrf.mxu0
  %v5266 = vadd.f32 %v5222, %v5265
  %5267 = vmatmul.f32.gmra.mxu0 %v322
  %v5268 = vpop.f32.mrf.mxu0
  %v5269 = vadd.f32 %v5225, %v5268
  %5270 = vmatmul.f32.gmra.mxu0 %v401
  %v5271 = vpop.f32.mrf.mxu0
  %v5272 = vadd.f32 %v5228, %v5271
  %5273 = vmatmul.f32.gmra.mxu0 %v480
  %v5274 = vpop.f32.mrf.mxu0
  %v5275 = vadd.f32 %v5231, %v5274
  %5276 = vmatmul.f32.gmra.mxu0 %v559
  %v5277 = vpop.f32.mrf.mxu0
  %v5278 = vadd.f32 %v5234, %v5277
  %5279 = vmatmul.f32.gmra.mxu0 %v638
  %v5280 = vpop.f32.mrf.mxu0
  %v5281 = vadd.f32 %v5237, %v5280
  %5282 = vmatmul.f32.gmra.mxu0 %v717
  %v5283 = vpop.f32.mrf.mxu0
  %v5284 = vadd.f32 %v5240, %v5283
  %5285 = vdwg.mxu0
  %5286 = vmatpush.msra.mxu0 %v1937
  %5287 = vmatpush.msra.mxu0 %v1936
  %5288 = vmatpush.msra.mxu0 %v1935
  %5289 = vmatpush.msra.mxu0 %v1934
  %5290 = vmatpush.msra.mxu0 %v1933
  %5291 = vmatpush.msra.mxu0 %v1932
  %5292 = vmatpush.msra.mxu0 %v1931
  %5293 = vmatpush.msra.mxu0 %v1930
  %5294 = vmatpush.msra.mxu0 %v1929
  %5295 = vmatpush.msra.mxu0 %v1928
  %5296 = vmatpush.msra.mxu0 %v1927
  %5297 = vmatpush.msra.mxu0 %v1926
  %5298 = vmatpush.msra.mxu0 %v1925
  %5299 = vmatpush.msra.mxu0 %v1924
  %5300 = vmatpush.msra.mxu0 %v1923
  %5301 = vmatpush.msra.mxu0 %v1922
  %5302 = vmatmul.f32.gmra.mxu0 %v86
  %v5303 = vpop.f32.mrf.mxu0
  %v5304 = vadd.f32 %v5260, %v5303
  %5305 = vmatmul.f32.gmra.mxu0 %v165
  %v5306 = vpop.f32.mrf.mxu0
  %v5307 = vadd.f32 %v5263, %v5306
  %5308 = vmatmul.f32.gmra.mxu0 %v244
  %v5309 = vpop.f32.mrf.mxu0
  %v5310 = vadd.f32 %v5266, %v5309
  %5311 = vmatmul.f32.gmra.mxu0 %v323
  %v5312 = vpop.f32.mrf.mxu0
  %v5313 = vadd.f32 %v5269, %v5312
  %5314 = vmatmul.f32.gmra.mxu0 %v402
  %v5315 = vpop.f32.mrf.mxu0
  %v5316 = vadd.f32 %v5272, %v5315
  %5317 = vmatmul.f32.gmra.mxu0 %v481
  %v5318 = vpop.f32.mrf.mxu0
  %v5319 = vadd.f32 %v5275, %v5318
  %5320 = vmatmul.f32.gmra.mxu0 %v560
  %v5321 = vpop.f32.mrf.mxu0
  %v5322 = vadd.f32 %v5278, %v5321
  %5323 = vmatmul.f32.gmra.mxu0 %v639
  %v5324 = vpop.f32.mrf.mxu0
  %v5325 = vadd.f32 %v5281, %v5324
  %5326 = vmatmul.f32.gmra.mxu0 %v718
  %v5327 = vpop.f32.mrf.mxu0
  %v5328 = vadd.f32 %v5284, %v5327
  %5329 = vdwg.mxu0
  %5330 = vmatpush.msra.mxu0 %v1953
  %5331 = vmatpush.msra.mxu0 %v1952
  %5332 = vmatpush.msra.mxu0 %v1951
  %5333 = vmatpush.msra.mxu0 %v1950
  %5334 = vmatpush.msra.mxu0 %v1949
  %5335 = vmatpush.msra.mxu0 %v1948
  %5336 = vmatpush.msra.mxu0 %v1947
  %5337 = vmatpush.msra.mxu0 %v1946
  %5338 = vmatpush.msra.mxu0 %v1945
  %5339 = vmatpush.msra.mxu0 %v1944
  %5340 = vmatpush.msra.mxu0 %v1943
  %5341 = vmatpush.msra.mxu0 %v1942
  %5342 = vmatpush.msra.mxu0 %v1941
  %5343 = vmatpush.msra.mxu0 %v1940
  %5344 = vmatpush.msra.mxu0 %v1939
  %5345 = vmatpush.msra.mxu0 %v1938
  %5346 = vmatmul.f32.gmra.mxu0 %v87
  %v5347 = vpop.f32.mrf.mxu0
  %v5348 = vadd.f32 %v5304, %v5347
  %5349 = vmatmul.f32.gmra.mxu0 %v166
  %v5350 = vpop.f32.mrf.mxu0
  %v5351 = vadd.f32 %v5307, %v5350
  %5352 = vmatmul.f32.gmra.mxu0 %v245
  %v5353 = vpop.f32.mrf.mxu0
  %v5354 = vadd.f32 %v5310, %v5353
  %5355 = vmatmul.f32.gmra.mxu0 %v324
  %v5356 = vpop.f32.mrf.mxu0
  %v5357 = vadd.f32 %v5313, %v5356
  %5358 = vmatmul.f32.gmra.mxu0 %v403
  %v5359 = vpop.f32.mrf.mxu0
  %v5360 = vadd.f32 %v5316, %v5359
  %5361 = vmatmul.f32.gmra.mxu0 %v482
  %v5362 = vpop.f32.mrf.mxu0
  %v5363 = vadd.f32 %v5319, %v5362
  %5364 = vmatmul.f32.gmra.mxu0 %v561
  %v5365 = vpop.f32.mrf.mxu0
  %v5366 = vadd.f32 %v5322, %v5365
  %5367 = vmatmul.f32.gmra.mxu0 %v640
  %v5368 = vpop.f32.mrf.mxu0
  %v5369 = vadd.f32 %v5325, %v5368
  %5370 = vmatmul.f32.gmra.mxu0 %v719
  %v5371 = vpop.f32.mrf.mxu0
  %v5372 = vadd.f32 %v5328, %v5371
  %5373 = vdwg.mxu0
  %5374 = vmatpush.msra.mxu0 %v1969
  %5375 = vmatpush.msra.mxu0 %v1968
  %5376 = vmatpush.msra.mxu0 %v1967
  %5377 = vmatpush.msra.mxu0 %v1966
  %5378 = vmatpush.msra.mxu0 %v1965
  %5379 = vmatpush.msra.mxu0 %v1964
  %5380 = vmatpush.msra.mxu0 %v1963
  %5381 = vmatpush.msra.mxu0 %v1962
  %5382 = vmatpush.msra.mxu0 %v1961
  %5383 = vmatpush.msra.mxu0 %v1960
  %5384 = vmatpush.msra.mxu0 %v1959
  %5385 = vmatpush.msra.mxu0 %v1958
  %5386 = vmatpush.msra.mxu0 %v1957
  %5387 = vmatpush.msra.mxu0 %v1956
  %5388 = vmatpush.msra.mxu0 %v1955
  %5389 = vmatpush.msra.mxu0 %v1954
  %5390 = vmatmul.f32.gmra.mxu0 %v88
  %v5391 = vpop.f32.mrf.mxu0
  %v5392 = vadd.f32 %v5348, %v5391
  %5393 = vmatmul.f32.gmra.mxu0 %v167
  %v5394 = vpop.f32.mrf.mxu0
  %v5395 = vadd.f32 %v5351, %v5394
  %5396 = vmatmul.f32.gmra.mxu0 %v246
  %v5397 = vpop.f32.mrf.mxu0
  %v5398 = vadd.f32 %v5354, %v5397
  %5399 = vmatmul.f32.gmra.mxu0 %v325
  %v5400 = vpop.f32.mrf.mxu0
  %v5401 = vadd.f32 %v5357, %v5400
  %5402 = vmatmul.f32.gmra.mxu0 %v404
  %v5403 = vpop.f32.mrf.mxu0
  %v5404 = vadd.f32 %v5360, %v5403
  %5405 = vmatmul.f32.gmra.mxu0 %v483
  %v5406 = vpop.f32.mrf.mxu0
  %v5407 = vadd.f32 %v5363, %v5406
  %5408 = vmatmul.f32.gmra.mxu0 %v562
  %v5409 = vpop.f32.mrf.mxu0
  %v5410 = vadd.f32 %v5366, %v5409
  %5411 = vmatmul.f32.gmra.mxu0 %v641
  %v5412 = vpop.f32.mrf.mxu0
  %v5413 = vadd.f32 %v5369, %v5412
  %5414 = vmatmul.f32.gmra.mxu0 %v720
  %v5415 = vpop.f32.mrf.mxu0
  %v5416 = vadd.f32 %v5372, %v5415
  %5417 = vdwg.mxu0
  %5418 = vmatpush.msra.mxu0 %v1985
  %5419 = vmatpush.msra.mxu0 %v1984
  %5420 = vmatpush.msra.mxu0 %v1983
  %5421 = vmatpush.msra.mxu0 %v1982
  %5422 = vmatpush.msra.mxu0 %v1981
  %5423 = vmatpush.msra.mxu0 %v1980
  %5424 = vmatpush.msra.mxu0 %v1979
  %5425 = vmatpush.msra.mxu0 %v1978
  %5426 = vmatpush.msra.mxu0 %v1977
  %5427 = vmatpush.msra.mxu0 %v1976
  %5428 = vmatpush.msra.mxu0 %v1975
  %5429 = vmatpush.msra.mxu0 %v1974
  %5430 = vmatpush.msra.mxu0 %v1973
  %5431 = vmatpush.msra.mxu0 %v1972
  %5432 = vmatpush.msra.mxu0 %v1971
  %5433 = vmatpush.msra.mxu0 %v1970
  %5434 = vmatmul.f32.gmra.mxu0 %v89
  %v5435 = vpop.f32.mrf.mxu0
  %v5436 = vadd.f32 %v5392, %v5435
  %5437 = vmatmul.f32.gmra.mxu0 %v168
  %v5438 = vpop.f32.mrf.mxu0
  %v5439 = vadd.f32 %v5395, %v5438
  %5440 = vmatmul.f32.gmra.mxu0 %v247
  %v5441 = vpop.f32.mrf.mxu0
  %v5442 = vadd.f32 %v5398, %v5441
  %5443 = vmatmul.f32.gmra.mxu0 %v326
  %v5444 = vpop.f32.mrf.mxu0
  %v5445 = vadd.f32 %v5401, %v5444
  %5446 = vmatmul.f32.gmra.mxu0 %v405
  %v5447 = vpop.f32.mrf.mxu0
  %v5448 = vadd.f32 %v5404, %v5447
  %5449 = vmatmul.f32.gmra.mxu0 %v484
  %v5450 = vpop.f32.mrf.mxu0
  %v5451 = vadd.f32 %v5407, %v5450
  %5452 = vmatmul.f32.gmra.mxu0 %v563
  %v5453 = vpop.f32.mrf.mxu0
  %v5454 = vadd.f32 %v5410, %v5453
  %5455 = vmatmul.f32.gmra.mxu0 %v642
  %v5456 = vpop.f32.mrf.mxu0
  %v5457 = vadd.f32 %v5413, %v5456
  %5458 = vmatmul.f32.gmra.mxu0 %v721
  %v5459 = vpop.f32.mrf.mxu0
  %v5460 = vadd.f32 %v5416, %v5459
  %5461 = vdwg.mxu0
  %v5462 = vmul.f32 %v5436, %v5436
  %v5463 = vmul.f32 %v5439, %v5439
  %v5464 = vmul.f32 %v5442, %v5442
  %v5465 = vmul.f32 %v5445, %v5445
  %v5466 = vmul.f32 %v5448, %v5448
  %v5467 = vmul.f32 %v5451, %v5451
  %v5468 = vmul.f32 %v5454, %v5454
  %v5469 = vmul.f32 %v5457, %v5457
  %v5470 = vmul.f32 %v5460, %v5460
  %v5471 = vmul.f32 %v5462, %v5436
  %v5472 = vmul.f32 %v5463, %v5439
  %v5473 = vmul.f32 %v5464, %v5442
  %v5474 = vmul.f32 %v5465, %v5445
  %v5475 = vmul.f32 %v5466, %v5448
  %v5476 = vmul.f32 %v5467, %v5451
  %v5477 = vmul.f32 %v5468, %v5454
  %v5478 = vmul.f32 %v5469, %v5457
  %v5479 = vmul.f32 %v5470, %v5460
  %v5480 = vmul.f32 %v5471, 0.044715
  %v5481 = vmul.f32 %v5472, 0.044715
  %v5482 = vmul.f32 %v5473, 0.044715
  %v5483 = vmul.f32 %v5474, 0.044715
  %v5484 = vmul.f32 %v5475, 0.044715
  %v5485 = vmul.f32 %v5476, 0.044715
  %v5486 = vmul.f32 %v5477, 0.044715
  %v5487 = vmul.f32 %v5478, 0.044715
  %v5488 = vmul.f32 %v5479, 0.044715
  %v5489 = vmul.f32 %v5436, 0.5
  %v5490 = vmul.f32 %v5439, 0.5
  %v5491 = vmul.f32 %v5442, 0.5
  %v5492 = vmul.f32 %v5445, 0.5
  %v5493 = vmul.f32 %v5448, 0.5
  %v5494 = vmul.f32 %v5451, 0.5
  %v5495 = vmul.f32 %v5454, 0.5
  %v5496 = vmul.f32 %v5457, 0.5
  %v5497 = vmul.f32 %v5460, 0.5
  %v5498 = vadd.f32 %v5436, %v5480
  %v5499 = vadd.f32 %v5439, %v5481
  %v5500 = vadd.f32 %v5442, %v5482
  %v5501 = vadd.f32 %v5445, %v5483
  %v5502 = vadd.f32 %v5448, %v5484
  %v5503 = vadd.f32 %v5451, %v5485
  %v5504 = vadd.f32 %v5454, %v5486
  %v5505 = vadd.f32 %v5457, %v5487
  %v5506 = vadd.f32 %v5460, %v5488
  %v5507 = vmul.f32 %v5498, 0.7978846
  %v5508 = vmul.f32 %v5499, 0.7978846
  %v5509 = vmul.f32 %v5500, 0.7978846
  %v5510 = vmul.f32 %v5501, 0.7978846
  %v5511 = vmul.f32 %v5502, 0.7978846
  %v5512 = vmul.f32 %v5503, 0.7978846
  %v5513 = vmul.f32 %v5504, 0.7978846
  %v5514 = vmul.f32 %v5505, 0.7978846
  %v5515 = vmul.f32 %v5506, 0.7978846
  %v5516 = vtanh.pop %v5507
  %v5517 = vtanh.pop %v5508
  %v5518 = vtanh.pop %v5509
  %v5519 = vtanh.pop %v5510
  %v5520 = vtanh.pop %v5511
  %v5521 = vtanh.pop %v5512
  %v5522 = vtanh.pop %v5513
  %v5523 = vtanh.pop %v5514
  %v5524 = vtanh.pop %v5515
  %v5525 = vadd.f32 %v5516, 1.0
  %v5526 = vadd.f32 %v5517, 1.0
  %v5527 = vadd.f32 %v5518, 1.0
  %v5528 = vadd.f32 %v5519, 1.0
  %v5529 = vadd.f32 %v5520, 1.0
  %v5530 = vadd.f32 %v5521, 1.0
  %v5531 = vadd.f32 %v5522, 1.0
  %v5532 = vadd.f32 %v5523, 1.0
  %v5533 = vadd.f32 %v5524, 1.0
  %v5534 = vmul.f32 %v5489, %v5525
  %v5535 = vmul.f32 %v5490, %v5526
  %v5536 = vmul.f32 %v5491, %v5527
  %v5537 = vmul.f32 %v5492, %v5528
  %v5538 = vmul.f32 %v5493, %v5529
  %v5539 = vmul.f32 %v5494, %v5530
  %v5540 = vmul.f32 %v5495, %v5531
  %v5541 = vmul.f32 %v5496, %v5532
  %v5542 = vmul.f32 %v5497, %v5533
  %v5543 = vadd.f32 %v5534, %v5480
  %v5544 = vadd.f32 %v5535, %v5481
  %v5545 = vadd.f32 %v5536, %v5482
  %v5546 = vadd.f32 %v5537, %v5483
  %v5547 = vadd.f32 %v5538, %v5484
  %v5548 = vadd.f32 %v5539, %v5485
  %v5549 = vadd.f32 %v5540, %v5486
  %v5550 = vadd.f32 %v5541, %v5487
  %v5551 = vadd.f32 %v5542, %v5488
  %vm5552 = vcmask 31744
  %5553 = vst.msk [vmem:[%s2] sm:$0xff] %vm5552, %v5543
  %5554 = vst.msk [vmem:[%s2 + $0x8] sm:$0xff] %vm5552, %v5544
  %5555 = vst.msk [vmem:[%s2 + $0x10] sm:$0xff] %vm5552, %v5545
  %5556 = vst.msk [vmem:[%s2 + $0x18] sm:$0xff] %vm5552, %v5546
  %5557 = vst.msk [vmem:[%s2 + $0x20] sm:$0xff] %vm5552, %v5547
  %5558 = vst.msk [vmem:[%s2 + $0x28] sm:$0xff] %vm5552, %v5548
  %5559 = vst.msk [vmem:[%s2 + $0x30] sm:$0xff] %vm5552, %v5549
  %5560 = vst.msk [vmem:[%s2 + $0x38] sm:$0xff] %vm5552, %v5550
  %5561 = vst.msk [vmem:[%s2 + $0x40] sm:$0xff] %vm5552, %v5551
  // Predicated region
  $region10: #{model_forward.1} parent=0 // pred_check
    _
  $region11: #{model_forward.1} parent=0 // pred_check_branch
    %5563 = sbr.rel (0) target = $region13
  $region12: #{model_forward.1} parent=0 // pred_region
    _
  $region13: #{model_forward.1} parent=0 // pred_fallthru
    _
  // Predicated region
  $region14: #{model_forward.1} parent=0 // pred_check
    _
  $region15: #{model_forward.1} parent=0 // pred_check_branch
    %5565 = sbr.rel (0) target = $region17
  $region16: #{model_forward.1} parent=0 // pred_region
    _
  $region17: #{model_forward.1} parent=0 // pred_fallthru
    _

</llo_original>
